<compile_context>
chip_gen: v7x
topology: tpu7x:2x2x1
jax: 0.10.0
libtpu: 0.0.40
codegen_flags: <defaults>
</compile_context>

<pallas_src>
import math
import numpy as np
import jax
import jax.numpy as jnp
from jax.experimental import pallas as pl
from jax.experimental.pallas import tpu as pltpu


# -----------------------------------------------------------------------------
# Host-side setup (faithful numpy port of PhaseHarmonicPruned.compute_idx_info)
# -----------------------------------------------------------------------------
def compute_idx_info(xi, Q, delta_j, num_k_modulus, delta_k):
    xi = np.array(xi)
    jeq = np.arange(xi.size)
    jeq0, jpeq0, jeq1, jpeq1 = jeq, jeq, jeq, jeq
    keq0, kpeq0 = np.zeros_like(jeq0), np.zeros_like(jpeq0)
    keq1, kpeq1 = np.zeros_like(jeq0), np.ones_like(jpeq0)
    num_coeff_abs = jeq.size
    num_coeff_cplx = jeq.size

    j, jp = np.where(xi[:, None] > xi[None, :])
    loc = np.where(jp - j <= delta_j * Q)
    j, jp = j[loc], jp[loc]

    kp0 = np.ravel(np.repeat(np.arange(num_k_modulus)[None, :], j.size, axis=0))
    k0 = np.zeros_like(kp0)
    j0 = np.ravel(np.repeat(j[:, None], num_k_modulus, axis=1))
    jp0 = np.ravel(np.repeat(jp[:, None], num_k_modulus, axis=1))
    num_coeff_abs += j.size
    num_coeff_cplx += j.size * (num_k_modulus - 1)

    if delta_k is None:
        num_k = 1
        k1 = np.ones_like(j)
        kp1 = np.ones_like(j)
        j1 = j.copy()
        jp1 = jp.copy()
    else:
        num_k = len(delta_k)
        delta_k = np.array(delta_k)
        center = (jp - j)[:, None] / Q
        kp1 = np.ravel(np.power(2.0, center) + delta_k[None, :])
        k1 = np.ones_like(kp1)
        j1 = np.ravel(np.repeat(j[:, None], num_k, axis=1))
        jp1 = np.ravel(np.repeat(jp[:, None], num_k, axis=1))
    num_coeff_cplx += j.size * num_k

    j_all = np.concatenate((jeq0, jeq1, j0, j1))
    jp_all = np.concatenate((jpeq0, jpeq1, jp0, jp1))
    k_all = np.concatenate((keq0, keq1, k0, k1))
    kp_all = np.concatenate((kpeq0, kpeq1, kp0, kp1))
    keep_k = np.floor(np.stack((k_all, kp_all), axis=1)).astype(int)
    keep_idx_xi = np.stack((j_all, jp_all), axis=1).astype(int)
    return keep_idx_xi, keep_k, num_coeff_abs, num_coeff_cplx


def make_xi(N, Q, high_freq):
    # Synthetic stand-in for compute_battle_lemarie_parameters: geometric grid.
    num_psi = int(math.log2(N)) * Q
    xi = [high_freq * 2.0 ** (-q / Q) for q in range(num_psi)]
    xi.append(0.0)  # low-pass center frequency appended, as in init_filters
    return xi


def make_filt_hat(xi, T):
    # Synthetic analytic band-pass filters (Gaussian bumps in frequency) + low-pass.
    # Real-valued in Fourier (like Battle-Lemarie), stored as (J, T, 2) re/im.
    om = np.arange(T, dtype=np.float64) / T
    rows = []
    for x0 in xi[:-1]:
        sig = max(x0 / 4.0, 1.0 / T)
        rows.append(np.exp(-0.5 * ((om - x0) / sig) ** 2))
    sig_low = max(xi[-2] / 4.0, 1.0 / T)
    dist0 = np.minimum(om, 1.0 - om)
    rows.append(np.exp(-0.5 * (dist0 / sig_low) ** 2))
    filt = np.stack(rows, 0).astype(np.float32)            # (J, T), real
    return np.stack([filt, np.zeros_like(filt)], axis=-1)  # (J, T, 2)


def _round_up(x, m):
    return ((x + m - 1) // m) * m


# -----------------------------------------------------------------------------
# Fused kernel: forward DFT (once) -> filter bank multiply (batched over J into
# the matmul M dim) -> inverse DFT (conj(F)/T) -> modulus/phase (hoisted) ->
# first-order means + all second-order pair coefficients (static indices, exact
# static integer phase powers).
# -----------------------------------------------------------------------------
def make_fused_kernel(pairs, T_true, T_pad, BC_pad, J_pad):
    inv_T = np.float32(1.0 / float(T_true))

    def cpow(c, s, k):
        # (c + i*s)**k for a small static integer k >= 0 (exact, unrolled).
        pr = jnp.ones_like(c)
        pi = jnp.zeros_like(c)
        for _ in range(int(k)):
            pr, pi = pr * c - pi * s, pr * s + pi * c
        return pr, pi

    def kernel(xr_ref, xm_ref, fr_ref, fi_ref, Fr_ref, Fi_ref,
               fst_ref, scd_r_ref, scd_i_ref):
        xr = xr_ref[...]                     # (BCp, Tp)
        xm = xm_ref[...]
        Fr = Fr_ref[...]                     # (Tp, Tp) forward DFT, real part
        Fi = Fi_ref[...]                     # (Tp, Tp) forward DFT, imag part
        Fsum = Fr + Fi                       # Karatsuba helper (forward)
        Fdif = Fr - Fi                       # Karatsuba helper (inverse = conj(F)/T)

        # ---- forward DFT, 3-multiply complex matmul --------------------------
        t1 = jnp.dot(xr, Fr, preferred_element_type=jnp.float32)
        t2 = jnp.dot(xm, Fi, preferred_element_type=jnp.float32)
        t3 = jnp.dot(xr + xm, Fsum, preferred_element_type=jnp.float32)
        xh_r = t1 - t2                       # (BCp, Tp)
        xh_i = t3 - t1 - t2

        # ---- filter multiply, batched over the filter axis -------------------
        fr = fr_ref[...]                     # (Jp, Tp)
        fi = fi_ref[...]
        pr3 = fr[:, None, :] * xh_r[None, :, :] - fi[:, None, :] * xh_i[None, :, :]
        pi3 = fr[:, None, :] * xh_i[None, :, :] + fi[:, None, :] * xh_r[None, :, :]
        # fold the 1/T of the normalized inverse DFT into the cheap pointwise op
        pr = pr3.reshape(J_pad * BC_pad, T_pad) * inv_T
        pi = pi3.reshape(J_pad * BC_pad, T_pad) * inv_T

        # ---- inverse DFT with B = conj(F)/T, 3-multiply complex matmul -------
        u1 = jnp.dot(pr, Fr, preferred_element_type=jnp.float32)
        u2 = jnp.dot(pi, Fi, preferred_element_type=jnp.float32)
        u3 = jnp.dot(pr + pi, Fdif, preferred_element_type=jnp.float32)
        yr = u1 + u2                         # (Jp*BCp, Tp) = x_filt real
        yi = u3 - u1 + u2                    # (Jp*BCp, Tp) = x_filt imag

        # ---- modulus + unit phase, hoisted once per filter -------------------
        r = jnp.sqrt(yr * yr + yi * yi)
        nz = r > 0.0
        inv_r = 1.0 / jnp.where(nz, r, 1.0)
        c = jnp.where(nz, yr * inv_r, 1.0)   # arg(0) := 0, matches jnp.angle(0)
        s = jnp.where(nz, yi * inv_r, 0.0)

        # ---- first order: k = 0 harmonic -> |x_filt|, mean over true T -------
        fst_ref[...] = jnp.sum(r, axis=-1, keepdims=True) * inv_T   # (Jp*BCp, 1)

        # ---- second order: all pairs, static indices & static powers ---------
        scd_r_ref[...] = jnp.zeros_like(scd_r_ref)
        scd_i_ref[...] = jnp.zeros_like(scd_i_ref)
        for p, (i0, i1, k0, k1) in enumerate(pairs):
            sl0 = slice(i0 * BC_pad, (i0 + 1) * BC_pad)
            sl1 = slice(i1 * BC_pad, (i1 + 1) * BC_pad)
            r0, c0, s0 = r[sl0, :], c[sl0, :], s[sl0, :]
            r1, c1, s1 = r[sl1, :], c[sl1, :], s[sl1, :]
            a_re, a_im = cpow(c0, s0, k0)    # e^{+i k0 theta0}
            b_re, b_im = cpow(c1, -s1, k1)   # e^{-i k1 theta1}  (conjugate)
            amp = r0 * r1
            prod_re = amp * (a_re * b_re - a_im * b_im)
            prod_im = amp * (a_re * b_im + a_im * b_re)
            scd_r_ref[:, p:p + 1] = jnp.sum(prod_re, axis=-1, keepdims=True) * inv_T
            scd_i_ref[:, p:p + 1] = jnp.sum(prod_im, axis=-1, keepdims=True) * inv_T

    return kernel


# -----------------------------------------------------------------------------
# Wrapper: padding to the (8,128) tile grid, DFT-matrix construction, packaging.
# -----------------------------------------------------------------------------
def phase_harmonic_pruned_forward(x, filt_hat, xi_idx, ks):
    B, C, T, _ = x.shape
    BC = B * C
    J = int(filt_hat.shape[0])
    P = int(xi_idx.shape[0])

    T_pad = _round_up(max(T, 128), 128)
    BC_pad = _round_up(max(BC, 8), 8)
    J_pad = _round_up(max(J, 8), 8)
    P_pad = _round_up(max(P, 128), 128)

    # Zero-pad everything to the f32 (8,128) tile grid; zero padding keeps the
    # DFT / filtering exact in the un-padded region and contributes 0 to means.
    x_re = jnp.zeros((BC_pad, T_pad), jnp.float32).at[:BC, :T].set(
        x[..., 0].reshape(BC, T).astype(jnp.float32))
    x_im = jnp.zeros((BC_pad, T_pad), jnp.float32).at[:BC, :T].set(
        x[..., 1].reshape(BC, T).astype(jnp.float32))
    f_re = jnp.zeros((J_pad, T_pad), jnp.float32).at[:J, :T].set(
        filt_hat[..., 0].astype(jnp.float32))
    f_im = jnp.zeros((J_pad, T_pad), jnp.float32).at[:J, :T].set(
        filt_hat[..., 1].astype(jnp.float32))

    # Forward DFT matrix (unnormalized, torch.fft convention), embedded in the
    # padded grid. The inverse is derived in-kernel as conj(F)/T: no extra
    # T×T matrices shipped/resident.
    t = np.arange(T)
    ang = 2.0 * np.pi * np.outer(t, t) / T
    Fw_re_np = np.zeros((T_pad, T_pad), np.float32)
    Fw_im_np = np.zeros((T_pad, T_pad), np.float32)
    Fw_re_np[:T, :T] = np.cos(ang)
    Fw_im_np[:T, :T] = -np.sin(ang)
    Fw_re = jnp.asarray(Fw_re_np)
    Fw_im = jnp.asarray(Fw_im_np)

    # Pair table is module configuration (computed in __init__) -> static.
    pairs = [(int(xi_idx[p, 0]), int(xi_idx[p, 1]),
              int(ks[p, 0]), int(ks[p, 1])) for p in range(P)]

    kernel = make_fused_kernel(pairs, T, T_pad, BC_pad, J_pad)

    full2 = lambda i: (0, 0)
    fst, scd_re, scd_im = pl.pallas_call(
        kernel,
        grid=(1,),
        in_specs=[
            pl.BlockSpec((BC_pad, T_pad), full2),
            pl.BlockSpec((BC_pad, T_pad), full2),
            pl.BlockSpec((J_pad, T_pad), full2),
            pl.BlockSpec((J_pad, T_pad), full2),
            pl.BlockSpec((T_pad, T_pad), full2),
            pl.BlockSpec((T_pad, T_pad), full2),
        ],
        out_specs=[
            pl.BlockSpec((J_pad * BC_pad, 1), full2),
            pl.BlockSpec((BC_pad, P_pad), full2),
            pl.BlockSpec((BC_pad, P_pad), full2),
        ],
        out_shape=(
            jax.ShapeDtypeStruct((J_pad * BC_pad, 1), jnp.float32),
            jax.ShapeDtypeStruct((BC_pad, P_pad), jnp.float32),
            jax.ShapeDtypeStruct((BC_pad, P_pad), jnp.float32),
        ),
        compiler_params=pltpu.CompilerParams(
            dimension_semantics=("arbitrary",)),
    )(x_re, x_im, f_re, f_im, Fw_re, Fw_im)

    # Un-pad and package exactly as PyTorch does.
    fst_jbc = fst[:, 0].reshape(J_pad, BC_pad)[:J, :BC]           # (J, BC)
    fst_bcj = fst_jbc.T.reshape(B, C, J)
    fst_order = jnp.stack([fst_bcj, jnp.zeros_like(fst_bcj)], axis=-1)  # (B,C,J,2)

    scd_r = scd_re[:BC, :P].reshape(B, C, P)
    scd_i = scd_im[:BC, :P].reshape(B, C, P)
    scd_order = jnp.stack([scd_r, scd_i], axis=-1)                # (B, C, P, 2)
    return fst_order, scd_order


# -----------------------------------------------------------------------------
# Pure-JAX reference (same math via jnp.fft / angles) for a correctness check.
# -----------------------------------------------------------------------------
def reference_forward(x, filt_hat, xi_idx, ks):
    xc = x[..., 0] + 1j * x[..., 1]                       # (B, C, T)
    fc = filt_hat[..., 0] + 1j * filt_hat[..., 1]         # (J, T)
    x_hat = jnp.fft.fft(xc, axis=-1)
    xf = jnp.fft.ifft(x_hat[:, :, None, :] * fc[None, None, :, :], axis=-1)
    fst = jnp.mean(jnp.abs(xf), axis=-1)
    fst_order = jnp.stack([fst, jnp.zeros_like(fst)], axis=-1)

    def ph(z, k):
        return jnp.abs(z) * jnp.exp(1j * k * jnp.angle(z))

    z0 = xf[:, :, xi_idx[:, 0], :]
    z1 = xf[:, :, xi_idx[:, 1], :]
    k0 = ks[:, 0].astype(np.float32)[None, None, :, None]
    k1 = ks[:, 1].astype(np.float32)[None, None, :, None]
    scd = jnp.mean(ph(z0, k0) * ph(z1, -k1), axis=-1)
    scd_order = jnp.stack([jnp.real(scd), jnp.imag(scd)], axis=-1)
    return fst_order, scd_order


if __name__ == "__main__":
    # Module hyper-parameters (defaults of PhaseHarmonicPruned, synthetic bank).
    N, Q, T = 16, 1, 16
    high_freq = 0.5
    delta_j, delta_k, num_k_modulus = 1, [-1, 0, 1], 3

    xi = make_xi(N, Q, high_freq)
    filt_hat_np = make_filt_hat(xi, T)                     # (J, T, 2), J = 5
    xi_idx, ks, _, _ = compute_idx_info(xi, Q, delta_j, num_k_modulus, delta_k)

    B, C = 2, 4
    key = jax.random.PRNGKey(0)
    x = jax.random.normal(key, (B, C, T, 2), dtype=jnp.float32)
    filt_hat = jnp.asarray(filt_hat_np)

    fst_order, scd_order = phase_harmonic_pruned_forward(x, filt_hat, xi_idx, ks)
    fst_order = jax.block_until_ready(fst_order)
    scd_order = jax.block_until_ready(scd_order)

    fst_ref, scd_ref = reference_forward(x, filt_hat, xi_idx, ks)
    np.testing.assert_allclose(np.asarray(fst_order), np.asarray(fst_ref),
                               rtol=5e-3, atol=5e-4)
    np.testing.assert_allclose(np.asarray(scd_order), np.asarray(scd_ref),
                               rtol=5e-3, atol=5e-4)

    print("KERNEL_OK")
</pallas_src>

<mosaic_0001>
module attributes {stable_mosaic.version = 11 : i64} {
  func.func @kernel(%arg0: i32, %arg1: memref<8x128xf32, #tpu.memory_space<vmem>>, %arg2: memref<8x128xf32, #tpu.memory_space<vmem>>, %arg3: memref<8x128xf32, #tpu.memory_space<vmem>>, %arg4: memref<8x128xf32, #tpu.memory_space<vmem>>, %arg5: memref<128x128xf32, #tpu.memory_space<vmem>>, %arg6: memref<128x128xf32, #tpu.memory_space<vmem>>, %arg7: memref<64x1xf32, #tpu.memory_space<vmem>>, %arg8: memref<8x128xf32, #tpu.memory_space<vmem>>, %arg9: memref<8x128xf32, #tpu.memory_space<vmem>>) attributes {dimension_semantics = [#tpu.dimension_semantics<arbitrary>], iteration_bounds = array<i64: 1>, scalar_prefetch = 0 : i64, scratch_operands = 0 : i64, tpu.core_type = #tpu.core_type<tc>, window_params = [{pipeline_mode = #tpu.pipeline_mode<synchronous>, transform_indices = @transform_0, window_bounds = array<i64: 8, 128>}, {pipeline_mode = #tpu.pipeline_mode<synchronous>, transform_indices = @transform_1, window_bounds = array<i64: 8, 128>}, {pipeline_mode = #tpu.pipeline_mode<synchronous>, transform_indices = @transform_2, window_bounds = array<i64: 8, 128>}, {pipeline_mode = #tpu.pipeline_mode<synchronous>, transform_indices = @transform_3, window_bounds = array<i64: 8, 128>}, {pipeline_mode = #tpu.pipeline_mode<synchronous>, transform_indices = @transform_4, window_bounds = array<i64: 128, 128>}, {pipeline_mode = #tpu.pipeline_mode<synchronous>, transform_indices = @transform_5, window_bounds = array<i64: 128, 128>}, {pipeline_mode = #tpu.pipeline_mode<synchronous>, transform_indices = @transform_6, window_bounds = array<i64: 64, 1>}, {pipeline_mode = #tpu.pipeline_mode<synchronous>, transform_indices = @transform_7, window_bounds = array<i64: 8, 128>}, {pipeline_mode = #tpu.pipeline_mode<synchronous>, transform_indices = @transform_8, window_bounds = array<i64: 8, 128>}]} {
    %c0 = arith.constant 0 : index
    %c0_0 = arith.constant 0 : index
    %0 = vector.load %arg1[%c0, %c0_0] : memref<8x128xf32, #tpu.memory_space<vmem>>, vector<8x128xf32>
    %c0_1 = arith.constant 0 : index
    %c0_2 = arith.constant 0 : index
    %1 = vector.load %arg2[%c0_1, %c0_2] : memref<8x128xf32, #tpu.memory_space<vmem>>, vector<8x128xf32>
    %c0_3 = arith.constant 0 : index
    %c0_4 = arith.constant 0 : index
    %2 = vector.load %arg5[%c0_3, %c0_4] : memref<128x128xf32, #tpu.memory_space<vmem>>, vector<128x128xf32>
    %c0_5 = arith.constant 0 : index
    %c0_6 = arith.constant 0 : index
    %3 = vector.load %arg6[%c0_5, %c0_6] : memref<128x128xf32, #tpu.memory_space<vmem>>, vector<128x128xf32>
    %4 = arith.addf %2, %3 : vector<128x128xf32>
    %5 = arith.subf %2, %3 : vector<128x128xf32>
    %cst = arith.constant dense<0.000000e+00> : vector<8x128xf32>
    %6 = tpu.matmul %0, %2, %cst {dimension_numbers = #tpu.dot_dimension_numbers<[1], [0], [0], [1], [0, 0, 1, 1], [], []>} : vector<8x128xf32>, vector<128x128xf32>, vector<8x128xf32> -> vector<8x128xf32>
    %cst_7 = arith.constant dense<0.000000e+00> : vector<8x128xf32>
    %7 = tpu.matmul %1, %3, %cst_7 {dimension_numbers = #tpu.dot_dimension_numbers<[1], [0], [0], [1], [0, 0, 1, 1], [], []>} : vector<8x128xf32>, vector<128x128xf32>, vector<8x128xf32> -> vector<8x128xf32>
    %8 = arith.addf %0, %1 : vector<8x128xf32>
    %cst_8 = arith.constant dense<0.000000e+00> : vector<8x128xf32>
    %9 = tpu.matmul %8, %4, %cst_8 {dimension_numbers = #tpu.dot_dimension_numbers<[1], [0], [0], [1], [0, 0, 1, 1], [], []>} : vector<8x128xf32>, vector<128x128xf32>, vector<8x128xf32> -> vector<8x128xf32>
    %10 = arith.subf %6, %7 : vector<8x128xf32>
    %11 = arith.subf %9, %6 : vector<8x128xf32>
    %12 = arith.subf %11, %7 : vector<8x128xf32>
    %c0_9 = arith.constant 0 : index
    %c0_10 = arith.constant 0 : index
    %13 = vector.load %arg3[%c0_9, %c0_10] : memref<8x128xf32, #tpu.memory_space<vmem>>, vector<8x128xf32>
    %c0_11 = arith.constant 0 : index
    %c0_12 = arith.constant 0 : index
    %14 = vector.load %arg4[%c0_11, %c0_12] : memref<8x128xf32, #tpu.memory_space<vmem>>, vector<8x128xf32>
    %15 = vector.shape_cast %13 : vector<8x128xf32> to vector<8x1x128xf32>
    %16 = vector.shape_cast %10 : vector<8x128xf32> to vector<1x8x128xf32>
    %17 = vector.broadcast %15 : vector<8x1x128xf32> to vector<8x8x128xf32>
    %18 = vector.broadcast %16 : vector<1x8x128xf32> to vector<8x8x128xf32>
    %19 = arith.mulf %17, %18 : vector<8x8x128xf32>
    %20 = vector.shape_cast %14 : vector<8x128xf32> to vector<8x1x128xf32>
    %21 = vector.shape_cast %12 : vector<8x128xf32> to vector<1x8x128xf32>
    %22 = vector.broadcast %20 : vector<8x1x128xf32> to vector<8x8x128xf32>
    %23 = vector.broadcast %21 : vector<1x8x128xf32> to vector<8x8x128xf32>
    %24 = arith.mulf %22, %23 : vector<8x8x128xf32>
    %25 = arith.subf %19, %24 : vector<8x8x128xf32>
    %26 = vector.shape_cast %13 : vector<8x128xf32> to vector<8x1x128xf32>
    %27 = vector.shape_cast %12 : vector<8x128xf32> to vector<1x8x128xf32>
    %28 = vector.broadcast %26 : vector<8x1x128xf32> to vector<8x8x128xf32>
    %29 = vector.broadcast %27 : vector<1x8x128xf32> to vector<8x8x128xf32>
    %30 = arith.mulf %28, %29 : vector<8x8x128xf32>
    %31 = vector.shape_cast %14 : vector<8x128xf32> to vector<8x1x128xf32>
    %32 = vector.shape_cast %10 : vector<8x128xf32> to vector<1x8x128xf32>
    %33 = vector.broadcast %31 : vector<8x1x128xf32> to vector<8x8x128xf32>
    %34 = vector.broadcast %32 : vector<1x8x128xf32> to vector<8x8x128xf32>
    %35 = arith.mulf %33, %34 : vector<8x8x128xf32>
    %36 = arith.addf %30, %35 : vector<8x8x128xf32>
    %37 = vector.shape_cast %25 : vector<8x8x128xf32> to vector<64x128xf32>
    %cst_13 = arith.constant 6.250000e-02 : f32
    %38 = vector.broadcast %cst_13 : f32 to vector<64x128xf32>
    %39 = arith.mulf %37, %38 : vector<64x128xf32>
    %40 = vector.shape_cast %36 : vector<8x8x128xf32> to vector<64x128xf32>
    %cst_14 = arith.constant 6.250000e-02 : f32
    %41 = vector.broadcast %cst_14 : f32 to vector<64x128xf32>
    %42 = arith.mulf %40, %41 : vector<64x128xf32>
    %cst_15 = arith.constant dense<0.000000e+00> : vector<64x128xf32>
    %43 = tpu.matmul %39, %2, %cst_15 {dimension_numbers = #tpu.dot_dimension_numbers<[1], [0], [0], [1], [0, 0, 1, 1], [], []>} : vector<64x128xf32>, vector<128x128xf32>, vector<64x128xf32> -> vector<64x128xf32>
    %cst_16 = arith.constant dense<0.000000e+00> : vector<64x128xf32>
    %44 = tpu.matmul %42, %3, %cst_16 {dimension_numbers = #tpu.dot_dimension_numbers<[1], [0], [0], [1], [0, 0, 1, 1], [], []>} : vector<64x128xf32>, vector<128x128xf32>, vector<64x128xf32> -> vector<64x128xf32>
    %45 = arith.addf %39, %42 : vector<64x128xf32>
    %cst_17 = arith.constant dense<0.000000e+00> : vector<64x128xf32>
    %46 = tpu.matmul %45, %5, %cst_17 {dimension_numbers = #tpu.dot_dimension_numbers<[1], [0], [0], [1], [0, 0, 1, 1], [], []>} : vector<64x128xf32>, vector<128x128xf32>, vector<64x128xf32> -> vector<64x128xf32>
    %47 = arith.addf %43, %44 : vector<64x128xf32>
    %48 = arith.subf %46, %43 : vector<64x128xf32>
    %49 = arith.addf %48, %44 : vector<64x128xf32>
    %50 = arith.mulf %47, %47 : vector<64x128xf32>
    %51 = arith.mulf %49, %49 : vector<64x128xf32>
    %52 = arith.addf %50, %51 : vector<64x128xf32>
    %53 = math.sqrt %52 : vector<64x128xf32>
    %cst_18 = arith.constant 0.000000e+00 : f32
    %54 = vector.broadcast %cst_18 : f32 to vector<64x128xf32>
    %55 = arith.cmpf ogt, %53, %54 : vector<64x128xf32>
    %cst_19 = arith.constant 1.000000e+00 : f32
    %56 = vector.broadcast %cst_19 : f32 to vector<64x128xf32>
    %57 = arith.select %55, %53, %56 : vector<64x128xi1>, vector<64x128xf32>
    %cst_20 = arith.constant 1.000000e+00 : f32
    %58 = vector.broadcast %cst_20 : f32 to vector<64x128xf32>
    %59 = arith.divf %58, %57 : vector<64x128xf32>
    %60 = arith.mulf %47, %59 : vector<64x128xf32>
    %cst_21 = arith.constant 1.000000e+00 : f32
    %61 = vector.broadcast %cst_21 : f32 to vector<64x128xf32>
    %62 = arith.select %55, %60, %61 : vector<64x128xi1>, vector<64x128xf32>
    %63 = arith.mulf %49, %59 : vector<64x128xf32>
    %cst_22 = arith.constant 0.000000e+00 : f32
    %64 = vector.broadcast %cst_22 : f32 to vector<64x128xf32>
    %65 = arith.select %55, %63, %64 : vector<64x128xi1>, vector<64x128xf32>
    %cst_23 = arith.constant dense<0.000000e+00> : vector<64xf32>
    %66 = vector.multi_reduction <add>, %53, %cst_23 [1] : vector<64x128xf32> to vector<64xf32>
    %67 = vector.shape_cast %66 : vector<64xf32> to vector<64x1xf32>
    %cst_24 = arith.constant 6.250000e-02 : f32
    %68 = vector.broadcast %cst_24 : f32 to vector<64x1xf32>
    %69 = arith.mulf %67, %68 : vector<64x1xf32>
    %c0_25 = arith.constant 0 : index
    %c0_26 = arith.constant 0 : index
    %70 = vector.load %arg7[%c0_25, %c0_26] : memref<64x1xf32, #tpu.memory_space<vmem>>, vector<64x1xf32>
    tpu.vector_store %arg7[%c0_25, %c0_26], %69 {strides = array<i32>} : memref<64x1xf32, #tpu.memory_space<vmem>>, vector<64x1xf32>,
    %cst_27 = arith.constant 0.000000e+00 : f32
    %71 = vector.broadcast %cst_27 : f32 to vector<8x128xf32>
    %c0_28 = arith.constant 0 : index
    %c0_29 = arith.constant 0 : index
    %72 = vector.load %arg8[%c0_28, %c0_29] : memref<8x128xf32, #tpu.memory_space<vmem>>, vector<8x128xf32>
    tpu.vector_store %arg8[%c0_28, %c0_29], %71 {strides = array<i32>} : memref<8x128xf32, #tpu.memory_space<vmem>>, vector<8x128xf32>,
    %cst_30 = arith.constant 0.000000e+00 : f32
    %73 = vector.broadcast %cst_30 : f32 to vector<8x128xf32>
    %c0_31 = arith.constant 0 : index
    %c0_32 = arith.constant 0 : index
    %74 = vector.load %arg9[%c0_31, %c0_32] : memref<8x128xf32, #tpu.memory_space<vmem>>, vector<8x128xf32>
    tpu.vector_store %arg9[%c0_31, %c0_32], %73 {strides = array<i32>} : memref<8x128xf32, #tpu.memory_space<vmem>>, vector<8x128xf32>,
    %75 = vector.extract_strided_slice %53 {offsets = [0, 0], sizes = [8, 128], strides = [1, 1]} : vector<64x128xf32> to vector<8x128xf32>
    %76 = vector.extract_strided_slice %53 {offsets = [0, 0], sizes = [8, 128], strides = [1, 1]} : vector<64x128xf32> to vector<8x128xf32>
    %cst_33 = arith.constant 1.000000e+00 : f32
    %77 = vector.broadcast %cst_33 : f32 to vector<8x128xf32>
    %cst_34 = arith.constant 0.000000e+00 : f32
    %78 = vector.broadcast %cst_34 : f32 to vector<8x128xf32>
    %cst_35 = arith.constant 1.000000e+00 : f32
    %79 = vector.broadcast %cst_35 : f32 to vector<8x128xf32>
    %cst_36 = arith.constant 0.000000e+00 : f32
    %80 = vector.broadcast %cst_36 : f32 to vector<8x128xf32>
    %81 = arith.mulf %75, %76 : vector<8x128xf32>
    %82 = arith.mulf %77, %79 : vector<8x128xf32>
    %83 = arith.mulf %78, %80 : vector<8x128xf32>
    %84 = arith.subf %82, %83 : vector<8x128xf32>
    %85 = arith.mulf %81, %84 : vector<8x128xf32>
    %86 = arith.mulf %77, %80 : vector<8x128xf32>
    %87 = arith.mulf %78, %79 : vector<8x128xf32>
    %88 = arith.addf %86, %87 : vector<8x128xf32>
    %89 = arith.mulf %81, %88 : vector<8x128xf32>
    %cst_37 = arith.constant dense<0.000000e+00> : vector<8xf32>
    %90 = vector.multi_reduction <add>, %85, %cst_37 [1] : vector<8x128xf32> to vector<8xf32>
    %91 = vector.shape_cast %90 : vector<8xf32> to vector<8x1xf32>
    %cst_38 = arith.constant 6.250000e-02 : f32
    %92 = vector.broadcast %cst_38 : f32 to vector<8x1xf32>
    %93 = arith.mulf %91, %92 : vector<8x1xf32>
    %c0_39 = arith.constant 0 : index
    %c0_40 = arith.constant 0 : index
    %94 = vector.load %arg8[%c0_39, %c0_40] : memref<8x128xf32, #tpu.memory_space<vmem>>, vector<8x1xf32>
    tpu.vector_store %arg8[%c0_39, %c0_40], %93 {strides = array<i32>} : memref<8x128xf32, #tpu.memory_space<vmem>>, vector<8x1xf32>,
    %cst_41 = arith.constant dense<0.000000e+00> : vector<8xf32>
    %95 = vector.multi_reduction <add>, %89, %cst_41 [1] : vector<8x128xf32> to vector<8xf32>
    %96 = vector.shape_cast %95 : vector<8xf32> to vector<8x1xf32>
    %cst_42 = arith.constant 6.250000e-02 : f32
    %97 = vector.broadcast %cst_42 : f32 to vector<8x1xf32>
    %98 = arith.mulf %96, %97 : vector<8x1xf32>
    %c0_43 = arith.constant 0 : index
    %c0_44 = arith.constant 0 : index
    %99 = vector.load %arg9[%c0_43, %c0_44] : memref<8x128xf32, #tpu.memory_space<vmem>>, vector<8x1xf32>
    tpu.vector_store %arg9[%c0_43, %c0_44], %98 {strides = array<i32>} : memref<8x128xf32, #tpu.memory_space<vmem>>, vector<8x1xf32>,
    %100 = vector.extract_strided_slice %53 {offsets = [8, 0], sizes = [8, 128], strides = [1, 1]} : vector<64x128xf32> to vector<8x128xf32>
    %101 = vector.extract_strided_slice %53 {offsets = [8, 0], sizes = [8, 128], strides = [1, 1]} : vector<64x128xf32> to vector<8x128xf32>
    %cst_45 = arith.constant 1.000000e+00 : f32
    %102 = vector.broadcast %cst_45 : f32 to vector<8x128xf32>
    %cst_46 = arith.constant 0.000000e+00 : f32
    %103 = vector.broadcast %cst_46 : f32 to vector<8x128xf32>
    %cst_47 = arith.constant 1.000000e+00 : f32
    %104 = vector.broadcast %cst_47 : f32 to vector<8x128xf32>
    %cst_48 = arith.constant 0.000000e+00 : f32
    %105 = vector.broadcast %cst_48 : f32 to vector<8x128xf32>
    %106 = arith.mulf %100, %101 : vector<8x128xf32>
    %107 = arith.mulf %102, %104 : vector<8x128xf32>
    %108 = arith.mulf %103, %105 : vector<8x128xf32>
    %109 = arith.subf %107, %108 : vector<8x128xf32>
    %110 = arith.mulf %106, %109 : vector<8x128xf32>
    %111 = arith.mulf %102, %105 : vector<8x128xf32>
    %112 = arith.mulf %103, %104 : vector<8x128xf32>
    %113 = arith.addf %111, %112 : vector<8x128xf32>
    %114 = arith.mulf %106, %113 : vector<8x128xf32>
    %cst_49 = arith.constant dense<0.000000e+00> : vector<8xf32>
    %115 = vector.multi_reduction <add>, %110, %cst_49 [1] : vector<8x128xf32> to vector<8xf32>
    %116 = vector.shape_cast %115 : vector<8xf32> to vector<8x1xf32>
    %cst_50 = arith.constant 6.250000e-02 : f32
    %117 = vector.broadcast %cst_50 : f32 to vector<8x1xf32>
    %118 = arith.mulf %116, %117 : vector<8x1xf32>
    %c0_51 = arith.constant 0 : index
    %c1 = arith.constant 1 : index
    %119 = vector.load %arg8[%c0_51, %c1] : memref<8x128xf32, #tpu.memory_space<vmem>>, vector<8x1xf32>
    tpu.vector_store %arg8[%c0_51, %c1], %118 {strides = array<i32>} : memref<8x128xf32, #tpu.memory_space<vmem>>, vector<8x1xf32>,
    %cst_52 = arith.constant dense<0.000000e+00> : vector<8xf32>
    %120 = vector.multi_reduction <add>, %114, %cst_52 [1] : vector<8x128xf32> to vector<8xf32>
    %121 = vector.shape_cast %120 : vector<8xf32> to vector<8x1xf32>
    %cst_53 = arith.constant 6.250000e-02 : f32
    %122 = vector.broadcast %cst_53 : f32 to vector<8x1xf32>
    %123 = arith.mulf %121, %122 : vector<8x1xf32>
    %c0_54 = arith.constant 0 : index
    %c1_55 = arith.constant 1 : index
    %124 = vector.load %arg9[%c0_54, %c1_55] : memref<8x128xf32, #tpu.memory_space<vmem>>, vector<8x1xf32>
    tpu.vector_store %arg9[%c0_54, %c1_55], %123 {strides = array<i32>} : memref<8x128xf32, #tpu.memory_space<vmem>>, vector<8x1xf32>,
    %125 = vector.extract_strided_slice %53 {offsets = [16, 0], sizes = [8, 128], strides = [1, 1]} : vector<64x128xf32> to vector<8x128xf32>
    %126 = vector.extract_strided_slice %53 {offsets = [16, 0], sizes = [8, 128], strides = [1, 1]} : vector<64x128xf32> to vector<8x128xf32>
    %cst_56 = arith.constant 1.000000e+00 : f32
    %127 = vector.broadcast %cst_56 : f32 to vector<8x128xf32>
    %cst_57 = arith.constant 0.000000e+00 : f32
    %128 = vector.broadcast %cst_57 : f32 to vector<8x128xf32>
    %cst_58 = arith.constant 1.000000e+00 : f32
    %129 = vector.broadcast %cst_58 : f32 to vector<8x128xf32>
    %cst_59 = arith.constant 0.000000e+00 : f32
    %130 = vector.broadcast %cst_59 : f32 to vector<8x128xf32>
    %131 = arith.mulf %125, %126 : vector<8x128xf32>
    %132 = arith.mulf %127, %129 : vector<8x128xf32>
    %133 = arith.mulf %128, %130 : vector<8x128xf32>
    %134 = arith.subf %132, %133 : vector<8x128xf32>
    %135 = arith.mulf %131, %134 : vector<8x128xf32>
    %136 = arith.mulf %127, %130 : vector<8x128xf32>
    %137 = arith.mulf %128, %129 : vector<8x128xf32>
    %138 = arith.addf %136, %137 : vector<8x128xf32>
    %139 = arith.mulf %131, %138 : vector<8x128xf32>
    %cst_60 = arith.constant dense<0.000000e+00> : vector<8xf32>
    %140 = vector.multi_reduction <add>, %135, %cst_60 [1] : vector<8x128xf32> to vector<8xf32>
    %141 = vector.shape_cast %140 : vector<8xf32> to vector<8x1xf32>
    %cst_61 = arith.constant 6.250000e-02 : f32
    %142 = vector.broadcast %cst_61 : f32 to vector<8x1xf32>
    %143 = arith.mulf %141, %142 : vector<8x1xf32>
    %c0_62 = arith.constant 0 : index
    %c2 = arith.constant 2 : index
    %144 = vector.load %arg8[%c0_62, %c2] : memref<8x128xf32, #tpu.memory_space<vmem>>, vector<8x1xf32>
    tpu.vector_store %arg8[%c0_62, %c2], %143 {strides = array<i32>} : memref<8x128xf32, #tpu.memory_space<vmem>>, vector<8x1xf32>,
    %cst_63 = arith.constant dense<0.000000e+00> : vector<8xf32>
    %145 = vector.multi_reduction <add>, %139, %cst_63 [1] : vector<8x128xf32> to vector<8xf32>
    %146 = vector.shape_cast %145 : vector<8xf32> to vector<8x1xf32>
    %cst_64 = arith.constant 6.250000e-02 : f32
    %147 = vector.broadcast %cst_64 : f32 to vector<8x1xf32>
    %148 = arith.mulf %146, %147 : vector<8x1xf32>
    %c0_65 = arith.constant 0 : index
    %c2_66 = arith.constant 2 : index
    %149 = vector.load %arg9[%c0_65, %c2_66] : memref<8x128xf32, #tpu.memory_space<vmem>>, vector<8x1xf32>
    tpu.vector_store %arg9[%c0_65, %c2_66], %148 {strides = array<i32>} : memref<8x128xf32, #tpu.memory_space<vmem>>, vector<8x1xf32>,
    %150 = vector.extract_strided_slice %53 {offsets = [24, 0], sizes = [8, 128], strides = [1, 1]} : vector<64x128xf32> to vector<8x128xf32>
    %151 = vector.extract_strided_slice %53 {offsets = [24, 0], sizes = [8, 128], strides = [1, 1]} : vector<64x128xf32> to vector<8x128xf32>
    %cst_67 = arith.constant 1.000000e+00 : f32
    %152 = vector.broadcast %cst_67 : f32 to vector<8x128xf32>
    %cst_68 = arith.constant 0.000000e+00 : f32
    %153 = vector.broadcast %cst_68 : f32 to vector<8x128xf32>
    %cst_69 = arith.constant 1.000000e+00 : f32
    %154 = vector.broadcast %cst_69 : f32 to vector<8x128xf32>
    %cst_70 = arith.constant 0.000000e+00 : f32
    %155 = vector.broadcast %cst_70 : f32 to vector<8x128xf32>
    %156 = arith.mulf %150, %151 : vector<8x128xf32>
    %157 = arith.mulf %152, %154 : vector<8x128xf32>
    %158 = arith.mulf %153, %155 : vector<8x128xf32>
    %159 = arith.subf %157, %158 : vector<8x128xf32>
    %160 = arith.mulf %156, %159 : vector<8x128xf32>
    %161 = arith.mulf %152, %155 : vector<8x128xf32>
    %162 = arith.mulf %153, %154 : vector<8x128xf32>
    %163 = arith.addf %161, %162 : vector<8x128xf32>
    %164 = arith.mulf %156, %163 : vector<8x128xf32>
    %cst_71 = arith.constant dense<0.000000e+00> : vector<8xf32>
    %165 = vector.multi_reduction <add>, %160, %cst_71 [1] : vector<8x128xf32> to vector<8xf32>
    %166 = vector.shape_cast %165 : vector<8xf32> to vector<8x1xf32>
    %cst_72 = arith.constant 6.250000e-02 : f32
    %167 = vector.broadcast %cst_72 : f32 to vector<8x1xf32>
    %168 = arith.mulf %166, %167 : vector<8x1xf32>
    %c0_73 = arith.constant 0 : index
    %c3 = arith.constant 3 : index
    %169 = vector.load %arg8[%c0_73, %c3] : memref<8x128xf32, #tpu.memory_space<vmem>>, vector<8x1xf32>
    tpu.vector_store %arg8[%c0_73, %c3], %168 {strides = array<i32>} : memref<8x128xf32, #tpu.memory_space<vmem>>, vector<8x1xf32>,
    %cst_74 = arith.constant dense<0.000000e+00> : vector<8xf32>
    %170 = vector.multi_reduction <add>, %164, %cst_74 [1] : vector<8x128xf32> to vector<8xf32>
    %171 = vector.shape_cast %170 : vector<8xf32> to vector<8x1xf32>
    %cst_75 = arith.constant 6.250000e-02 : f32
    %172 = vector.broadcast %cst_75 : f32 to vector<8x1xf32>
    %173 = arith.mulf %171, %172 : vector<8x1xf32>
    %c0_76 = arith.constant 0 : index
    %c3_77 = arith.constant 3 : index
    %174 = vector.load %arg9[%c0_76, %c3_77] : memref<8x128xf32, #tpu.memory_space<vmem>>, vector<8x1xf32>
    tpu.vector_store %arg9[%c0_76, %c3_77], %173 {strides = array<i32>} : memref<8x128xf32, #tpu.memory_space<vmem>>, vector<8x1xf32>,
    %175 = vector.extract_strided_slice %53 {offsets = [32, 0], sizes = [8, 128], strides = [1, 1]} : vector<64x128xf32> to vector<8x128xf32>
    %176 = vector.extract_strided_slice %53 {offsets = [32, 0], sizes = [8, 128], strides = [1, 1]} : vector<64x128xf32> to vector<8x128xf32>
    %cst_78 = arith.constant 1.000000e+00 : f32
    %177 = vector.broadcast %cst_78 : f32 to vector<8x128xf32>
    %cst_79 = arith.constant 0.000000e+00 : f32
    %178 = vector.broadcast %cst_79 : f32 to vector<8x128xf32>
    %cst_80 = arith.constant 1.000000e+00 : f32
    %179 = vector.broadcast %cst_80 : f32 to vector<8x128xf32>
    %cst_81 = arith.constant 0.000000e+00 : f32
    %180 = vector.broadcast %cst_81 : f32 to vector<8x128xf32>
    %181 = arith.mulf %175, %176 : vector<8x128xf32>
    %182 = arith.mulf %177, %179 : vector<8x128xf32>
    %183 = arith.mulf %178, %180 : vector<8x128xf32>
    %184 = arith.subf %182, %183 : vector<8x128xf32>
    %185 = arith.mulf %181, %184 : vector<8x128xf32>
    %186 = arith.mulf %177, %180 : vector<8x128xf32>
    %187 = arith.mulf %178, %179 : vector<8x128xf32>
    %188 = arith.addf %186, %187 : vector<8x128xf32>
    %189 = arith.mulf %181, %188 : vector<8x128xf32>
    %cst_82 = arith.constant dense<0.000000e+00> : vector<8xf32>
    %190 = vector.multi_reduction <add>, %185, %cst_82 [1] : vector<8x128xf32> to vector<8xf32>
    %191 = vector.shape_cast %190 : vector<8xf32> to vector<8x1xf32>
    %cst_83 = arith.constant 6.250000e-02 : f32
    %192 = vector.broadcast %cst_83 : f32 to vector<8x1xf32>
    %193 = arith.mulf %191, %192 : vector<8x1xf32>
    %c0_84 = arith.constant 0 : index
    %c4 = arith.constant 4 : index
    %194 = vector.load %arg8[%c0_84, %c4] : memref<8x128xf32, #tpu.memory_space<vmem>>, vector<8x1xf32>
    tpu.vector_store %arg8[%c0_84, %c4], %193 {strides = array<i32>} : memref<8x128xf32, #tpu.memory_space<vmem>>, vector<8x1xf32>,
    %cst_85 = arith.constant dense<0.000000e+00> : vector<8xf32>
    %195 = vector.multi_reduction <add>, %189, %cst_85 [1] : vector<8x128xf32> to vector<8xf32>
    %196 = vector.shape_cast %195 : vector<8xf32> to vector<8x1xf32>
    %cst_86 = arith.constant 6.250000e-02 : f32
    %197 = vector.broadcast %cst_86 : f32 to vector<8x1xf32>
    %198 = arith.mulf %196, %197 : vector<8x1xf32>
    %c0_87 = arith.constant 0 : index
    %c4_88 = arith.constant 4 : index
    %199 = vector.load %arg9[%c0_87, %c4_88] : memref<8x128xf32, #tpu.memory_space<vmem>>, vector<8x1xf32>
    tpu.vector_store %arg9[%c0_87, %c4_88], %198 {strides = array<i32>} : memref<8x128xf32, #tpu.memory_space<vmem>>, vector<8x1xf32>,
    %200 = vector.extract_strided_slice %53 {offsets = [0, 0], sizes = [8, 128], strides = [1, 1]} : vector<64x128xf32> to vector<8x128xf32>
    %201 = vector.extract_strided_slice %53 {offsets = [0, 0], sizes = [8, 128], strides = [1, 1]} : vector<64x128xf32> to vector<8x128xf32>
    %202 = vector.extract_strided_slice %62 {offsets = [0, 0], sizes = [8, 128], strides = [1, 1]} : vector<64x128xf32> to vector<8x128xf32>
    %203 = vector.extract_strided_slice %65 {offsets = [0, 0], sizes = [8, 128], strides = [1, 1]} : vector<64x128xf32> to vector<8x128xf32>
    %cst_89 = arith.constant 1.000000e+00 : f32
    %204 = vector.broadcast %cst_89 : f32 to vector<8x128xf32>
    %cst_90 = arith.constant 0.000000e+00 : f32
    %205 = vector.broadcast %cst_90 : f32 to vector<8x128xf32>
    %cst_91 = arith.constant 0.000000e+00 : f32
    %206 = vector.broadcast %cst_91 : f32 to vector<8x128xf32>
    %207 = arith.subf %206, %203 : vector<8x128xf32>
    %cst_92 = arith.constant 1.000000e+00 : f32
    %208 = vector.broadcast %cst_92 : f32 to vector<8x128xf32>
    %cst_93 = arith.constant 0.000000e+00 : f32
    %209 = vector.broadcast %cst_93 : f32 to vector<8x128xf32>
    %210 = arith.mulf %208, %202 : vector<8x128xf32>
    %211 = arith.mulf %209, %207 : vector<8x128xf32>
    %212 = arith.subf %210, %211 : vector<8x128xf32>
    %213 = arith.mulf %208, %207 : vector<8x128xf32>
    %214 = arith.mulf %209, %202 : vector<8x128xf32>
    %215 = arith.addf %213, %214 : vector<8x128xf32>
    %216 = arith.mulf %200, %201 : vector<8x128xf32>
    %217 = arith.mulf %204, %212 : vector<8x128xf32>
    %218 = arith.mulf %205, %215 : vector<8x128xf32>
    %219 = arith.subf %217, %218 : vector<8x128xf32>
    %220 = arith.mulf %216, %219 : vector<8x128xf32>
    %221 = arith.mulf %204, %215 : vector<8x128xf32>
    %222 = arith.mulf %205, %212 : vector<8x128xf32>
    %223 = arith.addf %221, %222 : vector<8x128xf32>
    %224 = arith.mulf %216, %223 : vector<8x128xf32>
    %cst_94 = arith.constant dense<0.000000e+00> : vector<8xf32>
    %225 = vector.multi_reduction <add>, %220, %cst_94 [1] : vector<8x128xf32> to vector<8xf32>
    %226 = vector.shape_cast %225 : vector<8xf32> to vector<8x1xf32>
    %cst_95 = arith.constant 6.250000e-02 : f32
    %227 = vector.broadcast %cst_95 : f32 to vector<8x1xf32>
    %228 = arith.mulf %226, %227 : vector<8x1xf32>
    %c0_96 = arith.constant 0 : index
    %c5 = arith.constant 5 : index
    %229 = vector.load %arg8[%c0_96, %c5] : memref<8x128xf32, #tpu.memory_space<vmem>>, vector<8x1xf32>
    tpu.vector_store %arg8[%c0_96, %c5], %228 {strides = array<i32>} : memref<8x128xf32, #tpu.memory_space<vmem>>, vector<8x1xf32>,
    %cst_97 = arith.constant dense<0.000000e+00> : vector<8xf32>
    %230 = vector.multi_reduction <add>, %224, %cst_97 [1] : vector<8x128xf32> to vector<8xf32>
    %231 = vector.shape_cast %230 : vector<8xf32> to vector<8x1xf32>
    %cst_98 = arith.constant 6.250000e-02 : f32
    %232 = vector.broadcast %cst_98 : f32 to vector<8x1xf32>
    %233 = arith.mulf %231, %232 : vector<8x1xf32>
    %c0_99 = arith.constant 0 : index
    %c5_100 = arith.constant 5 : index
    %234 = vector.load %arg9[%c0_99, %c5_100] : memref<8x128xf32, #tpu.memory_space<vmem>>, vector<8x1xf32>
    tpu.vector_store %arg9[%c0_99, %c5_100], %233 {strides = array<i32>} : memref<8x128xf32, #tpu.memory_space<vmem>>, vector<8x1xf32>,
    %235 = vector.extract_strided_slice %53 {offsets = [8, 0], sizes = [8, 128], strides = [1, 1]} : vector<64x128xf32> to vector<8x128xf32>
    %236 = vector.extract_strided_slice %53 {offsets = [8, 0], sizes = [8, 128], strides = [1, 1]} : vector<64x128xf32> to vector<8x128xf32>
    %237 = vector.extract_strided_slice %62 {offsets = [8, 0], sizes = [8, 128], strides = [1, 1]} : vector<64x128xf32> to vector<8x128xf32>
    %238 = vector.extract_strided_slice %65 {offsets = [8, 0], sizes = [8, 128], strides = [1, 1]} : vector<64x128xf32> to vector<8x128xf32>
    %cst_101 = arith.constant 1.000000e+00 : f32
    %239 = vector.broadcast %cst_101 : f32 to vector<8x128xf32>
    %cst_102 = arith.constant 0.000000e+00 : f32
    %240 = vector.broadcast %cst_102 : f32 to vector<8x128xf32>
    %cst_103 = arith.constant 0.000000e+00 : f32
    %241 = vector.broadcast %cst_103 : f32 to vector<8x128xf32>
    %242 = arith.subf %241, %238 : vector<8x128xf32>
    %cst_104 = arith.constant 1.000000e+00 : f32
    %243 = vector.broadcast %cst_104 : f32 to vector<8x128xf32>
    %cst_105 = arith.constant 0.000000e+00 : f32
    %244 = vector.broadcast %cst_105 : f32 to vector<8x128xf32>
    %245 = arith.mulf %243, %237 : vector<8x128xf32>
    %246 = arith.mulf %244, %242 : vector<8x128xf32>
    %247 = arith.subf %245, %246 : vector<8x128xf32>
    %248 = arith.mulf %243, %242 : vector<8x128xf32>
    %249 = arith.mulf %244, %237 : vector<8x128xf32>
    %250 = arith.addf %248, %249 : vector<8x128xf32>
    %251 = arith.mulf %235, %236 : vector<8x128xf32>
    %252 = arith.mulf %239, %247 : vector<8x128xf32>
    %253 = arith.mulf %240, %250 : vector<8x128xf32>
    %254 = arith.subf %252, %253 : vector<8x128xf32>
    %255 = arith.mulf %251, %254 : vector<8x128xf32>
    %256 = arith.mulf %239, %250 : vector<8x128xf32>
    %257 = arith.mulf %240, %247 : vector<8x128xf32>
    %258 = arith.addf %256, %257 : vector<8x128xf32>
    %259 = arith.mulf %251, %258 : vector<8x128xf32>
    %cst_106 = arith.constant dense<0.000000e+00> : vector<8xf32>
    %260 = vector.multi_reduction <add>, %255, %cst_106 [1] : vector<8x128xf32> to vector<8xf32>
    %261 = vector.shape_cast %260 : vector<8xf32> to vector<8x1xf32>
    %cst_107 = arith.constant 6.250000e-02 : f32
    %262 = vector.broadcast %cst_107 : f32 to vector<8x1xf32>
    %263 = arith.mulf %261, %262 : vector<8x1xf32>
    %c0_108 = arith.constant 0 : index
    %c6 = arith.constant 6 : index
    %264 = vector.load %arg8[%c0_108, %c6] : memref<8x128xf32, #tpu.memory_space<vmem>>, vector<8x1xf32>
    tpu.vector_store %arg8[%c0_108, %c6], %263 {strides = array<i32>} : memref<8x128xf32, #tpu.memory_space<vmem>>, vector<8x1xf32>,
    %cst_109 = arith.constant dense<0.000000e+00> : vector<8xf32>
    %265 = vector.multi_reduction <add>, %259, %cst_109 [1] : vector<8x128xf32> to vector<8xf32>
    %266 = vector.shape_cast %265 : vector<8xf32> to vector<8x1xf32>
    %cst_110 = arith.constant 6.250000e-02 : f32
    %267 = vector.broadcast %cst_110 : f32 to vector<8x1xf32>
    %268 = arith.mulf %266, %267 : vector<8x1xf32>
    %c0_111 = arith.constant 0 : index
    %c6_112 = arith.constant 6 : index
    %269 = vector.load %arg9[%c0_111, %c6_112] : memref<8x128xf32, #tpu.memory_space<vmem>>, vector<8x1xf32>
    tpu.vector_store %arg9[%c0_111, %c6_112], %268 {strides = array<i32>} : memref<8x128xf32, #tpu.memory_space<vmem>>, vector<8x1xf32>,
    %270 = vector.extract_strided_slice %53 {offsets = [16, 0], sizes = [8, 128], strides = [1, 1]} : vector<64x128xf32> to vector<8x128xf32>
    %271 = vector.extract_strided_slice %53 {offsets = [16, 0], sizes = [8, 128], strides = [1, 1]} : vector<64x128xf32> to vector<8x128xf32>
    %272 = vector.extract_strided_slice %62 {offsets = [16, 0], sizes = [8, 128], strides = [1, 1]} : vector<64x128xf32> to vector<8x128xf32>
    %273 = vector.extract_strided_slice %65 {offsets = [16, 0], sizes = [8, 128], strides = [1, 1]} : vector<64x128xf32> to vector<8x128xf32>
    %cst_113 = arith.constant 1.000000e+00 : f32
    %274 = vector.broadcast %cst_113 : f32 to vector<8x128xf32>
    %cst_114 = arith.constant 0.000000e+00 : f32
    %275 = vector.broadcast %cst_114 : f32 to vector<8x128xf32>
    %cst_115 = arith.constant 0.000000e+00 : f32
    %276 = vector.broadcast %cst_115 : f32 to vector<8x128xf32>
    %277 = arith.subf %276, %273 : vector<8x128xf32>
    %cst_116 = arith.constant 1.000000e+00 : f32
    %278 = vector.broadcast %cst_116 : f32 to vector<8x128xf32>
    %cst_117 = arith.constant 0.000000e+00 : f32
    %279 = vector.broadcast %cst_117 : f32 to vector<8x128xf32>
    %280 = arith.mulf %278, %272 : vector<8x128xf32>
    %281 = arith.mulf %279, %277 : vector<8x128xf32>
    %282 = arith.subf %280, %281 : vector<8x128xf32>
    %283 = arith.mulf %278, %277 : vector<8x128xf32>
    %284 = arith.mulf %279, %272 : vector<8x128xf32>
    %285 = arith.addf %283, %284 : vector<8x128xf32>
    %286 = arith.mulf %270, %271 : vector<8x128xf32>
    %287 = arith.mulf %274, %282 : vector<8x128xf32>
    %288 = arith.mulf %275, %285 : vector<8x128xf32>
    %289 = arith.subf %287, %288 : vector<8x128xf32>
    %290 = arith.mulf %286, %289 : vector<8x128xf32>
    %291 = arith.mulf %274, %285 : vector<8x128xf32>
    %292 = arith.mulf %275, %282 : vector<8x128xf32>
    %293 = arith.addf %291, %292 : vector<8x128xf32>
    %294 = arith.mulf %286, %293 : vector<8x128xf32>
    %cst_118 = arith.constant dense<0.000000e+00> : vector<8xf32>
    %295 = vector.multi_reduction <add>, %290, %cst_118 [1] : vector<8x128xf32> to vector<8xf32>
    %296 = vector.shape_cast %295 : vector<8xf32> to vector<8x1xf32>
    %cst_119 = arith.constant 6.250000e-02 : f32
    %297 = vector.broadcast %cst_119 : f32 to vector<8x1xf32>
    %298 = arith.mulf %296, %297 : vector<8x1xf32>
    %c0_120 = arith.constant 0 : index
    %c7 = arith.constant 7 : index
    %299 = vector.load %arg8[%c0_120, %c7] : memref<8x128xf32, #tpu.memory_space<vmem>>, vector<8x1xf32>
    tpu.vector_store %arg8[%c0_120, %c7], %298 {strides = array<i32>} : memref<8x128xf32, #tpu.memory_space<vmem>>, vector<8x1xf32>,
    %cst_121 = arith.constant dense<0.000000e+00> : vector<8xf32>
    %300 = vector.multi_reduction <add>, %294, %cst_121 [1] : vector<8x128xf32> to vector<8xf32>
    %301 = vector.shape_cast %300 : vector<8xf32> to vector<8x1xf32>
    %cst_122 = arith.constant 6.250000e-02 : f32
    %302 = vector.broadcast %cst_122 : f32 to vector<8x1xf32>
    %303 = arith.mulf %301, %302 : vector<8x1xf32>
    %c0_123 = arith.constant 0 : index
    %c7_124 = arith.constant 7 : index
    %304 = vector.load %arg9[%c0_123, %c7_124] : memref<8x128xf32, #tpu.memory_space<vmem>>, vector<8x1xf32>
    tpu.vector_store %arg9[%c0_123, %c7_124], %303 {strides = array<i32>} : memref<8x128xf32, #tpu.memory_space<vmem>>, vector<8x1xf32>,
    %305 = vector.extract_strided_slice %53 {offsets = [24, 0], sizes = [8, 128], strides = [1, 1]} : vector<64x128xf32> to vector<8x128xf32>
    %306 = vector.extract_strided_slice %53 {offsets = [24, 0], sizes = [8, 128], strides = [1, 1]} : vector<64x128xf32> to vector<8x128xf32>
    %307 = vector.extract_strided_slice %62 {offsets = [24, 0], sizes = [8, 128], strides = [1, 1]} : vector<64x128xf32> to vector<8x128xf32>
    %308 = vector.extract_strided_slice %65 {offsets = [24, 0], sizes = [8, 128], strides = [1, 1]} : vector<64x128xf32> to vector<8x128xf32>
    %cst_125 = arith.constant 1.000000e+00 : f32
    %309 = vector.broadcast %cst_125 : f32 to vector<8x128xf32>
    %cst_126 = arith.constant 0.000000e+00 : f32
    %310 = vector.broadcast %cst_126 : f32 to vector<8x128xf32>
    %cst_127 = arith.constant 0.000000e+00 : f32
    %311 = vector.broadcast %cst_127 : f32 to vector<8x128xf32>
    %312 = arith.subf %311, %308 : vector<8x128xf32>
    %cst_128 = arith.constant 1.000000e+00 : f32
    %313 = vector.broadcast %cst_128 : f32 to vector<8x128xf32>
    %cst_129 = arith.constant 0.000000e+00 : f32
    %314 = vector.broadcast %cst_129 : f32 to vector<8x128xf32>
    %315 = arith.mulf %313, %307 : vector<8x128xf32>
    %316 = arith.mulf %314, %312 : vector<8x128xf32>
    %317 = arith.subf %315, %316 : vector<8x128xf32>
    %318 = arith.mulf %313, %312 : vector<8x128xf32>
    %319 = arith.mulf %314, %307 : vector<8x128xf32>
    %320 = arith.addf %318, %319 : vector<8x128xf32>
    %321 = arith.mulf %305, %306 : vector<8x128xf32>
    %322 = arith.mulf %309, %317 : vector<8x128xf32>
    %323 = arith.mulf %310, %320 : vector<8x128xf32>
    %324 = arith.subf %322, %323 : vector<8x128xf32>
    %325 = arith.mulf %321, %324 : vector<8x128xf32>
    %326 = arith.mulf %309, %320 : vector<8x128xf32>
    %327 = arith.mulf %310, %317 : vector<8x128xf32>
    %328 = arith.addf %326, %327 : vector<8x128xf32>
    %329 = arith.mulf %321, %328 : vector<8x128xf32>
    %cst_130 = arith.constant dense<0.000000e+00> : vector<8xf32>
    %330 = vector.multi_reduction <add>, %325, %cst_130 [1] : vector<8x128xf32> to vector<8xf32>
    %331 = vector.shape_cast %330 : vector<8xf32> to vector<8x1xf32>
    %cst_131 = arith.constant 6.250000e-02 : f32
    %332 = vector.broadcast %cst_131 : f32 to vector<8x1xf32>
    %333 = arith.mulf %331, %332 : vector<8x1xf32>
    %c0_132 = arith.constant 0 : index
    %c8 = arith.constant 8 : index
    %334 = vector.load %arg8[%c0_132, %c8] : memref<8x128xf32, #tpu.memory_space<vmem>>, vector<8x1xf32>
    tpu.vector_store %arg8[%c0_132, %c8], %333 {strides = array<i32>} : memref<8x128xf32, #tpu.memory_space<vmem>>, vector<8x1xf32>,
    %cst_133 = arith.constant dense<0.000000e+00> : vector<8xf32>
    %335 = vector.multi_reduction <add>, %329, %cst_133 [1] : vector<8x128xf32> to vector<8xf32>
    %336 = vector.shape_cast %335 : vector<8xf32> to vector<8x1xf32>
    %cst_134 = arith.constant 6.250000e-02 : f32
    %337 = vector.broadcast %cst_134 : f32 to vector<8x1xf32>
    %338 = arith.mulf %336, %337 : vector<8x1xf32>
    %c0_135 = arith.constant 0 : index
    %c8_136 = arith.constant 8 : index
    %339 = vector.load %arg9[%c0_135, %c8_136] : memref<8x128xf32, #tpu.memory_space<vmem>>, vector<8x1xf32>
    tpu.vector_store %arg9[%c0_135, %c8_136], %338 {strides = array<i32>} : memref<8x128xf32, #tpu.memory_space<vmem>>, vector<8x1xf32>,
    %340 = vector.extract_strided_slice %53 {offsets = [32, 0], sizes = [8, 128], strides = [1, 1]} : vector<64x128xf32> to vector<8x128xf32>
    %341 = vector.extract_strided_slice %53 {offsets = [32, 0], sizes = [8, 128], strides = [1, 1]} : vector<64x128xf32> to vector<8x128xf32>
    %342 = vector.extract_strided_slice %62 {offsets = [32, 0], sizes = [8, 128], strides = [1, 1]} : vector<64x128xf32> to vector<8x128xf32>
    %343 = vector.extract_strided_slice %65 {offsets = [32, 0], sizes = [8, 128], strides = [1, 1]} : vector<64x128xf32> to vector<8x128xf32>
    %cst_137 = arith.constant 1.000000e+00 : f32
    %344 = vector.broadcast %cst_137 : f32 to vector<8x128xf32>
    %cst_138 = arith.constant 0.000000e+00 : f32
    %345 = vector.broadcast %cst_138 : f32 to vector<8x128xf32>
    %cst_139 = arith.constant 0.000000e+00 : f32
    %346 = vector.broadcast %cst_139 : f32 to vector<8x128xf32>
    %347 = arith.subf %346, %343 : vector<8x128xf32>
    %cst_140 = arith.constant 1.000000e+00 : f32
    %348 = vector.broadcast %cst_140 : f32 to vector<8x128xf32>
    %cst_141 = arith.constant 0.000000e+00 : f32
    %349 = vector.broadcast %cst_141 : f32 to vector<8x128xf32>
    %350 = arith.mulf %348, %342 : vector<8x128xf32>
    %351 = arith.mulf %349, %347 : vector<8x128xf32>
    %352 = arith.subf %350, %351 : vector<8x128xf32>
    %353 = arith.mulf %348, %347 : vector<8x128xf32>
    %354 = arith.mulf %349, %342 : vector<8x128xf32>
    %355 = arith.addf %353, %354 : vector<8x128xf32>
    %356 = arith.mulf %340, %341 : vector<8x128xf32>
    %357 = arith.mulf %344, %352 : vector<8x128xf32>
    %358 = arith.mulf %345, %355 : vector<8x128xf32>
    %359 = arith.subf %357, %358 : vector<8x128xf32>
    %360 = arith.mulf %356, %359 : vector<8x128xf32>
    %361 = arith.mulf %344, %355 : vector<8x128xf32>
    %362 = arith.mulf %345, %352 : vector<8x128xf32>
    %363 = arith.addf %361, %362 : vector<8x128xf32>
    %364 = arith.mulf %356, %363 : vector<8x128xf32>
    %cst_142 = arith.constant dense<0.000000e+00> : vector<8xf32>
    %365 = vector.multi_reduction <add>, %360, %cst_142 [1] : vector<8x128xf32> to vector<8xf32>
    %366 = vector.shape_cast %365 : vector<8xf32> to vector<8x1xf32>
    %cst_143 = arith.constant 6.250000e-02 : f32
    %367 = vector.broadcast %cst_143 : f32 to vector<8x1xf32>
    %368 = arith.mulf %366, %367 : vector<8x1xf32>
    %c0_144 = arith.constant 0 : index
    %c9 = arith.constant 9 : index
    %369 = vector.load %arg8[%c0_144, %c9] : memref<8x128xf32, #tpu.memory_space<vmem>>, vector<8x1xf32>
    tpu.vector_store %arg8[%c0_144, %c9], %368 {strides = array<i32>} : memref<8x128xf32, #tpu.memory_space<vmem>>, vector<8x1xf32>,
    %cst_145 = arith.constant dense<0.000000e+00> : vector<8xf32>
    %370 = vector.multi_reduction <add>, %364, %cst_145 [1] : vector<8x128xf32> to vector<8xf32>
    %371 = vector.shape_cast %370 : vector<8xf32> to vector<8x1xf32>
    %cst_146 = arith.constant 6.250000e-02 : f32
    %372 = vector.broadcast %cst_146 : f32 to vector<8x1xf32>
    %373 = arith.mulf %371, %372 : vector<8x1xf32>
    %c0_147 = arith.constant 0 : index
    %c9_148 = arith.constant 9 : index
    %374 = vector.load %arg9[%c0_147, %c9_148] : memref<8x128xf32, #tpu.memory_space<vmem>>, vector<8x1xf32>
    tpu.vector_store %arg9[%c0_147, %c9_148], %373 {strides = array<i32>} : memref<8x128xf32, #tpu.memory_space<vmem>>, vector<8x1xf32>,
    %375 = vector.extract_strided_slice %53 {offsets = [0, 0], sizes = [8, 128], strides = [1, 1]} : vector<64x128xf32> to vector<8x128xf32>
    %376 = vector.extract_strided_slice %53 {offsets = [8, 0], sizes = [8, 128], strides = [1, 1]} : vector<64x128xf32> to vector<8x128xf32>
    %cst_149 = arith.constant 1.000000e+00 : f32
    %377 = vector.broadcast %cst_149 : f32 to vector<8x128xf32>
    %cst_150 = arith.constant 0.000000e+00 : f32
    %378 = vector.broadcast %cst_150 : f32 to vector<8x128xf32>
    %cst_151 = arith.constant 1.000000e+00 : f32
    %379 = vector.broadcast %cst_151 : f32 to vector<8x128xf32>
    %cst_152 = arith.constant 0.000000e+00 : f32
    %380 = vector.broadcast %cst_152 : f32 to vector<8x128xf32>
    %381 = arith.mulf %375, %376 : vector<8x128xf32>
    %382 = arith.mulf %377, %379 : vector<8x128xf32>
    %383 = arith.mulf %378, %380 : vector<8x128xf32>
    %384 = arith.subf %382, %383 : vector<8x128xf32>
    %385 = arith.mulf %381, %384 : vector<8x128xf32>
    %386 = arith.mulf %377, %380 : vector<8x128xf32>
    %387 = arith.mulf %378, %379 : vector<8x128xf32>
    %388 = arith.addf %386, %387 : vector<8x128xf32>
    %389 = arith.mulf %381, %388 : vector<8x128xf32>
    %cst_153 = arith.constant dense<0.000000e+00> : vector<8xf32>
    %390 = vector.multi_reduction <add>, %385, %cst_153 [1] : vector<8x128xf32> to vector<8xf32>
    %391 = vector.shape_cast %390 : vector<8xf32> to vector<8x1xf32>
    %cst_154 = arith.constant 6.250000e-02 : f32
    %392 = vector.broadcast %cst_154 : f32 to vector<8x1xf32>
    %393 = arith.mulf %391, %392 : vector<8x1xf32>
    %c0_155 = arith.constant 0 : index
    %c10 = arith.constant 10 : index
    %394 = vector.load %arg8[%c0_155, %c10] : memref<8x128xf32, #tpu.memory_space<vmem>>, vector<8x1xf32>
    tpu.vector_store %arg8[%c0_155, %c10], %393 {strides = array<i32>} : memref<8x128xf32, #tpu.memory_space<vmem>>, vector<8x1xf32>,
    %cst_156 = arith.constant dense<0.000000e+00> : vector<8xf32>
    %395 = vector.multi_reduction <add>, %389, %cst_156 [1] : vector<8x128xf32> to vector<8xf32>
    %396 = vector.shape_cast %395 : vector<8xf32> to vector<8x1xf32>
    %cst_157 = arith.constant 6.250000e-02 : f32
    %397 = vector.broadcast %cst_157 : f32 to vector<8x1xf32>
    %398 = arith.mulf %396, %397 : vector<8x1xf32>
    %c0_158 = arith.constant 0 : index
    %c10_159 = arith.constant 10 : index
    %399 = vector.load %arg9[%c0_158, %c10_159] : memref<8x128xf32, #tpu.memory_space<vmem>>, vector<8x1xf32>
    tpu.vector_store %arg9[%c0_158, %c10_159], %398 {strides = array<i32>} : memref<8x128xf32, #tpu.memory_space<vmem>>, vector<8x1xf32>,
    %400 = vector.extract_strided_slice %53 {offsets = [0, 0], sizes = [8, 128], strides = [1, 1]} : vector<64x128xf32> to vector<8x128xf32>
    %401 = vector.extract_strided_slice %53 {offsets = [8, 0], sizes = [8, 128], strides = [1, 1]} : vector<64x128xf32> to vector<8x128xf32>
    %402 = vector.extract_strided_slice %62 {offsets = [8, 0], sizes = [8, 128], strides = [1, 1]} : vector<64x128xf32> to vector<8x128xf32>
    %403 = vector.extract_strided_slice %65 {offsets = [8, 0], sizes = [8, 128], strides = [1, 1]} : vector<64x128xf32> to vector<8x128xf32>
    %cst_160 = arith.constant 1.000000e+00 : f32
    %404 = vector.broadcast %cst_160 : f32 to vector<8x128xf32>
    %cst_161 = arith.constant 0.000000e+00 : f32
    %405 = vector.broadcast %cst_161 : f32 to vector<8x128xf32>
    %cst_162 = arith.constant 0.000000e+00 : f32
    %406 = vector.broadcast %cst_162 : f32 to vector<8x128xf32>
    %407 = arith.subf %406, %403 : vector<8x128xf32>
    %cst_163 = arith.constant 1.000000e+00 : f32
    %408 = vector.broadcast %cst_163 : f32 to vector<8x128xf32>
    %cst_164 = arith.constant 0.000000e+00 : f32
    %409 = vector.broadcast %cst_164 : f32 to vector<8x128xf32>
    %410 = arith.mulf %408, %402 : vector<8x128xf32>
    %411 = arith.mulf %409, %407 : vector<8x128xf32>
    %412 = arith.subf %410, %411 : vector<8x128xf32>
    %413 = arith.mulf %408, %407 : vector<8x128xf32>
    %414 = arith.mulf %409, %402 : vector<8x128xf32>
    %415 = arith.addf %413, %414 : vector<8x128xf32>
    %416 = arith.mulf %400, %401 : vector<8x128xf32>
    %417 = arith.mulf %404, %412 : vector<8x128xf32>
    %418 = arith.mulf %405, %415 : vector<8x128xf32>
    %419 = arith.subf %417, %418 : vector<8x128xf32>
    %420 = arith.mulf %416, %419 : vector<8x128xf32>
    %421 = arith.mulf %404, %415 : vector<8x128xf32>
    %422 = arith.mulf %405, %412 : vector<8x128xf32>
    %423 = arith.addf %421, %422 : vector<8x128xf32>
    %424 = arith.mulf %416, %423 : vector<8x128xf32>
    %cst_165 = arith.constant dense<0.000000e+00> : vector<8xf32>
    %425 = vector.multi_reduction <add>, %420, %cst_165 [1] : vector<8x128xf32> to vector<8xf32>
    %426 = vector.shape_cast %425 : vector<8xf32> to vector<8x1xf32>
    %cst_166 = arith.constant 6.250000e-02 : f32
    %427 = vector.broadcast %cst_166 : f32 to vector<8x1xf32>
    %428 = arith.mulf %426, %427 : vector<8x1xf32>
    %c0_167 = arith.constant 0 : index
    %c11 = arith.constant 11 : index
    %429 = vector.load %arg8[%c0_167, %c11] : memref<8x128xf32, #tpu.memory_space<vmem>>, vector<8x1xf32>
    tpu.vector_store %arg8[%c0_167, %c11], %428 {strides = array<i32>} : memref<8x128xf32, #tpu.memory_space<vmem>>, vector<8x1xf32>,
    %cst_168 = arith.constant dense<0.000000e+00> : vector<8xf32>
    %430 = vector.multi_reduction <add>, %424, %cst_168 [1] : vector<8x128xf32> to vector<8xf32>
    %431 = vector.shape_cast %430 : vector<8xf32> to vector<8x1xf32>
    %cst_169 = arith.constant 6.250000e-02 : f32
    %432 = vector.broadcast %cst_169 : f32 to vector<8x1xf32>
    %433 = arith.mulf %431, %432 : vector<8x1xf32>
    %c0_170 = arith.constant 0 : index
    %c11_171 = arith.constant 11 : index
    %434 = vector.load %arg9[%c0_170, %c11_171] : memref<8x128xf32, #tpu.memory_space<vmem>>, vector<8x1xf32>
    tpu.vector_store %arg9[%c0_170, %c11_171], %433 {strides = array<i32>} : memref<8x128xf32, #tpu.memory_space<vmem>>, vector<8x1xf32>,
    %435 = vector.extract_strided_slice %53 {offsets = [0, 0], sizes = [8, 128], strides = [1, 1]} : vector<64x128xf32> to vector<8x128xf32>
    %436 = vector.extract_strided_slice %53 {offsets = [8, 0], sizes = [8, 128], strides = [1, 1]} : vector<64x128xf32> to vector<8x128xf32>
    %437 = vector.extract_strided_slice %62 {offsets = [8, 0], sizes = [8, 128], strides = [1, 1]} : vector<64x128xf32> to vector<8x128xf32>
    %438 = vector.extract_strided_slice %65 {offsets = [8, 0], sizes = [8, 128], strides = [1, 1]} : vector<64x128xf32> to vector<8x128xf32>
    %cst_172 = arith.constant 1.000000e+00 : f32
    %439 = vector.broadcast %cst_172 : f32 to vector<8x128xf32>
    %cst_173 = arith.constant 0.000000e+00 : f32
    %440 = vector.broadcast %cst_173 : f32 to vector<8x128xf32>
    %cst_174 = arith.constant 0.000000e+00 : f32
    %441 = vector.broadcast %cst_174 : f32 to vector<8x128xf32>
    %442 = arith.subf %441, %438 : vector<8x128xf32>
    %cst_175 = arith.constant 1.000000e+00 : f32
    %443 = vector.broadcast %cst_175 : f32 to vector<8x128xf32>
    %cst_176 = arith.constant 0.000000e+00 : f32
    %444 = vector.broadcast %cst_176 : f32 to vector<8x128xf32>
    %445 = arith.mulf %443, %437 : vector<8x128xf32>
    %446 = arith.mulf %444, %442 : vector<8x128xf32>
    %447 = arith.subf %445, %446 : vector<8x128xf32>
    %448 = arith.mulf %443, %442 : vector<8x128xf32>
    %449 = arith.mulf %444, %437 : vector<8x128xf32>
    %450 = arith.addf %448, %449 : vector<8x128xf32>
    %451 = arith.mulf %447, %437 : vector<8x128xf32>
    %452 = arith.mulf %450, %442 : vector<8x128xf32>
    %453 = arith.subf %451, %452 : vector<8x128xf32>
    %454 = arith.mulf %447, %442 : vector<8x128xf32>
    %455 = arith.mulf %450, %437 : vector<8x128xf32>
    %456 = arith.addf %454, %455 : vector<8x128xf32>
    %457 = arith.mulf %435, %436 : vector<8x128xf32>
    %458 = arith.mulf %439, %453 : vector<8x128xf32>
    %459 = arith.mulf %440, %456 : vector<8x128xf32>
    %460 = arith.subf %458, %459 : vector<8x128xf32>
    %461 = arith.mulf %457, %460 : vector<8x128xf32>
    %462 = arith.mulf %439, %456 : vector<8x128xf32>
    %463 = arith.mulf %440, %453 : vector<8x128xf32>
    %464 = arith.addf %462, %463 : vector<8x128xf32>
    %465 = arith.mulf %457, %464 : vector<8x128xf32>
    %cst_177 = arith.constant dense<0.000000e+00> : vector<8xf32>
    %466 = vector.multi_reduction <add>, %461, %cst_177 [1] : vector<8x128xf32> to vector<8xf32>
    %467 = vector.shape_cast %466 : vector<8xf32> to vector<8x1xf32>
    %cst_178 = arith.constant 6.250000e-02 : f32
    %468 = vector.broadcast %cst_178 : f32 to vector<8x1xf32>
    %469 = arith.mulf %467, %468 : vector<8x1xf32>
    %c0_179 = arith.constant 0 : index
    %c12 = arith.constant 12 : index
    %470 = vector.load %arg8[%c0_179, %c12] : memref<8x128xf32, #tpu.memory_space<vmem>>, vector<8x1xf32>
    tpu.vector_store %arg8[%c0_179, %c12], %469 {strides = array<i32>} : memref<8x128xf32, #tpu.memory_space<vmem>>, vector<8x1xf32>,
    %cst_180 = arith.constant dense<0.000000e+00> : vector<8xf32>
    %471 = vector.multi_reduction <add>, %465, %cst_180 [1] : vector<8x128xf32> to vector<8xf32>
    %472 = vector.shape_cast %471 : vector<8xf32> to vector<8x1xf32>
    %cst_181 = arith.constant 6.250000e-02 : f32
    %473 = vector.broadcast %cst_181 : f32 to vector<8x1xf32>
    %474 = arith.mulf %472, %473 : vector<8x1xf32>
    %c0_182 = arith.constant 0 : index
    %c12_183 = arith.constant 12 : index
    %475 = vector.load %arg9[%c0_182, %c12_183] : memref<8x128xf32, #tpu.memory_space<vmem>>, vector<8x1xf32>
    tpu.vector_store %arg9[%c0_182, %c12_183], %474 {strides = array<i32>} : memref<8x128xf32, #tpu.memory_space<vmem>>, vector<8x1xf32>,
    %476 = vector.extract_strided_slice %53 {offsets = [8, 0], sizes = [8, 128], strides = [1, 1]} : vector<64x128xf32> to vector<8x128xf32>
    %477 = vector.extract_strided_slice %53 {offsets = [16, 0], sizes = [8, 128], strides = [1, 1]} : vector<64x128xf32> to vector<8x128xf32>
    %cst_184 = arith.constant 1.000000e+00 : f32
    %478 = vector.broadcast %cst_184 : f32 to vector<8x128xf32>
    %cst_185 = arith.constant 0.000000e+00 : f32
    %479 = vector.broadcast %cst_185 : f32 to vector<8x128xf32>
    %cst_186 = arith.constant 1.000000e+00 : f32
    %480 = vector.broadcast %cst_186 : f32 to vector<8x128xf32>
    %cst_187 = arith.constant 0.000000e+00 : f32
    %481 = vector.broadcast %cst_187 : f32 to vector<8x128xf32>
    %482 = arith.mulf %476, %477 : vector<8x128xf32>
    %483 = arith.mulf %478, %480 : vector<8x128xf32>
    %484 = arith.mulf %479, %481 : vector<8x128xf32>
    %485 = arith.subf %483, %484 : vector<8x128xf32>
    %486 = arith.mulf %482, %485 : vector<8x128xf32>
    %487 = arith.mulf %478, %481 : vector<8x128xf32>
    %488 = arith.mulf %479, %480 : vector<8x128xf32>
    %489 = arith.addf %487, %488 : vector<8x128xf32>
    %490 = arith.mulf %482, %489 : vector<8x128xf32>
    %cst_188 = arith.constant dense<0.000000e+00> : vector<8xf32>
    %491 = vector.multi_reduction <add>, %486, %cst_188 [1] : vector<8x128xf32> to vector<8xf32>
    %492 = vector.shape_cast %491 : vector<8xf32> to vector<8x1xf32>
    %cst_189 = arith.constant 6.250000e-02 : f32
    %493 = vector.broadcast %cst_189 : f32 to vector<8x1xf32>
    %494 = arith.mulf %492, %493 : vector<8x1xf32>
    %c0_190 = arith.constant 0 : index
    %c13 = arith.constant 13 : index
    %495 = vector.load %arg8[%c0_190, %c13] : memref<8x128xf32, #tpu.memory_space<vmem>>, vector<8x1xf32>
    tpu.vector_store %arg8[%c0_190, %c13], %494 {strides = array<i32>} : memref<8x128xf32, #tpu.memory_space<vmem>>, vector<8x1xf32>,
    %cst_191 = arith.constant dense<0.000000e+00> : vector<8xf32>
    %496 = vector.multi_reduction <add>, %490, %cst_191 [1] : vector<8x128xf32> to vector<8xf32>
    %497 = vector.shape_cast %496 : vector<8xf32> to vector<8x1xf32>
    %cst_192 = arith.constant 6.250000e-02 : f32
    %498 = vector.broadcast %cst_192 : f32 to vector<8x1xf32>
    %499 = arith.mulf %497, %498 : vector<8x1xf32>
    %c0_193 = arith.constant 0 : index
    %c13_194 = arith.constant 13 : index
    %500 = vector.load %arg9[%c0_193, %c13_194] : memref<8x128xf32, #tpu.memory_space<vmem>>, vector<8x1xf32>
    tpu.vector_store %arg9[%c0_193, %c13_194], %499 {strides = array<i32>} : memref<8x128xf32, #tpu.memory_space<vmem>>, vector<8x1xf32>,
    %501 = vector.extract_strided_slice %53 {offsets = [8, 0], sizes = [8, 128], strides = [1, 1]} : vector<64x128xf32> to vector<8x128xf32>
    %502 = vector.extract_strided_slice %53 {offsets = [16, 0], sizes = [8, 128], strides = [1, 1]} : vector<64x128xf32> to vector<8x128xf32>
    %503 = vector.extract_strided_slice %62 {offsets = [16, 0], sizes = [8, 128], strides = [1, 1]} : vector<64x128xf32> to vector<8x128xf32>
    %504 = vector.extract_strided_slice %65 {offsets = [16, 0], sizes = [8, 128], strides = [1, 1]} : vector<64x128xf32> to vector<8x128xf32>
    %cst_195 = arith.constant 1.000000e+00 : f32
    %505 = vector.broadcast %cst_195 : f32 to vector<8x128xf32>
    %cst_196 = arith.constant 0.000000e+00 : f32
    %506 = vector.broadcast %cst_196 : f32 to vector<8x128xf32>
    %cst_197 = arith.constant 0.000000e+00 : f32
    %507 = vector.broadcast %cst_197 : f32 to vector<8x128xf32>
    %508 = arith.subf %507, %504 : vector<8x128xf32>
    %cst_198 = arith.constant 1.000000e+00 : f32
    %509 = vector.broadcast %cst_198 : f32 to vector<8x128xf32>
    %cst_199 = arith.constant 0.000000e+00 : f32
    %510 = vector.broadcast %cst_199 : f32 to vector<8x128xf32>
    %511 = arith.mulf %509, %503 : vector<8x128xf32>
    %512 = arith.mulf %510, %508 : vector<8x128xf32>
    %513 = arith.subf %511, %512 : vector<8x128xf32>
    %514 = arith.mulf %509, %508 : vector<8x128xf32>
    %515 = arith.mulf %510, %503 : vector<8x128xf32>
    %516 = arith.addf %514, %515 : vector<8x128xf32>
    %517 = arith.mulf %501, %502 : vector<8x128xf32>
    %518 = arith.mulf %505, %513 : vector<8x128xf32>
    %519 = arith.mulf %506, %516 : vector<8x128xf32>
    %520 = arith.subf %518, %519 : vector<8x128xf32>
    %521 = arith.mulf %517, %520 : vector<8x128xf32>
    %522 = arith.mulf %505, %516 : vector<8x128xf32>
    %523 = arith.mulf %506, %513 : vector<8x128xf32>
    %524 = arith.addf %522, %523 : vector<8x128xf32>
    %525 = arith.mulf %517, %524 : vector<8x128xf32>
    %cst_200 = arith.constant dense<0.000000e+00> : vector<8xf32>
    %526 = vector.multi_reduction <add>, %521, %cst_200 [1] : vector<8x128xf32> to vector<8xf32>
    %527 = vector.shape_cast %526 : vector<8xf32> to vector<8x1xf32>
    %cst_201 = arith.constant 6.250000e-02 : f32
    %528 = vector.broadcast %cst_201 : f32 to vector<8x1xf32>
    %529 = arith.mulf %527, %528 : vector<8x1xf32>
    %c0_202 = arith.constant 0 : index
    %c14 = arith.constant 14 : index
    %530 = vector.load %arg8[%c0_202, %c14] : memref<8x128xf32, #tpu.memory_space<vmem>>, vector<8x1xf32>
    tpu.vector_store %arg8[%c0_202, %c14], %529 {strides = array<i32>} : memref<8x128xf32, #tpu.memory_space<vmem>>, vector<8x1xf32>,
    %cst_203 = arith.constant dense<0.000000e+00> : vector<8xf32>
    %531 = vector.multi_reduction <add>, %525, %cst_203 [1] : vector<8x128xf32> to vector<8xf32>
    %532 = vector.shape_cast %531 : vector<8xf32> to vector<8x1xf32>
    %cst_204 = arith.constant 6.250000e-02 : f32
    %533 = vector.broadcast %cst_204 : f32 to vector<8x1xf32>
    %534 = arith.mulf %532, %533 : vector<8x1xf32>
    %c0_205 = arith.constant 0 : index
    %c14_206 = arith.constant 14 : index
    %535 = vector.load %arg9[%c0_205, %c14_206] : memref<8x128xf32, #tpu.memory_space<vmem>>, vector<8x1xf32>
    tpu.vector_store %arg9[%c0_205, %c14_206], %534 {strides = array<i32>} : memref<8x128xf32, #tpu.memory_space<vmem>>, vector<8x1xf32>,
    %536 = vector.extract_strided_slice %53 {offsets = [8, 0], sizes = [8, 128], strides = [1, 1]} : vector<64x128xf32> to vector<8x128xf32>
    %537 = vector.extract_strided_slice %53 {offsets = [16, 0], sizes = [8, 128], strides = [1, 1]} : vector<64x128xf32> to vector<8x128xf32>
    %538 = vector.extract_strided_slice %62 {offsets = [16, 0], sizes = [8, 128], strides = [1, 1]} : vector<64x128xf32> to vector<8x128xf32>
    %539 = vector.extract_strided_slice %65 {offsets = [16, 0], sizes = [8, 128], strides = [1, 1]} : vector<64x128xf32> to vector<8x128xf32>
    %cst_207 = arith.constant 1.000000e+00 : f32
    %540 = vector.broadcast %cst_207 : f32 to vector<8x128xf32>
    %cst_208 = arith.constant 0.000000e+00 : f32
    %541 = vector.broadcast %cst_208 : f32 to vector<8x128xf32>
    %cst_209 = arith.constant 0.000000e+00 : f32
    %542 = vector.broadcast %cst_209 : f32 to vector<8x128xf32>
    %543 = arith.subf %542, %539 : vector<8x128xf32>
    %cst_210 = arith.constant 1.000000e+00 : f32
    %544 = vector.broadcast %cst_210 : f32 to vector<8x128xf32>
    %cst_211 = arith.constant 0.000000e+00 : f32
    %545 = vector.broadcast %cst_211 : f32 to vector<8x128xf32>
    %546 = arith.mulf %544, %538 : vector<8x128xf32>
    %547 = arith.mulf %545, %543 : vector<8x128xf32>
    %548 = arith.subf %546, %547 : vector<8x128xf32>
    %549 = arith.mulf %544, %543 : vector<8x128xf32>
    %550 = arith.mulf %545, %538 : vector<8x128xf32>
    %551 = arith.addf %549, %550 : vector<8x128xf32>
    %552 = arith.mulf %548, %538 : vector<8x128xf32>
    %553 = arith.mulf %551, %543 : vector<8x128xf32>
    %554 = arith.subf %552, %553 : vector<8x128xf32>
    %555 = arith.mulf %548, %543 : vector<8x128xf32>
    %556 = arith.mulf %551, %538 : vector<8x128xf32>
    %557 = arith.addf %555, %556 : vector<8x128xf32>
    %558 = arith.mulf %536, %537 : vector<8x128xf32>
    %559 = arith.mulf %540, %554 : vector<8x128xf32>
    %560 = arith.mulf %541, %557 : vector<8x128xf32>
    %561 = arith.subf %559, %560 : vector<8x128xf32>
    %562 = arith.mulf %558, %561 : vector<8x128xf32>
    %563 = arith.mulf %540, %557 : vector<8x128xf32>
    %564 = arith.mulf %541, %554 : vector<8x128xf32>
    %565 = arith.addf %563, %564 : vector<8x128xf32>
    %566 = arith.mulf %558, %565 : vector<8x128xf32>
    %cst_212 = arith.constant dense<0.000000e+00> : vector<8xf32>
    %567 = vector.multi_reduction <add>, %562, %cst_212 [1] : vector<8x128xf32> to vector<8xf32>
    %568 = vector.shape_cast %567 : vector<8xf32> to vector<8x1xf32>
    %cst_213 = arith.constant 6.250000e-02 : f32
    %569 = vector.broadcast %cst_213 : f32 to vector<8x1xf32>
    %570 = arith.mulf %568, %569 : vector<8x1xf32>
    %c0_214 = arith.constant 0 : index
    %c15 = arith.constant 15 : index
    %571 = vector.load %arg8[%c0_214, %c15] : memref<8x128xf32, #tpu.memory_space<vmem>>, vector<8x1xf32>
    tpu.vector_store %arg8[%c0_214, %c15], %570 {strides = array<i32>} : memref<8x128xf32, #tpu.memory_space<vmem>>, vector<8x1xf32>,
    %cst_215 = arith.constant dense<0.000000e+00> : vector<8xf32>
    %572 = vector.multi_reduction <add>, %566, %cst_215 [1] : vector<8x128xf32> to vector<8xf32>
    %573 = vector.shape_cast %572 : vector<8xf32> to vector<8x1xf32>
    %cst_216 = arith.constant 6.250000e-02 : f32
    %574 = vector.broadcast %cst_216 : f32 to vector<8x1xf32>
    %575 = arith.mulf %573, %574 : vector<8x1xf32>
    %c0_217 = arith.constant 0 : index
    %c15_218 = arith.constant 15 : index
    %576 = vector.load %arg9[%c0_217, %c15_218] : memref<8x128xf32, #tpu.memory_space<vmem>>, vector<8x1xf32>
    tpu.vector_store %arg9[%c0_217, %c15_218], %575 {strides = array<i32>} : memref<8x128xf32, #tpu.memory_space<vmem>>, vector<8x1xf32>,
    %577 = vector.extract_strided_slice %53 {offsets = [16, 0], sizes = [8, 128], strides = [1, 1]} : vector<64x128xf32> to vector<8x128xf32>
    %578 = vector.extract_strided_slice %53 {offsets = [24, 0], sizes = [8, 128], strides = [1, 1]} : vector<64x128xf32> to vector<8x128xf32>
    %cst_219 = arith.constant 1.000000e+00 : f32
    %579 = vector.broadcast %cst_219 : f32 to vector<8x128xf32>
    %cst_220 = arith.constant 0.000000e+00 : f32
    %580 = vector.broadcast %cst_220 : f32 to vector<8x128xf32>
    %cst_221 = arith.constant 1.000000e+00 : f32
    %581 = vector.broadcast %cst_221 : f32 to vector<8x128xf32>
    %cst_222 = arith.constant 0.000000e+00 : f32
    %582 = vector.broadcast %cst_222 : f32 to vector<8x128xf32>
    %583 = arith.mulf %577, %578 : vector<8x128xf32>
    %584 = arith.mulf %579, %581 : vector<8x128xf32>
    %585 = arith.mulf %580, %582 : vector<8x128xf32>
    %586 = arith.subf %584, %585 : vector<8x128xf32>
    %587 = arith.mulf %583, %586 : vector<8x128xf32>
    %588 = arith.mulf %579, %582 : vector<8x128xf32>
    %589 = arith.mulf %580, %581 : vector<8x128xf32>
    %590 = arith.addf %588, %589 : vector<8x128xf32>
    %591 = arith.mulf %583, %590 : vector<8x128xf32>
    %cst_223 = arith.constant dense<0.000000e+00> : vector<8xf32>
    %592 = vector.multi_reduction <add>, %587, %cst_223 [1] : vector<8x128xf32> to vector<8xf32>
    %593 = vector.shape_cast %592 : vector<8xf32> to vector<8x1xf32>
    %cst_224 = arith.constant 6.250000e-02 : f32
    %594 = vector.broadcast %cst_224 : f32 to vector<8x1xf32>
    %595 = arith.mulf %593, %594 : vector<8x1xf32>
    %c0_225 = arith.constant 0 : index
    %c16 = arith.constant 16 : index
    %596 = vector.load %arg8[%c0_225, %c16] : memref<8x128xf32, #tpu.memory_space<vmem>>, vector<8x1xf32>
    tpu.vector_store %arg8[%c0_225, %c16], %595 {strides = array<i32>} : memref<8x128xf32, #tpu.memory_space<vmem>>, vector<8x1xf32>,
    %cst_226 = arith.constant dense<0.000000e+00> : vector<8xf32>
    %597 = vector.multi_reduction <add>, %591, %cst_226 [1] : vector<8x128xf32> to vector<8xf32>
    %598 = vector.shape_cast %597 : vector<8xf32> to vector<8x1xf32>
    %cst_227 = arith.constant 6.250000e-02 : f32
    %599 = vector.broadcast %cst_227 : f32 to vector<8x1xf32>
    %600 = arith.mulf %598, %599 : vector<8x1xf32>
    %c0_228 = arith.constant 0 : index
    %c16_229 = arith.constant 16 : index
    %601 = vector.load %arg9[%c0_228, %c16_229] : memref<8x128xf32, #tpu.memory_space<vmem>>, vector<8x1xf32>
    tpu.vector_store %arg9[%c0_228, %c16_229], %600 {strides = array<i32>} : memref<8x128xf32, #tpu.memory_space<vmem>>, vector<8x1xf32>,
    %602 = vector.extract_strided_slice %53 {offsets = [16, 0], sizes = [8, 128], strides = [1, 1]} : vector<64x128xf32> to vector<8x128xf32>
    %603 = vector.extract_strided_slice %53 {offsets = [24, 0], sizes = [8, 128], strides = [1, 1]} : vector<64x128xf32> to vector<8x128xf32>
    %604 = vector.extract_strided_slice %62 {offsets = [24, 0], sizes = [8, 128], strides = [1, 1]} : vector<64x128xf32> to vector<8x128xf32>
    %605 = vector.extract_strided_slice %65 {offsets = [24, 0], sizes = [8, 128], strides = [1, 1]} : vector<64x128xf32> to vector<8x128xf32>
    %cst_230 = arith.constant 1.000000e+00 : f32
    %606 = vector.broadcast %cst_230 : f32 to vector<8x128xf32>
    %cst_231 = arith.constant 0.000000e+00 : f32
    %607 = vector.broadcast %cst_231 : f32 to vector<8x128xf32>
    %cst_232 = arith.constant 0.000000e+00 : f32
    %608 = vector.broadcast %cst_232 : f32 to vector<8x128xf32>
    %609 = arith.subf %608, %605 : vector<8x128xf32>
    %cst_233 = arith.constant 1.000000e+00 : f32
    %610 = vector.broadcast %cst_233 : f32 to vector<8x128xf32>
    %cst_234 = arith.constant 0.000000e+00 : f32
    %611 = vector.broadcast %cst_234 : f32 to vector<8x128xf32>
    %612 = arith.mulf %610, %604 : vector<8x128xf32>
    %613 = arith.mulf %611, %609 : vector<8x128xf32>
    %614 = arith.subf %612, %613 : vector<8x128xf32>
    %615 = arith.mulf %610, %609 : vector<8x128xf32>
    %616 = arith.mulf %611, %604 : vector<8x128xf32>
    %617 = arith.addf %615, %616 : vector<8x128xf32>
    %618 = arith.mulf %602, %603 : vector<8x128xf32>
    %619 = arith.mulf %606, %614 : vector<8x128xf32>
    %620 = arith.mulf %607, %617 : vector<8x128xf32>
    %621 = arith.subf %619, %620 : vector<8x128xf32>
    %622 = arith.mulf %618, %621 : vector<8x128xf32>
    %623 = arith.mulf %606, %617 : vector<8x128xf32>
    %624 = arith.mulf %607, %614 : vector<8x128xf32>
    %625 = arith.addf %623, %624 : vector<8x128xf32>
    %626 = arith.mulf %618, %625 : vector<8x128xf32>
    %cst_235 = arith.constant dense<0.000000e+00> : vector<8xf32>
    %627 = vector.multi_reduction <add>, %622, %cst_235 [1] : vector<8x128xf32> to vector<8xf32>
    %628 = vector.shape_cast %627 : vector<8xf32> to vector<8x1xf32>
    %cst_236 = arith.constant 6.250000e-02 : f32
    %629 = vector.broadcast %cst_236 : f32 to vector<8x1xf32>
    %630 = arith.mulf %628, %629 : vector<8x1xf32>
    %c0_237 = arith.constant 0 : index
    %c17 = arith.constant 17 : index
    %631 = vector.load %arg8[%c0_237, %c17] : memref<8x128xf32, #tpu.memory_space<vmem>>, vector<8x1xf32>
    tpu.vector_store %arg8[%c0_237, %c17], %630 {strides = array<i32>} : memref<8x128xf32, #tpu.memory_space<vmem>>, vector<8x1xf32>,
    %cst_238 = arith.constant dense<0.000000e+00> : vector<8xf32>
    %632 = vector.multi_reduction <add>, %626, %cst_238 [1] : vector<8x128xf32> to vector<8xf32>
    %633 = vector.shape_cast %632 : vector<8xf32> to vector<8x1xf32>
    %cst_239 = arith.constant 6.250000e-02 : f32
    %634 = vector.broadcast %cst_239 : f32 to vector<8x1xf32>
    %635 = arith.mulf %633, %634 : vector<8x1xf32>
    %c0_240 = arith.constant 0 : index
    %c17_241 = arith.constant 17 : index
    %636 = vector.load %arg9[%c0_240, %c17_241] : memref<8x128xf32, #tpu.memory_space<vmem>>, vector<8x1xf32>
    tpu.vector_store %arg9[%c0_240, %c17_241], %635 {strides = array<i32>} : memref<8x128xf32, #tpu.memory_space<vmem>>, vector<8x1xf32>,
    %637 = vector.extract_strided_slice %53 {offsets = [16, 0], sizes = [8, 128], strides = [1, 1]} : vector<64x128xf32> to vector<8x128xf32>
    %638 = vector.extract_strided_slice %53 {offsets = [24, 0], sizes = [8, 128], strides = [1, 1]} : vector<64x128xf32> to vector<8x128xf32>
    %639 = vector.extract_strided_slice %62 {offsets = [24, 0], sizes = [8, 128], strides = [1, 1]} : vector<64x128xf32> to vector<8x128xf32>
    %640 = vector.extract_strided_slice %65 {offsets = [24, 0], sizes = [8, 128], strides = [1, 1]} : vector<64x128xf32> to vector<8x128xf32>
    %cst_242 = arith.constant 1.000000e+00 : f32
    %641 = vector.broadcast %cst_242 : f32 to vector<8x128xf32>
    %cst_243 = arith.constant 0.000000e+00 : f32
    %642 = vector.broadcast %cst_243 : f32 to vector<8x128xf32>
    %cst_244 = arith.constant 0.000000e+00 : f32
    %643 = vector.broadcast %cst_244 : f32 to vector<8x128xf32>
    %644 = arith.subf %643, %640 : vector<8x128xf32>
    %cst_245 = arith.constant 1.000000e+00 : f32
    %645 = vector.broadcast %cst_245 : f32 to vector<8x128xf32>
    %cst_246 = arith.constant 0.000000e+00 : f32
    %646 = vector.broadcast %cst_246 : f32 to vector<8x128xf32>
    %647 = arith.mulf %645, %639 : vector<8x128xf32>
    %648 = arith.mulf %646, %644 : vector<8x128xf32>
    %649 = arith.subf %647, %648 : vector<8x128xf32>
    %650 = arith.mulf %645, %644 : vector<8x128xf32>
    %651 = arith.mulf %646, %639 : vector<8x128xf32>
    %652 = arith.addf %650, %651 : vector<8x128xf32>
    %653 = arith.mulf %649, %639 : vector<8x128xf32>
    %654 = arith.mulf %652, %644 : vector<8x128xf32>
    %655 = arith.subf %653, %654 : vector<8x128xf32>
    %656 = arith.mulf %649, %644 : vector<8x128xf32>
    %657 = arith.mulf %652, %639 : vector<8x128xf32>
    %658 = arith.addf %656, %657 : vector<8x128xf32>
    %659 = arith.mulf %637, %638 : vector<8x128xf32>
    %660 = arith.mulf %641, %655 : vector<8x128xf32>
    %661 = arith.mulf %642, %658 : vector<8x128xf32>
    %662 = arith.subf %660, %661 : vector<8x128xf32>
    %663 = arith.mulf %659, %662 : vector<8x128xf32>
    %664 = arith.mulf %641, %658 : vector<8x128xf32>
    %665 = arith.mulf %642, %655 : vector<8x128xf32>
    %666 = arith.addf %664, %665 : vector<8x128xf32>
    %667 = arith.mulf %659, %666 : vector<8x128xf32>
    %cst_247 = arith.constant dense<0.000000e+00> : vector<8xf32>
    %668 = vector.multi_reduction <add>, %663, %cst_247 [1] : vector<8x128xf32> to vector<8xf32>
    %669 = vector.shape_cast %668 : vector<8xf32> to vector<8x1xf32>
    %cst_248 = arith.constant 6.250000e-02 : f32
    %670 = vector.broadcast %cst_248 : f32 to vector<8x1xf32>
    %671 = arith.mulf %669, %670 : vector<8x1xf32>
    %c0_249 = arith.constant 0 : index
    %c18 = arith.constant 18 : index
    %672 = vector.load %arg8[%c0_249, %c18] : memref<8x128xf32, #tpu.memory_space<vmem>>, vector<8x1xf32>
    tpu.vector_store %arg8[%c0_249, %c18], %671 {strides = array<i32>} : memref<8x128xf32, #tpu.memory_space<vmem>>, vector<8x1xf32>,
    %cst_250 = arith.constant dense<0.000000e+00> : vector<8xf32>
    %673 = vector.multi_reduction <add>, %667, %cst_250 [1] : vector<8x128xf32> to vector<8xf32>
    %674 = vector.shape_cast %673 : vector<8xf32> to vector<8x1xf32>
    %cst_251 = arith.constant 6.250000e-02 : f32
    %675 = vector.broadcast %cst_251 : f32 to vector<8x1xf32>
    %676 = arith.mulf %674, %675 : vector<8x1xf32>
    %c0_252 = arith.constant 0 : index
    %c18_253 = arith.constant 18 : index
    %677 = vector.load %arg9[%c0_252, %c18_253] : memref<8x128xf32, #tpu.memory_space<vmem>>, vector<8x1xf32>
    tpu.vector_store %arg9[%c0_252, %c18_253], %676 {strides = array<i32>} : memref<8x128xf32, #tpu.memory_space<vmem>>, vector<8x1xf32>,
    %678 = vector.extract_strided_slice %53 {offsets = [24, 0], sizes = [8, 128], strides = [1, 1]} : vector<64x128xf32> to vector<8x128xf32>
    %679 = vector.extract_strided_slice %53 {offsets = [32, 0], sizes = [8, 128], strides = [1, 1]} : vector<64x128xf32> to vector<8x128xf32>
    %cst_254 = arith.constant 1.000000e+00 : f32
    %680 = vector.broadcast %cst_254 : f32 to vector<8x128xf32>
    %cst_255 = arith.constant 0.000000e+00 : f32
    %681 = vector.broadcast %cst_255 : f32 to vector<8x128xf32>
    %cst_256 = arith.constant 1.000000e+00 : f32
    %682 = vector.broadcast %cst_256 : f32 to vector<8x128xf32>
    %cst_257 = arith.constant 0.000000e+00 : f32
    %683 = vector.broadcast %cst_257 : f32 to vector<8x128xf32>
    %684 = arith.mulf %678, %679 : vector<8x128xf32>
    %685 = arith.mulf %680, %682 : vector<8x128xf32>
    %686 = arith.mulf %681, %683 : vector<8x128xf32>
    %687 = arith.subf %685, %686 : vector<8x128xf32>
    %688 = arith.mulf %684, %687 : vector<8x128xf32>
    %689 = arith.mulf %680, %683 : vector<8x128xf32>
    %690 = arith.mulf %681, %682 : vector<8x128xf32>
    %691 = arith.addf %689, %690 : vector<8x128xf32>
    %692 = arith.mulf %684, %691 : vector<8x128xf32>
    %cst_258 = arith.constant dense<0.000000e+00> : vector<8xf32>
    %693 = vector.multi_reduction <add>, %688, %cst_258 [1] : vector<8x128xf32> to vector<8xf32>
    %694 = vector.shape_cast %693 : vector<8xf32> to vector<8x1xf32>
    %cst_259 = arith.constant 6.250000e-02 : f32
    %695 = vector.broadcast %cst_259 : f32 to vector<8x1xf32>
    %696 = arith.mulf %694, %695 : vector<8x1xf32>
    %c0_260 = arith.constant 0 : index
    %c19 = arith.constant 19 : index
    %697 = vector.load %arg8[%c0_260, %c19] : memref<8x128xf32, #tpu.memory_space<vmem>>, vector<8x1xf32>
    tpu.vector_store %arg8[%c0_260, %c19], %696 {strides = array<i32>} : memref<8x128xf32, #tpu.memory_space<vmem>>, vector<8x1xf32>,
    %cst_261 = arith.constant dense<0.000000e+00> : vector<8xf32>
    %698 = vector.multi_reduction <add>, %692, %cst_261 [1] : vector<8x128xf32> to vector<8xf32>
    %699 = vector.shape_cast %698 : vector<8xf32> to vector<8x1xf32>
    %cst_262 = arith.constant 6.250000e-02 : f32
    %700 = vector.broadcast %cst_262 : f32 to vector<8x1xf32>
    %701 = arith.mulf %699, %700 : vector<8x1xf32>
    %c0_263 = arith.constant 0 : index
    %c19_264 = arith.constant 19 : index
    %702 = vector.load %arg9[%c0_263, %c19_264] : memref<8x128xf32, #tpu.memory_space<vmem>>, vector<8x1xf32>
    tpu.vector_store %arg9[%c0_263, %c19_264], %701 {strides = array<i32>} : memref<8x128xf32, #tpu.memory_space<vmem>>, vector<8x1xf32>,
    %703 = vector.extract_strided_slice %53 {offsets = [24, 0], sizes = [8, 128], strides = [1, 1]} : vector<64x128xf32> to vector<8x128xf32>
    %704 = vector.extract_strided_slice %53 {offsets = [32, 0], sizes = [8, 128], strides = [1, 1]} : vector<64x128xf32> to vector<8x128xf32>
    %705 = vector.extract_strided_slice %62 {offsets = [32, 0], sizes = [8, 128], strides = [1, 1]} : vector<64x128xf32> to vector<8x128xf32>
    %706 = vector.extract_strided_slice %65 {offsets = [32, 0], sizes = [8, 128], strides = [1, 1]} : vector<64x128xf32> to vector<8x128xf32>
    %cst_265 = arith.constant 1.000000e+00 : f32
    %707 = vector.broadcast %cst_265 : f32 to vector<8x128xf32>
    %cst_266 = arith.constant 0.000000e+00 : f32
    %708 = vector.broadcast %cst_266 : f32 to vector<8x128xf32>
    %cst_267 = arith.constant 0.000000e+00 : f32
    %709 = vector.broadcast %cst_267 : f32 to vector<8x128xf32>
    %710 = arith.subf %709, %706 : vector<8x128xf32>
    %cst_268 = arith.constant 1.000000e+00 : f32
    %711 = vector.broadcast %cst_268 : f32 to vector<8x128xf32>
    %cst_269 = arith.constant 0.000000e+00 : f32
    %712 = vector.broadcast %cst_269 : f32 to vector<8x128xf32>
    %713 = arith.mulf %711, %705 : vector<8x128xf32>
    %714 = arith.mulf %712, %710 : vector<8x128xf32>
    %715 = arith.subf %713, %714 : vector<8x128xf32>
    %716 = arith.mulf %711, %710 : vector<8x128xf32>
    %717 = arith.mulf %712, %705 : vector<8x128xf32>
    %718 = arith.addf %716, %717 : vector<8x128xf32>
    %719 = arith.mulf %703, %704 : vector<8x128xf32>
    %720 = arith.mulf %707, %715 : vector<8x128xf32>
    %721 = arith.mulf %708, %718 : vector<8x128xf32>
    %722 = arith.subf %720, %721 : vector<8x128xf32>
    %723 = arith.mulf %719, %722 : vector<8x128xf32>
    %724 = arith.mulf %707, %718 : vector<8x128xf32>
    %725 = arith.mulf %708, %715 : vector<8x128xf32>
    %726 = arith.addf %724, %725 : vector<8x128xf32>
    %727 = arith.mulf %719, %726 : vector<8x128xf32>
    %cst_270 = arith.constant dense<0.000000e+00> : vector<8xf32>
    %728 = vector.multi_reduction <add>, %723, %cst_270 [1] : vector<8x128xf32> to vector<8xf32>
    %729 = vector.shape_cast %728 : vector<8xf32> to vector<8x1xf32>
    %cst_271 = arith.constant 6.250000e-02 : f32
    %730 = vector.broadcast %cst_271 : f32 to vector<8x1xf32>
    %731 = arith.mulf %729, %730 : vector<8x1xf32>
    %c0_272 = arith.constant 0 : index
    %c20 = arith.constant 20 : index
    %732 = vector.load %arg8[%c0_272, %c20] : memref<8x128xf32, #tpu.memory_space<vmem>>, vector<8x1xf32>
    tpu.vector_store %arg8[%c0_272, %c20], %731 {strides = array<i32>} : memref<8x128xf32, #tpu.memory_space<vmem>>, vector<8x1xf32>,
    %cst_273 = arith.constant dense<0.000000e+00> : vector<8xf32>
    %733 = vector.multi_reduction <add>, %727, %cst_273 [1] : vector<8x128xf32> to vector<8xf32>
    %734 = vector.shape_cast %733 : vector<8xf32> to vector<8x1xf32>
    %cst_274 = arith.constant 6.250000e-02 : f32
    %735 = vector.broadcast %cst_274 : f32 to vector<8x1xf32>
    %736 = arith.mulf %734, %735 : vector<8x1xf32>
    %c0_275 = arith.constant 0 : index
    %c20_276 = arith.constant 20 : index
    %737 = vector.load %arg9[%c0_275, %c20_276] : memref<8x128xf32, #tpu.memory_space<vmem>>, vector<8x1xf32>
    tpu.vector_store %arg9[%c0_275, %c20_276], %736 {strides = array<i32>} : memref<8x128xf32, #tpu.memory_space<vmem>>, vector<8x1xf32>,
    %738 = vector.extract_strided_slice %53 {offsets = [24, 0], sizes = [8, 128], strides = [1, 1]} : vector<64x128xf32> to vector<8x128xf32>
    %739 = vector.extract_strided_slice %53 {offsets = [32, 0], sizes = [8, 128], strides = [1, 1]} : vector<64x128xf32> to vector<8x128xf32>
    %740 = vector.extract_strided_slice %62 {offsets = [32, 0], sizes = [8, 128], strides = [1, 1]} : vector<64x128xf32> to vector<8x128xf32>
    %741 = vector.extract_strided_slice %65 {offsets = [32, 0], sizes = [8, 128], strides = [1, 1]} : vector<64x128xf32> to vector<8x128xf32>
    %cst_277 = arith.constant 1.000000e+00 : f32
    %742 = vector.broadcast %cst_277 : f32 to vector<8x128xf32>
    %cst_278 = arith.constant 0.000000e+00 : f32
    %743 = vector.broadcast %cst_278 : f32 to vector<8x128xf32>
    %cst_279 = arith.constant 0.000000e+00 : f32
    %744 = vector.broadcast %cst_279 : f32 to vector<8x128xf32>
    %745 = arith.subf %744, %741 : vector<8x128xf32>
    %cst_280 = arith.constant 1.000000e+00 : f32
    %746 = vector.broadcast %cst_280 : f32 to vector<8x128xf32>
    %cst_281 = arith.constant 0.000000e+00 : f32
    %747 = vector.broadcast %cst_281 : f32 to vector<8x128xf32>
    %748 = arith.mulf %746, %740 : vector<8x128xf32>
    %749 = arith.mulf %747, %745 : vector<8x128xf32>
    %750 = arith.subf %748, %749 : vector<8x128xf32>
    %751 = arith.mulf %746, %745 : vector<8x128xf32>
    %752 = arith.mulf %747, %740 : vector<8x128xf32>
    %753 = arith.addf %751, %752 : vector<8x128xf32>
    %754 = arith.mulf %750, %740 : vector<8x128xf32>
    %755 = arith.mulf %753, %745 : vector<8x128xf32>
    %756 = arith.subf %754, %755 : vector<8x128xf32>
    %757 = arith.mulf %750, %745 : vector<8x128xf32>
    %758 = arith.mulf %753, %740 : vector<8x128xf32>
    %759 = arith.addf %757, %758 : vector<8x128xf32>
    %760 = arith.mulf %738, %739 : vector<8x128xf32>
    %761 = arith.mulf %742, %756 : vector<8x128xf32>
    %762 = arith.mulf %743, %759 : vector<8x128xf32>
    %763 = arith.subf %761, %762 : vector<8x128xf32>
    %764 = arith.mulf %760, %763 : vector<8x128xf32>
    %765 = arith.mulf %742, %759 : vector<8x128xf32>
    %766 = arith.mulf %743, %756 : vector<8x128xf32>
    %767 = arith.addf %765, %766 : vector<8x128xf32>
    %768 = arith.mulf %760, %767 : vector<8x128xf32>
    %cst_282 = arith.constant dense<0.000000e+00> : vector<8xf32>
    %769 = vector.multi_reduction <add>, %764, %cst_282 [1] : vector<8x128xf32> to vector<8xf32>
    %770 = vector.shape_cast %769 : vector<8xf32> to vector<8x1xf32>
    %cst_283 = arith.constant 6.250000e-02 : f32
    %771 = vector.broadcast %cst_283 : f32 to vector<8x1xf32>
    %772 = arith.mulf %770, %771 : vector<8x1xf32>
    %c0_284 = arith.constant 0 : index
    %c21 = arith.constant 21 : index
    %773 = vector.load %arg8[%c0_284, %c21] : memref<8x128xf32, #tpu.memory_space<vmem>>, vector<8x1xf32>
    tpu.vector_store %arg8[%c0_284, %c21], %772 {strides = array<i32>} : memref<8x128xf32, #tpu.memory_space<vmem>>, vector<8x1xf32>,
    %cst_285 = arith.constant dense<0.000000e+00> : vector<8xf32>
    %774 = vector.multi_reduction <add>, %768, %cst_285 [1] : vector<8x128xf32> to vector<8xf32>
    %775 = vector.shape_cast %774 : vector<8xf32> to vector<8x1xf32>
    %cst_286 = arith.constant 6.250000e-02 : f32
    %776 = vector.broadcast %cst_286 : f32 to vector<8x1xf32>
    %777 = arith.mulf %775, %776 : vector<8x1xf32>
    %c0_287 = arith.constant 0 : index
    %c21_288 = arith.constant 21 : index
    %778 = vector.load %arg9[%c0_287, %c21_288] : memref<8x128xf32, #tpu.memory_space<vmem>>, vector<8x1xf32>
    tpu.vector_store %arg9[%c0_287, %c21_288], %777 {strides = array<i32>} : memref<8x128xf32, #tpu.memory_space<vmem>>, vector<8x1xf32>,
    %779 = vector.extract_strided_slice %53 {offsets = [0, 0], sizes = [8, 128], strides = [1, 1]} : vector<64x128xf32> to vector<8x128xf32>
    %780 = vector.extract_strided_slice %62 {offsets = [0, 0], sizes = [8, 128], strides = [1, 1]} : vector<64x128xf32> to vector<8x128xf32>
    %781 = vector.extract_strided_slice %65 {offsets = [0, 0], sizes = [8, 128], strides = [1, 1]} : vector<64x128xf32> to vector<8x128xf32>
    %782 = vector.extract_strided_slice %53 {offsets = [8, 0], sizes = [8, 128], strides = [1, 1]} : vector<64x128xf32> to vector<8x128xf32>
    %783 = vector.extract_strided_slice %62 {offsets = [8, 0], sizes = [8, 128], strides = [1, 1]} : vector<64x128xf32> to vector<8x128xf32>
    %784 = vector.extract_strided_slice %65 {offsets = [8, 0], sizes = [8, 128], strides = [1, 1]} : vector<64x128xf32> to vector<8x128xf32>
    %cst_289 = arith.constant 1.000000e+00 : f32
    %785 = vector.broadcast %cst_289 : f32 to vector<8x128xf32>
    %cst_290 = arith.constant 0.000000e+00 : f32
    %786 = vector.broadcast %cst_290 : f32 to vector<8x128xf32>
    %787 = arith.mulf %785, %780 : vector<8x128xf32>
    %788 = arith.mulf %786, %781 : vector<8x128xf32>
    %789 = arith.subf %787, %788 : vector<8x128xf32>
    %790 = arith.mulf %785, %781 : vector<8x128xf32>
    %791 = arith.mulf %786, %780 : vector<8x128xf32>
    %792 = arith.addf %790, %791 : vector<8x128xf32>
    %cst_291 = arith.constant 0.000000e+00 : f32
    %793 = vector.broadcast %cst_291 : f32 to vector<8x128xf32>
    %794 = arith.subf %793, %784 : vector<8x128xf32>
    %cst_292 = arith.constant 1.000000e+00 : f32
    %795 = vector.broadcast %cst_292 : f32 to vector<8x128xf32>
    %cst_293 = arith.constant 0.000000e+00 : f32
    %796 = vector.broadcast %cst_293 : f32 to vector<8x128xf32>
    %797 = arith.mulf %795, %783 : vector<8x128xf32>
    %798 = arith.mulf %796, %794 : vector<8x128xf32>
    %799 = arith.subf %797, %798 : vector<8x128xf32>
    %800 = arith.mulf %795, %794 : vector<8x128xf32>
    %801 = arith.mulf %796, %783 : vector<8x128xf32>
    %802 = arith.addf %800, %801 : vector<8x128xf32>
    %803 = arith.mulf %779, %782 : vector<8x128xf32>
    %804 = arith.mulf %789, %799 : vector<8x128xf32>
    %805 = arith.mulf %792, %802 : vector<8x128xf32>
    %806 = arith.subf %804, %805 : vector<8x128xf32>
    %807 = arith.mulf %803, %806 : vector<8x128xf32>
    %808 = arith.mulf %789, %802 : vector<8x128xf32>
    %809 = arith.mulf %792, %799 : vector<8x128xf32>
    %810 = arith.addf %808, %809 : vector<8x128xf32>
    %811 = arith.mulf %803, %810 : vector<8x128xf32>
    %cst_294 = arith.constant dense<0.000000e+00> : vector<8xf32>
    %812 = vector.multi_reduction <add>, %807, %cst_294 [1] : vector<8x128xf32> to vector<8xf32>
    %813 = vector.shape_cast %812 : vector<8xf32> to vector<8x1xf32>
    %cst_295 = arith.constant 6.250000e-02 : f32
    %814 = vector.broadcast %cst_295 : f32 to vector<8x1xf32>
    %815 = arith.mulf %813, %814 : vector<8x1xf32>
    %c0_296 = arith.constant 0 : index
    %c22 = arith.constant 22 : index
    %816 = vector.load %arg8[%c0_296, %c22] : memref<8x128xf32, #tpu.memory_space<vmem>>, vector<8x1xf32>
    tpu.vector_store %arg8[%c0_296, %c22], %815 {strides = array<i32>} : memref<8x128xf32, #tpu.memory_space<vmem>>, vector<8x1xf32>,
    %cst_297 = arith.constant dense<0.000000e+00> : vector<8xf32>
    %817 = vector.multi_reduction <add>, %811, %cst_297 [1] : vector<8x128xf32> to vector<8xf32>
    %818 = vector.shape_cast %817 : vector<8xf32> to vector<8x1xf32>
    %cst_298 = arith.constant 6.250000e-02 : f32
    %819 = vector.broadcast %cst_298 : f32 to vector<8x1xf32>
    %820 = arith.mulf %818, %819 : vector<8x1xf32>
    %c0_299 = arith.constant 0 : index
    %c22_300 = arith.constant 22 : index
    %821 = vector.load %arg9[%c0_299, %c22_300] : memref<8x128xf32, #tpu.memory_space<vmem>>, vector<8x1xf32>
    tpu.vector_store %arg9[%c0_299, %c22_300], %820 {strides = array<i32>} : memref<8x128xf32, #tpu.memory_space<vmem>>, vector<8x1xf32>,
    %822 = vector.extract_strided_slice %53 {offsets = [0, 0], sizes = [8, 128], strides = [1, 1]} : vector<64x128xf32> to vector<8x128xf32>
    %823 = vector.extract_strided_slice %62 {offsets = [0, 0], sizes = [8, 128], strides = [1, 1]} : vector<64x128xf32> to vector<8x128xf32>
    %824 = vector.extract_strided_slice %65 {offsets = [0, 0], sizes = [8, 128], strides = [1, 1]} : vector<64x128xf32> to vector<8x128xf32>
    %825 = vector.extract_strided_slice %53 {offsets = [8, 0], sizes = [8, 128], strides = [1, 1]} : vector<64x128xf32> to vector<8x128xf32>
    %826 = vector.extract_strided_slice %62 {offsets = [8, 0], sizes = [8, 128], strides = [1, 1]} : vector<64x128xf32> to vector<8x128xf32>
    %827 = vector.extract_strided_slice %65 {offsets = [8, 0], sizes = [8, 128], strides = [1, 1]} : vector<64x128xf32> to vector<8x128xf32>
    %cst_301 = arith.constant 1.000000e+00 : f32
    %828 = vector.broadcast %cst_301 : f32 to vector<8x128xf32>
    %cst_302 = arith.constant 0.000000e+00 : f32
    %829 = vector.broadcast %cst_302 : f32 to vector<8x128xf32>
    %830 = arith.mulf %828, %823 : vector<8x128xf32>
    %831 = arith.mulf %829, %824 : vector<8x128xf32>
    %832 = arith.subf %830, %831 : vector<8x128xf32>
    %833 = arith.mulf %828, %824 : vector<8x128xf32>
    %834 = arith.mulf %829, %823 : vector<8x128xf32>
    %835 = arith.addf %833, %834 : vector<8x128xf32>
    %cst_303 = arith.constant 0.000000e+00 : f32
    %836 = vector.broadcast %cst_303 : f32 to vector<8x128xf32>
    %837 = arith.subf %836, %827 : vector<8x128xf32>
    %cst_304 = arith.constant 1.000000e+00 : f32
    %838 = vector.broadcast %cst_304 : f32 to vector<8x128xf32>
    %cst_305 = arith.constant 0.000000e+00 : f32
    %839 = vector.broadcast %cst_305 : f32 to vector<8x128xf32>
    %840 = arith.mulf %838, %826 : vector<8x128xf32>
    %841 = arith.mulf %839, %837 : vector<8x128xf32>
    %842 = arith.subf %840, %841 : vector<8x128xf32>
    %843 = arith.mulf %838, %837 : vector<8x128xf32>
    %844 = arith.mulf %839, %826 : vector<8x128xf32>
    %845 = arith.addf %843, %844 : vector<8x128xf32>
    %846 = arith.mulf %842, %826 : vector<8x128xf32>
    %847 = arith.mulf %845, %837 : vector<8x128xf32>
    %848 = arith.subf %846, %847 : vector<8x128xf32>
    %849 = arith.mulf %842, %837 : vector<8x128xf32>
    %850 = arith.mulf %845, %826 : vector<8x128xf32>
    %851 = arith.addf %849, %850 : vector<8x128xf32>
    %852 = arith.mulf %822, %825 : vector<8x128xf32>
    %853 = arith.mulf %832, %848 : vector<8x128xf32>
    %854 = arith.mulf %835, %851 : vector<8x128xf32>
    %855 = arith.subf %853, %854 : vector<8x128xf32>
    %856 = arith.mulf %852, %855 : vector<8x128xf32>
    %857 = arith.mulf %832, %851 : vector<8x128xf32>
    %858 = arith.mulf %835, %848 : vector<8x128xf32>
    %859 = arith.addf %857, %858 : vector<8x128xf32>
    %860 = arith.mulf %852, %859 : vector<8x128xf32>
    %cst_306 = arith.constant dense<0.000000e+00> : vector<8xf32>
    %861 = vector.multi_reduction <add>, %856, %cst_306 [1] : vector<8x128xf32> to vector<8xf32>
    %862 = vector.shape_cast %861 : vector<8xf32> to vector<8x1xf32>
    %cst_307 = arith.constant 6.250000e-02 : f32
    %863 = vector.broadcast %cst_307 : f32 to vector<8x1xf32>
    %864 = arith.mulf %862, %863 : vector<8x1xf32>
    %c0_308 = arith.constant 0 : index
    %c23 = arith.constant 23 : index
    %865 = vector.load %arg8[%c0_308, %c23] : memref<8x128xf32, #tpu.memory_space<vmem>>, vector<8x1xf32>
    tpu.vector_store %arg8[%c0_308, %c23], %864 {strides = array<i32>} : memref<8x128xf32, #tpu.memory_space<vmem>>, vector<8x1xf32>,
    %cst_309 = arith.constant dense<0.000000e+00> : vector<8xf32>
    %866 = vector.multi_reduction <add>, %860, %cst_309 [1] : vector<8x128xf32> to vector<8xf32>
    %867 = vector.shape_cast %866 : vector<8xf32> to vector<8x1xf32>
    %cst_310 = arith.constant 6.250000e-02 : f32
    %868 = vector.broadcast %cst_310 : f32 to vector<8x1xf32>
    %869 = arith.mulf %867, %868 : vector<8x1xf32>
    %c0_311 = arith.constant 0 : index
    %c23_312 = arith.constant 23 : index
    %870 = vector.load %arg9[%c0_311, %c23_312] : memref<8x128xf32, #tpu.memory_space<vmem>>, vector<8x1xf32>
    tpu.vector_store %arg9[%c0_311, %c23_312], %869 {strides = array<i32>} : memref<8x128xf32, #tpu.memory_space<vmem>>, vector<8x1xf32>,
    %871 = vector.extract_strided_slice %53 {offsets = [0, 0], sizes = [8, 128], strides = [1, 1]} : vector<64x128xf32> to vector<8x128xf32>
    %872 = vector.extract_strided_slice %62 {offsets = [0, 0], sizes = [8, 128], strides = [1, 1]} : vector<64x128xf32> to vector<8x128xf32>
    %873 = vector.extract_strided_slice %65 {offsets = [0, 0], sizes = [8, 128], strides = [1, 1]} : vector<64x128xf32> to vector<8x128xf32>
    %874 = vector.extract_strided_slice %53 {offsets = [8, 0], sizes = [8, 128], strides = [1, 1]} : vector<64x128xf32> to vector<8x128xf32>
    %875 = vector.extract_strided_slice %62 {offsets = [8, 0], sizes = [8, 128], strides = [1, 1]} : vector<64x128xf32> to vector<8x128xf32>
    %876 = vector.extract_strided_slice %65 {offsets = [8, 0], sizes = [8, 128], strides = [1, 1]} : vector<64x128xf32> to vector<8x128xf32>
    %cst_313 = arith.constant 1.000000e+00 : f32
    %877 = vector.broadcast %cst_313 : f32 to vector<8x128xf32>
    %cst_314 = arith.constant 0.000000e+00 : f32
    %878 = vector.broadcast %cst_314 : f32 to vector<8x128xf32>
    %879 = arith.mulf %877, %872 : vector<8x128xf32>
    %880 = arith.mulf %878, %873 : vector<8x128xf32>
    %881 = arith.subf %879, %880 : vector<8x128xf32>
    %882 = arith.mulf %877, %873 : vector<8x128xf32>
    %883 = arith.mulf %878, %872 : vector<8x128xf32>
    %884 = arith.addf %882, %883 : vector<8x128xf32>
    %cst_315 = arith.constant 0.000000e+00 : f32
    %885 = vector.broadcast %cst_315 : f32 to vector<8x128xf32>
    %886 = arith.subf %885, %876 : vector<8x128xf32>
    %cst_316 = arith.constant 1.000000e+00 : f32
    %887 = vector.broadcast %cst_316 : f32 to vector<8x128xf32>
    %cst_317 = arith.constant 0.000000e+00 : f32
    %888 = vector.broadcast %cst_317 : f32 to vector<8x128xf32>
    %889 = arith.mulf %887, %875 : vector<8x128xf32>
    %890 = arith.mulf %888, %886 : vector<8x128xf32>
    %891 = arith.subf %889, %890 : vector<8x128xf32>
    %892 = arith.mulf %887, %886 : vector<8x128xf32>
    %893 = arith.mulf %888, %875 : vector<8x128xf32>
    %894 = arith.addf %892, %893 : vector<8x128xf32>
    %895 = arith.mulf %891, %875 : vector<8x128xf32>
    %896 = arith.mulf %894, %886 : vector<8x128xf32>
    %897 = arith.subf %895, %896 : vector<8x128xf32>
    %898 = arith.mulf %891, %886 : vector<8x128xf32>
    %899 = arith.mulf %894, %875 : vector<8x128xf32>
    %900 = arith.addf %898, %899 : vector<8x128xf32>
    %901 = arith.mulf %897, %875 : vector<8x128xf32>
    %902 = arith.mulf %900, %886 : vector<8x128xf32>
    %903 = arith.subf %901, %902 : vector<8x128xf32>
    %904 = arith.mulf %897, %886 : vector<8x128xf32>
    %905 = arith.mulf %900, %875 : vector<8x128xf32>
    %906 = arith.addf %904, %905 : vector<8x128xf32>
    %907 = arith.mulf %871, %874 : vector<8x128xf32>
    %908 = arith.mulf %881, %903 : vector<8x128xf32>
    %909 = arith.mulf %884, %906 : vector<8x128xf32>
    %910 = arith.subf %908, %909 : vector<8x128xf32>
    %911 = arith.mulf %907, %910 : vector<8x128xf32>
    %912 = arith.mulf %881, %906 : vector<8x128xf32>
    %913 = arith.mulf %884, %903 : vector<8x128xf32>
    %914 = arith.addf %912, %913 : vector<8x128xf32>
    %915 = arith.mulf %907, %914 : vector<8x128xf32>
    %cst_318 = arith.constant dense<0.000000e+00> : vector<8xf32>
    %916 = vector.multi_reduction <add>, %911, %cst_318 [1] : vector<8x128xf32> to vector<8xf32>
    %917 = vector.shape_cast %916 : vector<8xf32> to vector<8x1xf32>
    %cst_319 = arith.constant 6.250000e-02 : f32
    %918 = vector.broadcast %cst_319 : f32 to vector<8x1xf32>
    %919 = arith.mulf %917, %918 : vector<8x1xf32>
    %c0_320 = arith.constant 0 : index
    %c24 = arith.constant 24 : index
    %920 = vector.load %arg8[%c0_320, %c24] : memref<8x128xf32, #tpu.memory_space<vmem>>, vector<8x1xf32>
    tpu.vector_store %arg8[%c0_320, %c24], %919 {strides = array<i32>} : memref<8x128xf32, #tpu.memory_space<vmem>>, vector<8x1xf32>,
    %cst_321 = arith.constant dense<0.000000e+00> : vector<8xf32>
    %921 = vector.multi_reduction <add>, %915, %cst_321 [1] : vector<8x128xf32> to vector<8xf32>
    %922 = vector.shape_cast %921 : vector<8xf32> to vector<8x1xf32>
    %cst_322 = arith.constant 6.250000e-02 : f32
    %923 = vector.broadcast %cst_322 : f32 to vector<8x1xf32>
    %924 = arith.mulf %922, %923 : vector<8x1xf32>
    %c0_323 = arith.constant 0 : index
    %c24_324 = arith.constant 24 : index
    %925 = vector.load %arg9[%c0_323, %c24_324] : memref<8x128xf32, #tpu.memory_space<vmem>>, vector<8x1xf32>
    tpu.vector_store %arg9[%c0_323, %c24_324], %924 {strides = array<i32>} : memref<8x128xf32, #tpu.memory_space<vmem>>, vector<8x1xf32>,
    %926 = vector.extract_strided_slice %53 {offsets = [8, 0], sizes = [8, 128], strides = [1, 1]} : vector<64x128xf32> to vector<8x128xf32>
    %927 = vector.extract_strided_slice %62 {offsets = [8, 0], sizes = [8, 128], strides = [1, 1]} : vector<64x128xf32> to vector<8x128xf32>
    %928 = vector.extract_strided_slice %65 {offsets = [8, 0], sizes = [8, 128], strides = [1, 1]} : vector<64x128xf32> to vector<8x128xf32>
    %929 = vector.extract_strided_slice %53 {offsets = [16, 0], sizes = [8, 128], strides = [1, 1]} : vector<64x128xf32> to vector<8x128xf32>
    %930 = vector.extract_strided_slice %62 {offsets = [16, 0], sizes = [8, 128], strides = [1, 1]} : vector<64x128xf32> to vector<8x128xf32>
    %931 = vector.extract_strided_slice %65 {offsets = [16, 0], sizes = [8, 128], strides = [1, 1]} : vector<64x128xf32> to vector<8x128xf32>
    %cst_325 = arith.constant 1.000000e+00 : f32
    %932 = vector.broadcast %cst_325 : f32 to vector<8x128xf32>
    %cst_326 = arith.constant 0.000000e+00 : f32
    %933 = vector.broadcast %cst_326 : f32 to vector<8x128xf32>
    %934 = arith.mulf %932, %927 : vector<8x128xf32>
    %935 = arith.mulf %933, %928 : vector<8x128xf32>
    %936 = arith.subf %934, %935 : vector<8x128xf32>
    %937 = arith.mulf %932, %928 : vector<8x128xf32>
    %938 = arith.mulf %933, %927 : vector<8x128xf32>
    %939 = arith.addf %937, %938 : vector<8x128xf32>
    %cst_327 = arith.constant 0.000000e+00 : f32
    %940 = vector.broadcast %cst_327 : f32 to vector<8x128xf32>
    %941 = arith.subf %940, %931 : vector<8x128xf32>
    %cst_328 = arith.constant 1.000000e+00 : f32
    %942 = vector.broadcast %cst_328 : f32 to vector<8x128xf32>
    %cst_329 = arith.constant 0.000000e+00 : f32
    %943 = vector.broadcast %cst_329 : f32 to vector<8x128xf32>
    %944 = arith.mulf %942, %930 : vector<8x128xf32>
    %945 = arith.mulf %943, %941 : vector<8x128xf32>
    %946 = arith.subf %944, %945 : vector<8x128xf32>
    %947 = arith.mulf %942, %941 : vector<8x128xf32>
    %948 = arith.mulf %943, %930 : vector<8x128xf32>
    %949 = arith.addf %947, %948 : vector<8x128xf32>
    %950 = arith.mulf %926, %929 : vector<8x128xf32>
    %951 = arith.mulf %936, %946 : vector<8x128xf32>
    %952 = arith.mulf %939, %949 : vector<8x128xf32>
    %953 = arith.subf %951, %952 : vector<8x128xf32>
    %954 = arith.mulf %950, %953 : vector<8x128xf32>
    %955 = arith.mulf %936, %949 : vector<8x128xf32>
    %956 = arith.mulf %939, %946 : vector<8x128xf32>
    %957 = arith.addf %955, %956 : vector<8x128xf32>
    %958 = arith.mulf %950, %957 : vector<8x128xf32>
    %cst_330 = arith.constant dense<0.000000e+00> : vector<8xf32>
    %959 = vector.multi_reduction <add>, %954, %cst_330 [1] : vector<8x128xf32> to vector<8xf32>
    %960 = vector.shape_cast %959 : vector<8xf32> to vector<8x1xf32>
    %cst_331 = arith.constant 6.250000e-02 : f32
    %961 = vector.broadcast %cst_331 : f32 to vector<8x1xf32>
    %962 = arith.mulf %960, %961 : vector<8x1xf32>
    %c0_332 = arith.constant 0 : index
    %c25 = arith.constant 25 : index
    %963 = vector.load %arg8[%c0_332, %c25] : memref<8x128xf32, #tpu.memory_space<vmem>>, vector<8x1xf32>
    tpu.vector_store %arg8[%c0_332, %c25], %962 {strides = array<i32>} : memref<8x128xf32, #tpu.memory_space<vmem>>, vector<8x1xf32>,
    %cst_333 = arith.constant dense<0.000000e+00> : vector<8xf32>
    %964 = vector.multi_reduction <add>, %958, %cst_333 [1] : vector<8x128xf32> to vector<8xf32>
    %965 = vector.shape_cast %964 : vector<8xf32> to vector<8x1xf32>
    %cst_334 = arith.constant 6.250000e-02 : f32
    %966 = vector.broadcast %cst_334 : f32 to vector<8x1xf32>
    %967 = arith.mulf %965, %966 : vector<8x1xf32>
    %c0_335 = arith.constant 0 : index
    %c25_336 = arith.constant 25 : index
    %968 = vector.load %arg9[%c0_335, %c25_336] : memref<8x128xf32, #tpu.memory_space<vmem>>, vector<8x1xf32>
    tpu.vector_store %arg9[%c0_335, %c25_336], %967 {strides = array<i32>} : memref<8x128xf32, #tpu.memory_space<vmem>>, vector<8x1xf32>,
    %969 = vector.extract_strided_slice %53 {offsets = [8, 0], sizes = [8, 128], strides = [1, 1]} : vector<64x128xf32> to vector<8x128xf32>
    %970 = vector.extract_strided_slice %62 {offsets = [8, 0], sizes = [8, 128], strides = [1, 1]} : vector<64x128xf32> to vector<8x128xf32>
    %971 = vector.extract_strided_slice %65 {offsets = [8, 0], sizes = [8, 128], strides = [1, 1]} : vector<64x128xf32> to vector<8x128xf32>
    %972 = vector.extract_strided_slice %53 {offsets = [16, 0], sizes = [8, 128], strides = [1, 1]} : vector<64x128xf32> to vector<8x128xf32>
    %973 = vector.extract_strided_slice %62 {offsets = [16, 0], sizes = [8, 128], strides = [1, 1]} : vector<64x128xf32> to vector<8x128xf32>
    %974 = vector.extract_strided_slice %65 {offsets = [16, 0], sizes = [8, 128], strides = [1, 1]} : vector<64x128xf32> to vector<8x128xf32>
    %cst_337 = arith.constant 1.000000e+00 : f32
    %975 = vector.broadcast %cst_337 : f32 to vector<8x128xf32>
    %cst_338 = arith.constant 0.000000e+00 : f32
    %976 = vector.broadcast %cst_338 : f32 to vector<8x128xf32>
    %977 = arith.mulf %975, %970 : vector<8x128xf32>
    %978 = arith.mulf %976, %971 : vector<8x128xf32>
    %979 = arith.subf %977, %978 : vector<8x128xf32>
    %980 = arith.mulf %975, %971 : vector<8x128xf32>
    %981 = arith.mulf %976, %970 : vector<8x128xf32>
    %982 = arith.addf %980, %981 : vector<8x128xf32>
    %cst_339 = arith.constant 0.000000e+00 : f32
    %983 = vector.broadcast %cst_339 : f32 to vector<8x128xf32>
    %984 = arith.subf %983, %974 : vector<8x128xf32>
    %cst_340 = arith.constant 1.000000e+00 : f32
    %985 = vector.broadcast %cst_340 : f32 to vector<8x128xf32>
    %cst_341 = arith.constant 0.000000e+00 : f32
    %986 = vector.broadcast %cst_341 : f32 to vector<8x128xf32>
    %987 = arith.mulf %985, %973 : vector<8x128xf32>
    %988 = arith.mulf %986, %984 : vector<8x128xf32>
    %989 = arith.subf %987, %988 : vector<8x128xf32>
    %990 = arith.mulf %985, %984 : vector<8x128xf32>
    %991 = arith.mulf %986, %973 : vector<8x128xf32>
    %992 = arith.addf %990, %991 : vector<8x128xf32>
    %993 = arith.mulf %989, %973 : vector<8x128xf32>
    %994 = arith.mulf %992, %984 : vector<8x128xf32>
    %995 = arith.subf %993, %994 : vector<8x128xf32>
    %996 = arith.mulf %989, %984 : vector<8x128xf32>
    %997 = arith.mulf %992, %973 : vector<8x128xf32>
    %998 = arith.addf %996, %997 : vector<8x128xf32>
    %999 = arith.mulf %969, %972 : vector<8x128xf32>
    %1000 = arith.mulf %979, %995 : vector<8x128xf32>
    %1001 = arith.mulf %982, %998 : vector<8x128xf32>
    %1002 = arith.subf %1000, %1001 : vector<8x128xf32>
    %1003 = arith.mulf %999, %1002 : vector<8x128xf32>
    %1004 = arith.mulf %979, %998 : vector<8x128xf32>
    %1005 = arith.mulf %982, %995 : vector<8x128xf32>
    %1006 = arith.addf %1004, %1005 : vector<8x128xf32>
    %1007 = arith.mulf %999, %1006 : vector<8x128xf32>
    %cst_342 = arith.constant dense<0.000000e+00> : vector<8xf32>
    %1008 = vector.multi_reduction <add>, %1003, %cst_342 [1] : vector<8x128xf32> to vector<8xf32>
    %1009 = vector.shape_cast %1008 : vector<8xf32> to vector<8x1xf32>
    %cst_343 = arith.constant 6.250000e-02 : f32
    %1010 = vector.broadcast %cst_343 : f32 to vector<8x1xf32>
    %1011 = arith.mulf %1009, %1010 : vector<8x1xf32>
    %c0_344 = arith.constant 0 : index
    %c26 = arith.constant 26 : index
    %1012 = vector.load %arg8[%c0_344, %c26] : memref<8x128xf32, #tpu.memory_space<vmem>>, vector<8x1xf32>
    tpu.vector_store %arg8[%c0_344, %c26], %1011 {strides = array<i32>} : memref<8x128xf32, #tpu.memory_space<vmem>>, vector<8x1xf32>,
    %cst_345 = arith.constant dense<0.000000e+00> : vector<8xf32>
    %1013 = vector.multi_reduction <add>, %1007, %cst_345 [1] : vector<8x128xf32> to vector<8xf32>
    %1014 = vector.shape_cast %1013 : vector<8xf32> to vector<8x1xf32>
    %cst_346 = arith.constant 6.250000e-02 : f32
    %1015 = vector.broadcast %cst_346 : f32 to vector<8x1xf32>
    %1016 = arith.mulf %1014, %1015 : vector<8x1xf32>
    %c0_347 = arith.constant 0 : index
    %c26_348 = arith.constant 26 : index
    %1017 = vector.load %arg9[%c0_347, %c26_348] : memref<8x128xf32, #tpu.memory_space<vmem>>, vector<8x1xf32>
    tpu.vector_store %arg9[%c0_347, %c26_348], %1016 {strides = array<i32>} : memref<8x128xf32, #tpu.memory_space<vmem>>, vector<8x1xf32>,
    %1018 = vector.extract_strided_slice %53 {offsets = [8, 0], sizes = [8, 128], strides = [1, 1]} : vector<64x128xf32> to vector<8x128xf32>
    %1019 = vector.extract_strided_slice %62 {offsets = [8, 0], sizes = [8, 128], strides = [1, 1]} : vector<64x128xf32> to vector<8x128xf32>
    %1020 = vector.extract_strided_slice %65 {offsets = [8, 0], sizes = [8, 128], strides = [1, 1]} : vector<64x128xf32> to vector<8x128xf32>
    %1021 = vector.extract_strided_slice %53 {offsets = [16, 0], sizes = [8, 128], strides = [1, 1]} : vector<64x128xf32> to vector<8x128xf32>
    %1022 = vector.extract_strided_slice %62 {offsets = [16, 0], sizes = [8, 128], strides = [1, 1]} : vector<64x128xf32> to vector<8x128xf32>
    %1023 = vector.extract_strided_slice %65 {offsets = [16, 0], sizes = [8, 128], strides = [1, 1]} : vector<64x128xf32> to vector<8x128xf32>
    %cst_349 = arith.constant 1.000000e+00 : f32
    %1024 = vector.broadcast %cst_349 : f32 to vector<8x128xf32>
    %cst_350 = arith.constant 0.000000e+00 : f32
    %1025 = vector.broadcast %cst_350 : f32 to vector<8x128xf32>
    %1026 = arith.mulf %1024, %1019 : vector<8x128xf32>
    %1027 = arith.mulf %1025, %1020 : vector<8x128xf32>
    %1028 = arith.subf %1026, %1027 : vector<8x128xf32>
    %1029 = arith.mulf %1024, %1020 : vector<8x128xf32>
    %1030 = arith.mulf %1025, %1019 : vector<8x128xf32>
    %1031 = arith.addf %1029, %1030 : vector<8x128xf32>
    %cst_351 = arith.constant 0.000000e+00 : f32
    %1032 = vector.broadcast %cst_351 : f32 to vector<8x128xf32>
    %1033 = arith.subf %1032, %1023 : vector<8x128xf32>
    %cst_352 = arith.constant 1.000000e+00 : f32
    %1034 = vector.broadcast %cst_352 : f32 to vector<8x128xf32>
    %cst_353 = arith.constant 0.000000e+00 : f32
    %1035 = vector.broadcast %cst_353 : f32 to vector<8x128xf32>
    %1036 = arith.mulf %1034, %1022 : vector<8x128xf32>
    %1037 = arith.mulf %1035, %1033 : vector<8x128xf32>
    %1038 = arith.subf %1036, %1037 : vector<8x128xf32>
    %1039 = arith.mulf %1034, %1033 : vector<8x128xf32>
    %1040 = arith.mulf %1035, %1022 : vector<8x128xf32>
    %1041 = arith.addf %1039, %1040 : vector<8x128xf32>
    %1042 = arith.mulf %1038, %1022 : vector<8x128xf32>
    %1043 = arith.mulf %1041, %1033 : vector<8x128xf32>
    %1044 = arith.subf %1042, %1043 : vector<8x128xf32>
    %1045 = arith.mulf %1038, %1033 : vector<8x128xf32>
    %1046 = arith.mulf %1041, %1022 : vector<8x128xf32>
    %1047 = arith.addf %1045, %1046 : vector<8x128xf32>
    %1048 = arith.mulf %1044, %1022 : vector<8x128xf32>
    %1049 = arith.mulf %1047, %1033 : vector<8x128xf32>
    %1050 = arith.subf %1048, %1049 : vector<8x128xf32>
    %1051 = arith.mulf %1044, %1033 : vector<8x128xf32>
    %1052 = arith.mulf %1047, %1022 : vector<8x128xf32>
    %1053 = arith.addf %1051, %1052 : vector<8x128xf32>
    %1054 = arith.mulf %1018, %1021 : vector<8x128xf32>
    %1055 = arith.mulf %1028, %1050 : vector<8x128xf32>
    %1056 = arith.mulf %1031, %1053 : vector<8x128xf32>
    %1057 = arith.subf %1055, %1056 : vector<8x128xf32>
    %1058 = arith.mulf %1054, %1057 : vector<8x128xf32>
    %1059 = arith.mulf %1028, %1053 : vector<8x128xf32>
    %1060 = arith.mulf %1031, %1050 : vector<8x128xf32>
    %1061 = arith.addf %1059, %1060 : vector<8x128xf32>
    %1062 = arith.mulf %1054, %1061 : vector<8x128xf32>
    %cst_354 = arith.constant dense<0.000000e+00> : vector<8xf32>
    %1063 = vector.multi_reduction <add>, %1058, %cst_354 [1] : vector<8x128xf32> to vector<8xf32>
    %1064 = vector.shape_cast %1063 : vector<8xf32> to vector<8x1xf32>
    %cst_355 = arith.constant 6.250000e-02 : f32
    %1065 = vector.broadcast %cst_355 : f32 to vector<8x1xf32>
    %1066 = arith.mulf %1064, %1065 : vector<8x1xf32>
    %c0_356 = arith.constant 0 : index
    %c27 = arith.constant 27 : index
    %1067 = vector.load %arg8[%c0_356, %c27] : memref<8x128xf32, #tpu.memory_space<vmem>>, vector<8x1xf32>
    tpu.vector_store %arg8[%c0_356, %c27], %1066 {strides = array<i32>} : memref<8x128xf32, #tpu.memory_space<vmem>>, vector<8x1xf32>,
    %cst_357 = arith.constant dense<0.000000e+00> : vector<8xf32>
    %1068 = vector.multi_reduction <add>, %1062, %cst_357 [1] : vector<8x128xf32> to vector<8xf32>
    %1069 = vector.shape_cast %1068 : vector<8xf32> to vector<8x1xf32>
    %cst_358 = arith.constant 6.250000e-02 : f32
    %1070 = vector.broadcast %cst_358 : f32 to vector<8x1xf32>
    %1071 = arith.mulf %1069, %1070 : vector<8x1xf32>
    %c0_359 = arith.constant 0 : index
    %c27_360 = arith.constant 27 : index
    %1072 = vector.load %arg9[%c0_359, %c27_360] : memref<8x128xf32, #tpu.memory_space<vmem>>, vector<8x1xf32>
    tpu.vector_store %arg9[%c0_359, %c27_360], %1071 {strides = array<i32>} : memref<8x128xf32, #tpu.memory_space<vmem>>, vector<8x1xf32>,
    %1073 = vector.extract_strided_slice %53 {offsets = [16, 0], sizes = [8, 128], strides = [1, 1]} : vector<64x128xf32> to vector<8x128xf32>
    %1074 = vector.extract_strided_slice %62 {offsets = [16, 0], sizes = [8, 128], strides = [1, 1]} : vector<64x128xf32> to vector<8x128xf32>
    %1075 = vector.extract_strided_slice %65 {offsets = [16, 0], sizes = [8, 128], strides = [1, 1]} : vector<64x128xf32> to vector<8x128xf32>
    %1076 = vector.extract_strided_slice %53 {offsets = [24, 0], sizes = [8, 128], strides = [1, 1]} : vector<64x128xf32> to vector<8x128xf32>
    %1077 = vector.extract_strided_slice %62 {offsets = [24, 0], sizes = [8, 128], strides = [1, 1]} : vector<64x128xf32> to vector<8x128xf32>
    %1078 = vector.extract_strided_slice %65 {offsets = [24, 0], sizes = [8, 128], strides = [1, 1]} : vector<64x128xf32> to vector<8x128xf32>
    %cst_361 = arith.constant 1.000000e+00 : f32
    %1079 = vector.broadcast %cst_361 : f32 to vector<8x128xf32>
    %cst_362 = arith.constant 0.000000e+00 : f32
    %1080 = vector.broadcast %cst_362 : f32 to vector<8x128xf32>
    %1081 = arith.mulf %1079, %1074 : vector<8x128xf32>
    %1082 = arith.mulf %1080, %1075 : vector<8x128xf32>
    %1083 = arith.subf %1081, %1082 : vector<8x128xf32>
    %1084 = arith.mulf %1079, %1075 : vector<8x128xf32>
    %1085 = arith.mulf %1080, %1074 : vector<8x128xf32>
    %1086 = arith.addf %1084, %1085 : vector<8x128xf32>
    %cst_363 = arith.constant 0.000000e+00 : f32
    %1087 = vector.broadcast %cst_363 : f32 to vector<8x128xf32>
    %1088 = arith.subf %1087, %1078 : vector<8x128xf32>
    %cst_364 = arith.constant 1.000000e+00 : f32
    %1089 = vector.broadcast %cst_364 : f32 to vector<8x128xf32>
    %cst_365 = arith.constant 0.000000e+00 : f32
    %1090 = vector.broadcast %cst_365 : f32 to vector<8x128xf32>
    %1091 = arith.mulf %1089, %1077 : vector<8x128xf32>
    %1092 = arith.mulf %1090, %1088 : vector<8x128xf32>
    %1093 = arith.subf %1091, %1092 : vector<8x128xf32>
    %1094 = arith.mulf %1089, %1088 : vector<8x128xf32>
    %1095 = arith.mulf %1090, %1077 : vector<8x128xf32>
    %1096 = arith.addf %1094, %1095 : vector<8x128xf32>
    %1097 = arith.mulf %1073, %1076 : vector<8x128xf32>
    %1098 = arith.mulf %1083, %1093 : vector<8x128xf32>
    %1099 = arith.mulf %1086, %1096 : vector<8x128xf32>
    %1100 = arith.subf %1098, %1099 : vector<8x128xf32>
    %1101 = arith.mulf %1097, %1100 : vector<8x128xf32>
    %1102 = arith.mulf %1083, %1096 : vector<8x128xf32>
    %1103 = arith.mulf %1086, %1093 : vector<8x128xf32>
    %1104 = arith.addf %1102, %1103 : vector<8x128xf32>
    %1105 = arith.mulf %1097, %1104 : vector<8x128xf32>
    %cst_366 = arith.constant dense<0.000000e+00> : vector<8xf32>
    %1106 = vector.multi_reduction <add>, %1101, %cst_366 [1] : vector<8x128xf32> to vector<8xf32>
    %1107 = vector.shape_cast %1106 : vector<8xf32> to vector<8x1xf32>
    %cst_367 = arith.constant 6.250000e-02 : f32
    %1108 = vector.broadcast %cst_367 : f32 to vector<8x1xf32>
    %1109 = arith.mulf %1107, %1108 : vector<8x1xf32>
    %c0_368 = arith.constant 0 : index
    %c28 = arith.constant 28 : index
    %1110 = vector.load %arg8[%c0_368, %c28] : memref<8x128xf32, #tpu.memory_space<vmem>>, vector<8x1xf32>
    tpu.vector_store %arg8[%c0_368, %c28], %1109 {strides = array<i32>} : memref<8x128xf32, #tpu.memory_space<vmem>>, vector<8x1xf32>,
    %cst_369 = arith.constant dense<0.000000e+00> : vector<8xf32>
    %1111 = vector.multi_reduction <add>, %1105, %cst_369 [1] : vector<8x128xf32> to vector<8xf32>
    %1112 = vector.shape_cast %1111 : vector<8xf32> to vector<8x1xf32>
    %cst_370 = arith.constant 6.250000e-02 : f32
    %1113 = vector.broadcast %cst_370 : f32 to vector<8x1xf32>
    %1114 = arith.mulf %1112, %1113 : vector<8x1xf32>
    %c0_371 = arith.constant 0 : index
    %c28_372 = arith.constant 28 : index
    %1115 = vector.load %arg9[%c0_371, %c28_372] : memref<8x128xf32, #tpu.memory_space<vmem>>, vector<8x1xf32>
    tpu.vector_store %arg9[%c0_371, %c28_372], %1114 {strides = array<i32>} : memref<8x128xf32, #tpu.memory_space<vmem>>, vector<8x1xf32>,
    %1116 = vector.extract_strided_slice %53 {offsets = [16, 0], sizes = [8, 128], strides = [1, 1]} : vector<64x128xf32> to vector<8x128xf32>
    %1117 = vector.extract_strided_slice %62 {offsets = [16, 0], sizes = [8, 128], strides = [1, 1]} : vector<64x128xf32> to vector<8x128xf32>
    %1118 = vector.extract_strided_slice %65 {offsets = [16, 0], sizes = [8, 128], strides = [1, 1]} : vector<64x128xf32> to vector<8x128xf32>
    %1119 = vector.extract_strided_slice %53 {offsets = [24, 0], sizes = [8, 128], strides = [1, 1]} : vector<64x128xf32> to vector<8x128xf32>
    %1120 = vector.extract_strided_slice %62 {offsets = [24, 0], sizes = [8, 128], strides = [1, 1]} : vector<64x128xf32> to vector<8x128xf32>
    %1121 = vector.extract_strided_slice %65 {offsets = [24, 0], sizes = [8, 128], strides = [1, 1]} : vector<64x128xf32> to vector<8x128xf32>
    %cst_373 = arith.constant 1.000000e+00 : f32
    %1122 = vector.broadcast %cst_373 : f32 to vector<8x128xf32>
    %cst_374 = arith.constant 0.000000e+00 : f32
    %1123 = vector.broadcast %cst_374 : f32 to vector<8x128xf32>
    %1124 = arith.mulf %1122, %1117 : vector<8x128xf32>
    %1125 = arith.mulf %1123, %1118 : vector<8x128xf32>
    %1126 = arith.subf %1124, %1125 : vector<8x128xf32>
    %1127 = arith.mulf %1122, %1118 : vector<8x128xf32>
    %1128 = arith.mulf %1123, %1117 : vector<8x128xf32>
    %1129 = arith.addf %1127, %1128 : vector<8x128xf32>
    %cst_375 = arith.constant 0.000000e+00 : f32
    %1130 = vector.broadcast %cst_375 : f32 to vector<8x128xf32>
    %1131 = arith.subf %1130, %1121 : vector<8x128xf32>
    %cst_376 = arith.constant 1.000000e+00 : f32
    %1132 = vector.broadcast %cst_376 : f32 to vector<8x128xf32>
    %cst_377 = arith.constant 0.000000e+00 : f32
    %1133 = vector.broadcast %cst_377 : f32 to vector<8x128xf32>
    %1134 = arith.mulf %1132, %1120 : vector<8x128xf32>
    %1135 = arith.mulf %1133, %1131 : vector<8x128xf32>
    %1136 = arith.subf %1134, %1135 : vector<8x128xf32>
    %1137 = arith.mulf %1132, %1131 : vector<8x128xf32>
    %1138 = arith.mulf %1133, %1120 : vector<8x128xf32>
    %1139 = arith.addf %1137, %1138 : vector<8x128xf32>
    %1140 = arith.mulf %1136, %1120 : vector<8x128xf32>
    %1141 = arith.mulf %1139, %1131 : vector<8x128xf32>
    %1142 = arith.subf %1140, %1141 : vector<8x128xf32>
    %1143 = arith.mulf %1136, %1131 : vector<8x128xf32>
    %1144 = arith.mulf %1139, %1120 : vector<8x128xf32>
    %1145 = arith.addf %1143, %1144 : vector<8x128xf32>
    %1146 = arith.mulf %1116, %1119 : vector<8x128xf32>
    %1147 = arith.mulf %1126, %1142 : vector<8x128xf32>
    %1148 = arith.mulf %1129, %1145 : vector<8x128xf32>
    %1149 = arith.subf %1147, %1148 : vector<8x128xf32>
    %1150 = arith.mulf %1146, %1149 : vector<8x128xf32>
    %1151 = arith.mulf %1126, %1145 : vector<8x128xf32>
    %1152 = arith.mulf %1129, %1142 : vector<8x128xf32>
    %1153 = arith.addf %1151, %1152 : vector<8x128xf32>
    %1154 = arith.mulf %1146, %1153 : vector<8x128xf32>
    %cst_378 = arith.constant dense<0.000000e+00> : vector<8xf32>
    %1155 = vector.multi_reduction <add>, %1150, %cst_378 [1] : vector<8x128xf32> to vector<8xf32>
    %1156 = vector.shape_cast %1155 : vector<8xf32> to vector<8x1xf32>
    %cst_379 = arith.constant 6.250000e-02 : f32
    %1157 = vector.broadcast %cst_379 : f32 to vector<8x1xf32>
    %1158 = arith.mulf %1156, %1157 : vector<8x1xf32>
    %c0_380 = arith.constant 0 : index
    %c29 = arith.constant 29 : index
    %1159 = vector.load %arg8[%c0_380, %c29] : memref<8x128xf32, #tpu.memory_space<vmem>>, vector<8x1xf32>
    tpu.vector_store %arg8[%c0_380, %c29], %1158 {strides = array<i32>} : memref<8x128xf32, #tpu.memory_space<vmem>>, vector<8x1xf32>,
    %cst_381 = arith.constant dense<0.000000e+00> : vector<8xf32>
    %1160 = vector.multi_reduction <add>, %1154, %cst_381 [1] : vector<8x128xf32> to vector<8xf32>
    %1161 = vector.shape_cast %1160 : vector<8xf32> to vector<8x1xf32>
    %cst_382 = arith.constant 6.250000e-02 : f32
    %1162 = vector.broadcast %cst_382 : f32 to vector<8x1xf32>
    %1163 = arith.mulf %1161, %1162 : vector<8x1xf32>
    %c0_383 = arith.constant 0 : index
    %c29_384 = arith.constant 29 : index
    %1164 = vector.load %arg9[%c0_383, %c29_384] : memref<8x128xf32, #tpu.memory_space<vmem>>, vector<8x1xf32>
    tpu.vector_store %arg9[%c0_383, %c29_384], %1163 {strides = array<i32>} : memref<8x128xf32, #tpu.memory_space<vmem>>, vector<8x1xf32>,
    %1165 = vector.extract_strided_slice %53 {offsets = [16, 0], sizes = [8, 128], strides = [1, 1]} : vector<64x128xf32> to vector<8x128xf32>
    %1166 = vector.extract_strided_slice %62 {offsets = [16, 0], sizes = [8, 128], strides = [1, 1]} : vector<64x128xf32> to vector<8x128xf32>
    %1167 = vector.extract_strided_slice %65 {offsets = [16, 0], sizes = [8, 128], strides = [1, 1]} : vector<64x128xf32> to vector<8x128xf32>
    %1168 = vector.extract_strided_slice %53 {offsets = [24, 0], sizes = [8, 128], strides = [1, 1]} : vector<64x128xf32> to vector<8x128xf32>
    %1169 = vector.extract_strided_slice %62 {offsets = [24, 0], sizes = [8, 128], strides = [1, 1]} : vector<64x128xf32> to vector<8x128xf32>
    %1170 = vector.extract_strided_slice %65 {offsets = [24, 0], sizes = [8, 128], strides = [1, 1]} : vector<64x128xf32> to vector<8x128xf32>
    %cst_385 = arith.constant 1.000000e+00 : f32
    %1171 = vector.broadcast %cst_385 : f32 to vector<8x128xf32>
    %cst_386 = arith.constant 0.000000e+00 : f32
    %1172 = vector.broadcast %cst_386 : f32 to vector<8x128xf32>
    %1173 = arith.mulf %1171, %1166 : vector<8x128xf32>
    %1174 = arith.mulf %1172, %1167 : vector<8x128xf32>
    %1175 = arith.subf %1173, %1174 : vector<8x128xf32>
    %1176 = arith.mulf %1171, %1167 : vector<8x128xf32>
    %1177 = arith.mulf %1172, %1166 : vector<8x128xf32>
    %1178 = arith.addf %1176, %1177 : vector<8x128xf32>
    %cst_387 = arith.constant 0.000000e+00 : f32
    %1179 = vector.broadcast %cst_387 : f32 to vector<8x128xf32>
    %1180 = arith.subf %1179, %1170 : vector<8x128xf32>
    %cst_388 = arith.constant 1.000000e+00 : f32
    %1181 = vector.broadcast %cst_388 : f32 to vector<8x128xf32>
    %cst_389 = arith.constant 0.000000e+00 : f32
    %1182 = vector.broadcast %cst_389 : f32 to vector<8x128xf32>
    %1183 = arith.mulf %1181, %1169 : vector<8x128xf32>
    %1184 = arith.mulf %1182, %1180 : vector<8x128xf32>
    %1185 = arith.subf %1183, %1184 : vector<8x128xf32>
    %1186 = arith.mulf %1181, %1180 : vector<8x128xf32>
    %1187 = arith.mulf %1182, %1169 : vector<8x128xf32>
    %1188 = arith.addf %1186, %1187 : vector<8x128xf32>
    %1189 = arith.mulf %1185, %1169 : vector<8x128xf32>
    %1190 = arith.mulf %1188, %1180 : vector<8x128xf32>
    %1191 = arith.subf %1189, %1190 : vector<8x128xf32>
    %1192 = arith.mulf %1185, %1180 : vector<8x128xf32>
    %1193 = arith.mulf %1188, %1169 : vector<8x128xf32>
    %1194 = arith.addf %1192, %1193 : vector<8x128xf32>
    %1195 = arith.mulf %1191, %1169 : vector<8x128xf32>
    %1196 = arith.mulf %1194, %1180 : vector<8x128xf32>
    %1197 = arith.subf %1195, %1196 : vector<8x128xf32>
    %1198 = arith.mulf %1191, %1180 : vector<8x128xf32>
    %1199 = arith.mulf %1194, %1169 : vector<8x128xf32>
    %1200 = arith.addf %1198, %1199 : vector<8x128xf32>
    %1201 = arith.mulf %1165, %1168 : vector<8x128xf32>
    %1202 = arith.mulf %1175, %1197 : vector<8x128xf32>
    %1203 = arith.mulf %1178, %1200 : vector<8x128xf32>
    %1204 = arith.subf %1202, %1203 : vector<8x128xf32>
    %1205 = arith.mulf %1201, %1204 : vector<8x128xf32>
    %1206 = arith.mulf %1175, %1200 : vector<8x128xf32>
    %1207 = arith.mulf %1178, %1197 : vector<8x128xf32>
    %1208 = arith.addf %1206, %1207 : vector<8x128xf32>
    %1209 = arith.mulf %1201, %1208 : vector<8x128xf32>
    %cst_390 = arith.constant dense<0.000000e+00> : vector<8xf32>
    %1210 = vector.multi_reduction <add>, %1205, %cst_390 [1] : vector<8x128xf32> to vector<8xf32>
    %1211 = vector.shape_cast %1210 : vector<8xf32> to vector<8x1xf32>
    %cst_391 = arith.constant 6.250000e-02 : f32
    %1212 = vector.broadcast %cst_391 : f32 to vector<8x1xf32>
    %1213 = arith.mulf %1211, %1212 : vector<8x1xf32>
    %c0_392 = arith.constant 0 : index
    %c30 = arith.constant 30 : index
    %1214 = vector.load %arg8[%c0_392, %c30] : memref<8x128xf32, #tpu.memory_space<vmem>>, vector<8x1xf32>
    tpu.vector_store %arg8[%c0_392, %c30], %1213 {strides = array<i32>} : memref<8x128xf32, #tpu.memory_space<vmem>>, vector<8x1xf32>,
    %cst_393 = arith.constant dense<0.000000e+00> : vector<8xf32>
    %1215 = vector.multi_reduction <add>, %1209, %cst_393 [1] : vector<8x128xf32> to vector<8xf32>
    %1216 = vector.shape_cast %1215 : vector<8xf32> to vector<8x1xf32>
    %cst_394 = arith.constant 6.250000e-02 : f32
    %1217 = vector.broadcast %cst_394 : f32 to vector<8x1xf32>
    %1218 = arith.mulf %1216, %1217 : vector<8x1xf32>
    %c0_395 = arith.constant 0 : index
    %c30_396 = arith.constant 30 : index
    %1219 = vector.load %arg9[%c0_395, %c30_396] : memref<8x128xf32, #tpu.memory_space<vmem>>, vector<8x1xf32>
    tpu.vector_store %arg9[%c0_395, %c30_396], %1218 {strides = array<i32>} : memref<8x128xf32, #tpu.memory_space<vmem>>, vector<8x1xf32>,
    %1220 = vector.extract_strided_slice %53 {offsets = [24, 0], sizes = [8, 128], strides = [1, 1]} : vector<64x128xf32> to vector<8x128xf32>
    %1221 = vector.extract_strided_slice %62 {offsets = [24, 0], sizes = [8, 128], strides = [1, 1]} : vector<64x128xf32> to vector<8x128xf32>
    %1222 = vector.extract_strided_slice %65 {offsets = [24, 0], sizes = [8, 128], strides = [1, 1]} : vector<64x128xf32> to vector<8x128xf32>
    %1223 = vector.extract_strided_slice %53 {offsets = [32, 0], sizes = [8, 128], strides = [1, 1]} : vector<64x128xf32> to vector<8x128xf32>
    %1224 = vector.extract_strided_slice %62 {offsets = [32, 0], sizes = [8, 128], strides = [1, 1]} : vector<64x128xf32> to vector<8x128xf32>
    %1225 = vector.extract_strided_slice %65 {offsets = [32, 0], sizes = [8, 128], strides = [1, 1]} : vector<64x128xf32> to vector<8x128xf32>
    %cst_397 = arith.constant 1.000000e+00 : f32
    %1226 = vector.broadcast %cst_397 : f32 to vector<8x128xf32>
    %cst_398 = arith.constant 0.000000e+00 : f32
    %1227 = vector.broadcast %cst_398 : f32 to vector<8x128xf32>
    %1228 = arith.mulf %1226, %1221 : vector<8x128xf32>
    %1229 = arith.mulf %1227, %1222 : vector<8x128xf32>
    %1230 = arith.subf %1228, %1229 : vector<8x128xf32>
    %1231 = arith.mulf %1226, %1222 : vector<8x128xf32>
    %1232 = arith.mulf %1227, %1221 : vector<8x128xf32>
    %1233 = arith.addf %1231, %1232 : vector<8x128xf32>
    %cst_399 = arith.constant 0.000000e+00 : f32
    %1234 = vector.broadcast %cst_399 : f32 to vector<8x128xf32>
    %1235 = arith.subf %1234, %1225 : vector<8x128xf32>
    %cst_400 = arith.constant 1.000000e+00 : f32
    %1236 = vector.broadcast %cst_400 : f32 to vector<8x128xf32>
    %cst_401 = arith.constant 0.000000e+00 : f32
    %1237 = vector.broadcast %cst_401 : f32 to vector<8x128xf32>
    %1238 = arith.mulf %1236, %1224 : vector<8x128xf32>
    %1239 = arith.mulf %1237, %1235 : vector<8x128xf32>
    %1240 = arith.subf %1238, %1239 : vector<8x128xf32>
    %1241 = arith.mulf %1236, %1235 : vector<8x128xf32>
    %1242 = arith.mulf %1237, %1224 : vector<8x128xf32>
    %1243 = arith.addf %1241, %1242 : vector<8x128xf32>
    %1244 = arith.mulf %1220, %1223 : vector<8x128xf32>
    %1245 = arith.mulf %1230, %1240 : vector<8x128xf32>
    %1246 = arith.mulf %1233, %1243 : vector<8x128xf32>
    %1247 = arith.subf %1245, %1246 : vector<8x128xf32>
    %1248 = arith.mulf %1244, %1247 : vector<8x128xf32>
    %1249 = arith.mulf %1230, %1243 : vector<8x128xf32>
    %1250 = arith.mulf %1233, %1240 : vector<8x128xf32>
    %1251 = arith.addf %1249, %1250 : vector<8x128xf32>
    %1252 = arith.mulf %1244, %1251 : vector<8x128xf32>
    %cst_402 = arith.constant dense<0.000000e+00> : vector<8xf32>
    %1253 = vector.multi_reduction <add>, %1248, %cst_402 [1] : vector<8x128xf32> to vector<8xf32>
    %1254 = vector.shape_cast %1253 : vector<8xf32> to vector<8x1xf32>
    %cst_403 = arith.constant 6.250000e-02 : f32
    %1255 = vector.broadcast %cst_403 : f32 to vector<8x1xf32>
    %1256 = arith.mulf %1254, %1255 : vector<8x1xf32>
    %c0_404 = arith.constant 0 : index
    %c31 = arith.constant 31 : index
    %1257 = vector.load %arg8[%c0_404, %c31] : memref<8x128xf32, #tpu.memory_space<vmem>>, vector<8x1xf32>
    tpu.vector_store %arg8[%c0_404, %c31], %1256 {strides = array<i32>} : memref<8x128xf32, #tpu.memory_space<vmem>>, vector<8x1xf32>,
    %cst_405 = arith.constant dense<0.000000e+00> : vector<8xf32>
    %1258 = vector.multi_reduction <add>, %1252, %cst_405 [1] : vector<8x128xf32> to vector<8xf32>
    %1259 = vector.shape_cast %1258 : vector<8xf32> to vector<8x1xf32>
    %cst_406 = arith.constant 6.250000e-02 : f32
    %1260 = vector.broadcast %cst_406 : f32 to vector<8x1xf32>
    %1261 = arith.mulf %1259, %1260 : vector<8x1xf32>
    %c0_407 = arith.constant 0 : index
    %c31_408 = arith.constant 31 : index
    %1262 = vector.load %arg9[%c0_407, %c31_408] : memref<8x128xf32, #tpu.memory_space<vmem>>, vector<8x1xf32>
    tpu.vector_store %arg9[%c0_407, %c31_408], %1261 {strides = array<i32>} : memref<8x128xf32, #tpu.memory_space<vmem>>, vector<8x1xf32>,
    %1263 = vector.extract_strided_slice %53 {offsets = [24, 0], sizes = [8, 128], strides = [1, 1]} : vector<64x128xf32> to vector<8x128xf32>
    %1264 = vector.extract_strided_slice %62 {offsets = [24, 0], sizes = [8, 128], strides = [1, 1]} : vector<64x128xf32> to vector<8x128xf32>
    %1265 = vector.extract_strided_slice %65 {offsets = [24, 0], sizes = [8, 128], strides = [1, 1]} : vector<64x128xf32> to vector<8x128xf32>
    %1266 = vector.extract_strided_slice %53 {offsets = [32, 0], sizes = [8, 128], strides = [1, 1]} : vector<64x128xf32> to vector<8x128xf32>
    %1267 = vector.extract_strided_slice %62 {offsets = [32, 0], sizes = [8, 128], strides = [1, 1]} : vector<64x128xf32> to vector<8x128xf32>
    %1268 = vector.extract_strided_slice %65 {offsets = [32, 0], sizes = [8, 128], strides = [1, 1]} : vector<64x128xf32> to vector<8x128xf32>
    %cst_409 = arith.constant 1.000000e+00 : f32
    %1269 = vector.broadcast %cst_409 : f32 to vector<8x128xf32>
    %cst_410 = arith.constant 0.000000e+00 : f32
    %1270 = vector.broadcast %cst_410 : f32 to vector<8x128xf32>
    %1271 = arith.mulf %1269, %1264 : vector<8x128xf32>
    %1272 = arith.mulf %1270, %1265 : vector<8x128xf32>
    %1273 = arith.subf %1271, %1272 : vector<8x128xf32>
    %1274 = arith.mulf %1269, %1265 : vector<8x128xf32>
    %1275 = arith.mulf %1270, %1264 : vector<8x128xf32>
    %1276 = arith.addf %1274, %1275 : vector<8x128xf32>
    %cst_411 = arith.constant 0.000000e+00 : f32
    %1277 = vector.broadcast %cst_411 : f32 to vector<8x128xf32>
    %1278 = arith.subf %1277, %1268 : vector<8x128xf32>
    %cst_412 = arith.constant 1.000000e+00 : f32
    %1279 = vector.broadcast %cst_412 : f32 to vector<8x128xf32>
    %cst_413 = arith.constant 0.000000e+00 : f32
    %1280 = vector.broadcast %cst_413 : f32 to vector<8x128xf32>
    %1281 = arith.mulf %1279, %1267 : vector<8x128xf32>
    %1282 = arith.mulf %1280, %1278 : vector<8x128xf32>
    %1283 = arith.subf %1281, %1282 : vector<8x128xf32>
    %1284 = arith.mulf %1279, %1278 : vector<8x128xf32>
    %1285 = arith.mulf %1280, %1267 : vector<8x128xf32>
    %1286 = arith.addf %1284, %1285 : vector<8x128xf32>
    %1287 = arith.mulf %1283, %1267 : vector<8x128xf32>
    %1288 = arith.mulf %1286, %1278 : vector<8x128xf32>
    %1289 = arith.subf %1287, %1288 : vector<8x128xf32>
    %1290 = arith.mulf %1283, %1278 : vector<8x128xf32>
    %1291 = arith.mulf %1286, %1267 : vector<8x128xf32>
    %1292 = arith.addf %1290, %1291 : vector<8x128xf32>
    %1293 = arith.mulf %1263, %1266 : vector<8x128xf32>
    %1294 = arith.mulf %1273, %1289 : vector<8x128xf32>
    %1295 = arith.mulf %1276, %1292 : vector<8x128xf32>
    %1296 = arith.subf %1294, %1295 : vector<8x128xf32>
    %1297 = arith.mulf %1293, %1296 : vector<8x128xf32>
    %1298 = arith.mulf %1273, %1292 : vector<8x128xf32>
    %1299 = arith.mulf %1276, %1289 : vector<8x128xf32>
    %1300 = arith.addf %1298, %1299 : vector<8x128xf32>
    %1301 = arith.mulf %1293, %1300 : vector<8x128xf32>
    %cst_414 = arith.constant dense<0.000000e+00> : vector<8xf32>
    %1302 = vector.multi_reduction <add>, %1297, %cst_414 [1] : vector<8x128xf32> to vector<8xf32>
    %1303 = vector.shape_cast %1302 : vector<8xf32> to vector<8x1xf32>
    %cst_415 = arith.constant 6.250000e-02 : f32
    %1304 = vector.broadcast %cst_415 : f32 to vector<8x1xf32>
    %1305 = arith.mulf %1303, %1304 : vector<8x1xf32>
    %c0_416 = arith.constant 0 : index
    %c32 = arith.constant 32 : index
    %1306 = vector.load %arg8[%c0_416, %c32] : memref<8x128xf32, #tpu.memory_space<vmem>>, vector<8x1xf32>
    tpu.vector_store %arg8[%c0_416, %c32], %1305 {strides = array<i32>} : memref<8x128xf32, #tpu.memory_space<vmem>>, vector<8x1xf32>,
    %cst_417 = arith.constant dense<0.000000e+00> : vector<8xf32>
    %1307 = vector.multi_reduction <add>, %1301, %cst_417 [1] : vector<8x128xf32> to vector<8xf32>
    %1308 = vector.shape_cast %1307 : vector<8xf32> to vector<8x1xf32>
    %cst_418 = arith.constant 6.250000e-02 : f32
    %1309 = vector.broadcast %cst_418 : f32 to vector<8x1xf32>
    %1310 = arith.mulf %1308, %1309 : vector<8x1xf32>
    %c0_419 = arith.constant 0 : index
    %c32_420 = arith.constant 32 : index
    %1311 = vector.load %arg9[%c0_419, %c32_420] : memref<8x128xf32, #tpu.memory_space<vmem>>, vector<8x1xf32>
    tpu.vector_store %arg9[%c0_419, %c32_420], %1310 {strides = array<i32>} : memref<8x128xf32, #tpu.memory_space<vmem>>, vector<8x1xf32>,
    %1312 = vector.extract_strided_slice %53 {offsets = [24, 0], sizes = [8, 128], strides = [1, 1]} : vector<64x128xf32> to vector<8x128xf32>
    %1313 = vector.extract_strided_slice %62 {offsets = [24, 0], sizes = [8, 128], strides = [1, 1]} : vector<64x128xf32> to vector<8x128xf32>
    %1314 = vector.extract_strided_slice %65 {offsets = [24, 0], sizes = [8, 128], strides = [1, 1]} : vector<64x128xf32> to vector<8x128xf32>
    %1315 = vector.extract_strided_slice %53 {offsets = [32, 0], sizes = [8, 128], strides = [1, 1]} : vector<64x128xf32> to vector<8x128xf32>
    %1316 = vector.extract_strided_slice %62 {offsets = [32, 0], sizes = [8, 128], strides = [1, 1]} : vector<64x128xf32> to vector<8x128xf32>
    %1317 = vector.extract_strided_slice %65 {offsets = [32, 0], sizes = [8, 128], strides = [1, 1]} : vector<64x128xf32> to vector<8x128xf32>
    %cst_421 = arith.constant 1.000000e+00 : f32
    %1318 = vector.broadcast %cst_421 : f32 to vector<8x128xf32>
    %cst_422 = arith.constant 0.000000e+00 : f32
    %1319 = vector.broadcast %cst_422 : f32 to vector<8x128xf32>
    %1320 = arith.mulf %1318, %1313 : vector<8x128xf32>
    %1321 = arith.mulf %1319, %1314 : vector<8x128xf32>
    %1322 = arith.subf %1320, %1321 : vector<8x128xf32>
    %1323 = arith.mulf %1318, %1314 : vector<8x128xf32>
    %1324 = arith.mulf %1319, %1313 : vector<8x128xf32>
    %1325 = arith.addf %1323, %1324 : vector<8x128xf32>
    %cst_423 = arith.constant 0.000000e+00 : f32
    %1326 = vector.broadcast %cst_423 : f32 to vector<8x128xf32>
    %1327 = arith.subf %1326, %1317 : vector<8x128xf32>
    %cst_424 = arith.constant 1.000000e+00 : f32
    %1328 = vector.broadcast %cst_424 : f32 to vector<8x128xf32>
    %cst_425 = arith.constant 0.000000e+00 : f32
    %1329 = vector.broadcast %cst_425 : f32 to vector<8x128xf32>
    %1330 = arith.mulf %1328, %1316 : vector<8x128xf32>
    %1331 = arith.mulf %1329, %1327 : vector<8x128xf32>
    %1332 = arith.subf %1330, %1331 : vector<8x128xf32>
    %1333 = arith.mulf %1328, %1327 : vector<8x128xf32>
    %1334 = arith.mulf %1329, %1316 : vector<8x128xf32>
    %1335 = arith.addf %1333, %1334 : vector<8x128xf32>
    %1336 = arith.mulf %1332, %1316 : vector<8x128xf32>
    %1337 = arith.mulf %1335, %1327 : vector<8x128xf32>
    %1338 = arith.subf %1336, %1337 : vector<8x128xf32>
    %1339 = arith.mulf %1332, %1327 : vector<8x128xf32>
    %1340 = arith.mulf %1335, %1316 : vector<8x128xf32>
    %1341 = arith.addf %1339, %1340 : vector<8x128xf32>
    %1342 = arith.mulf %1338, %1316 : vector<8x128xf32>
    %1343 = arith.mulf %1341, %1327 : vector<8x128xf32>
    %1344 = arith.subf %1342, %1343 : vector<8x128xf32>
    %1345 = arith.mulf %1338, %1327 : vector<8x128xf32>
    %1346 = arith.mulf %1341, %1316 : vector<8x128xf32>
    %1347 = arith.addf %1345, %1346 : vector<8x128xf32>
    %1348 = arith.mulf %1312, %1315 : vector<8x128xf32>
    %1349 = arith.mulf %1322, %1344 : vector<8x128xf32>
    %1350 = arith.mulf %1325, %1347 : vector<8x128xf32>
    %1351 = arith.subf %1349, %1350 : vector<8x128xf32>
    %1352 = arith.mulf %1348, %1351 : vector<8x128xf32>
    %1353 = arith.mulf %1322, %1347 : vector<8x128xf32>
    %1354 = arith.mulf %1325, %1344 : vector<8x128xf32>
    %1355 = arith.addf %1353, %1354 : vector<8x128xf32>
    %1356 = arith.mulf %1348, %1355 : vector<8x128xf32>
    %cst_426 = arith.constant dense<0.000000e+00> : vector<8xf32>
    %1357 = vector.multi_reduction <add>, %1352, %cst_426 [1] : vector<8x128xf32> to vector<8xf32>
    %1358 = vector.shape_cast %1357 : vector<8xf32> to vector<8x1xf32>
    %cst_427 = arith.constant 6.250000e-02 : f32
    %1359 = vector.broadcast %cst_427 : f32 to vector<8x1xf32>
    %1360 = arith.mulf %1358, %1359 : vector<8x1xf32>
    %c0_428 = arith.constant 0 : index
    %c33 = arith.constant 33 : index
    %1361 = vector.load %arg8[%c0_428, %c33] : memref<8x128xf32, #tpu.memory_space<vmem>>, vector<8x1xf32>
    tpu.vector_store %arg8[%c0_428, %c33], %1360 {strides = array<i32>} : memref<8x128xf32, #tpu.memory_space<vmem>>, vector<8x1xf32>,
    %cst_429 = arith.constant dense<0.000000e+00> : vector<8xf32>
    %1362 = vector.multi_reduction <add>, %1356, %cst_429 [1] : vector<8x128xf32> to vector<8xf32>
    %1363 = vector.shape_cast %1362 : vector<8xf32> to vector<8x1xf32>
    %cst_430 = arith.constant 6.250000e-02 : f32
    %1364 = vector.broadcast %cst_430 : f32 to vector<8x1xf32>
    %1365 = arith.mulf %1363, %1364 : vector<8x1xf32>
    %c0_431 = arith.constant 0 : index
    %c33_432 = arith.constant 33 : index
    %1366 = vector.load %arg9[%c0_431, %c33_432] : memref<8x128xf32, #tpu.memory_space<vmem>>, vector<8x1xf32>
    tpu.vector_store %arg9[%c0_431, %c33_432], %1365 {strides = array<i32>} : memref<8x128xf32, #tpu.memory_space<vmem>>, vector<8x1xf32>,
    return
  }
  func.func @transform_0(%arg0: i32) -> (i32, i32) {
    %c0_i32 = arith.constant 0 : i32
    %c0_i32_0 = arith.constant 0 : i32
    %c0_i32_1 = arith.constant 0 : i32
    return %c0_i32, %c0_i32_0 : i32, i32
  }
  func.func @transform_1(%arg0: i32) -> (i32, i32) {
    %c0_i32 = arith.constant 0 : i32
    %c0_i32_0 = arith.constant 0 : i32
    %c0_i32_1 = arith.constant 0 : i32
    return %c0_i32, %c0_i32_0 : i32, i32
  }
  func.func @transform_2(%arg0: i32) -> (i32, i32) {
    %c0_i32 = arith.constant 0 : i32
    %c0_i32_0 = arith.constant 0 : i32
    %c0_i32_1 = arith.constant 0 : i32
    return %c0_i32, %c0_i32_0 : i32, i32
  }
  func.func @transform_3(%arg0: i32) -> (i32, i32) {
    %c0_i32 = arith.constant 0 : i32
    %c0_i32_0 = arith.constant 0 : i32
    %c0_i32_1 = arith.constant 0 : i32
    return %c0_i32, %c0_i32_0 : i32, i32
  }
  func.func @transform_4(%arg0: i32) -> (i32, i32) {
    %c0_i32 = arith.constant 0 : i32
    %c0_i32_0 = arith.constant 0 : i32
    %c0_i32_1 = arith.constant 0 : i32
    return %c0_i32, %c0_i32_0 : i32, i32
  }
  func.func @transform_5(%arg0: i32) -> (i32, i32) {
    %c0_i32 = arith.constant 0 : i32
    %c0_i32_0 = arith.constant 0 : i32
    %c0_i32_1 = arith.constant 0 : i32
    return %c0_i32, %c0_i32_0 : i32, i32
  }
  func.func @transform_6(%arg0: i32) -> (i32, i32) {
    %c0_i32 = arith.constant 0 : i32
    %c0_i32_0 = arith.constant 0 : i32
    %c0_i32_1 = arith.constant 0 : i32
    return %c0_i32, %c0_i32_0 : i32, i32
  }
  func.func @transform_7(%arg0: i32) -> (i32, i32) {
    %c0_i32 = arith.constant 0 : i32
    %c0_i32_0 = arith.constant 0 : i32
    %c0_i32_1 = arith.constant 0 : i32
    return %c0_i32, %c0_i32_0 : i32, i32
  }
  func.func @transform_8(%arg0: i32) -> (i32, i32) {
    %c0_i32 = arith.constant 0 : i32
    %c0_i32_0 = arith.constant 0 : i32
    %c0_i32_1 = arith.constant 0 : i32
    return %c0_i32, %c0_i32_0 : i32, i32
  }
}

</mosaic_0001>

<llo_original>
// kernel: tpu_custom_call.1
$region0: #{tpu_custom_call.1}
  #allocation0 [shape = 'u32[]', space=smem, size = 0x4, offset = 0x4, fixed_abs, tag = 'smem constant byte address 0x4 - core index']
  #allocation1 [shape = 'u32[144,128]{1,0:T(1,128)}', space=vmem, size = 0x12000, scoped, tag = 'internal scratch']
  %s0 = inlined_call_operand.hbm [shape: f32[8,128], index: 0, kind: input, shape index: {}]
  %s1 = inlined_call_operand.hbm [shape: f32[8,128], index: 1, kind: input, shape index: {}]
  %s2 = inlined_call_operand.hbm [shape: f32[8,128], index: 2, kind: input, shape index: {}]
  %s3 = inlined_call_operand.vmem [shape: f32[8,128], index: 3, kind: input, shape index: {}]
  %s4 = inlined_call_operand.hbm [shape: f32[128,128], index: 4, kind: input, shape index: {}]
  %s5 = inlined_call_operand.hbm [shape: f32[128,128], index: 5, kind: input, shape index: {}]
  %s6 = inlined_call_operand.vmem [shape: f32[64,1], index: 6, kind: output, shape index: {0}]
  %s7 = inlined_call_operand.hbm [shape: f32[8,128], index: 7, kind: output, shape index: {1}]
  %s8 = inlined_call_operand.hbm [shape: f32[8,128], index: 8, kind: output, shape index: {2}]
  %9 = xla_tuple %s6, %s7, %s8
  %s10 = sld [smem:[#allocation0]]
  $region70: #{tpu_custom_call.1} parent=0
    _
  %s12 = ssub.s32 1, %s10
  %s13 = scalar_select 0, %s12, %s10
  $region1: #{tpu_custom_call.1} parent=0
    #allocation2 [shape = 'u8[4096]{0}', space=vmem, size = 0x1000, scoped, tag = 'input window, operand 0, single buffered']
    #allocation3 [shape = 's32[1]{0}', space=sflag, size = 0x4, scoped, tag = 'scoped memory for tpu_custom_call.1']
    #allocation4 [shape = 's32[1]{0}', space=sflag, size = 0x4, scoped, tag = 'scoped memory for tpu_custom_call.1']
    #allocation5 [shape = 'u8[4096]{0}', space=vmem, size = 0x1000, scoped, tag = 'input window, operand 1, single buffered']
    #allocation6 [shape = 's32[1]{0}', space=sflag, size = 0x4, scoped, tag = 'scoped memory for tpu_custom_call.1']
    #allocation7 [shape = 'u8[4096]{0}', space=vmem, size = 0x1000, scoped, tag = 'input window, operand 2, single buffered']
    #allocation8 [shape = 'u8[65536]{0}', space=vmem, size = 0x10000, scoped, tag = 'input window, operand 4, single buffered']
    #allocation9 [shape = 's32[1]{0}', space=sflag, size = 0x4, scoped, tag = 'scoped memory for tpu_custom_call.1']
    #allocation10 [shape = 'u8[65536]{0}', space=vmem, size = 0x10000, scoped, tag = 'input window, operand 5, single buffered']
    #allocation11 [shape = 'u8[4096]{0}', space=vmem, size = 0x1000, scoped, tag = 'output window, operand 1, single buffered']
    #allocation12 [shape = 'u8[4096]{0}', space=vmem, size = 0x1000, scoped, tag = 'output window, operand 2, single buffered']
    #allocation13 [shape = 's32[1]{0}', space=sflag, size = 0x4, scoped, tag = 'scoped memory for tpu_custom_call.1']
    %14 = vsyncpa [#allocation3], 0
    %15 = vsyncpa [#allocation6], 0
    %16 = vsyncpa [#allocation9], 0
    %17 = vsyncpa [#allocation4], 0
    %18 = vsyncpa [#allocation13], 0
    // Predicated region
    $region2: #{tpu_custom_call.1} parent=1 // pred_check
      _
    $region3: #{tpu_custom_call.1} parent=1 // pred_check_branch
      %20 = sbr.rel (0) target = $region5
    $region4: #{tpu_custom_call.1} parent=1 // pred_region
      %s22 = ssub.s32 128, 128
      %23 = vsyncadd [#allocation3], %s22
      %s25 = sshll.u32 [#allocation2], 4
      %s26 = int_to_ptr.vmem [resolvable:$true] %s25
      %28 = dma.hbm_to_vmem [thread:$0]  %s0, 128, %s26, [#allocation3]
    $region5: #{tpu_custom_call.1} parent=1 // pred_fallthru
      _
    // Predicated region
    $region6: #{tpu_custom_call.1} parent=1 // pred_check
      _
    $region7: #{tpu_custom_call.1} parent=1 // pred_check_branch
      %30 = sbr.rel (0) target = $region9
    $region8: #{tpu_custom_call.1} parent=1 // pred_region
      %s32 = ssub.s32 128, 128
      %33 = vsyncadd [#allocation6], %s32
      %s35 = sshll.u32 [#allocation5], 4
      %s36 = int_to_ptr.vmem [resolvable:$true] %s35
      %38 = dma.hbm_to_vmem [thread:$0]  %s1, 128, %s36, [#allocation6]
    $region9: #{tpu_custom_call.1} parent=1 // pred_fallthru
      _
    // Predicated region
    $region10: #{tpu_custom_call.1} parent=1 // pred_check
      _
    $region11: #{tpu_custom_call.1} parent=1 // pred_check_branch
      %40 = sbr.rel (0) target = $region13
    $region12: #{tpu_custom_call.1} parent=1 // pred_region
      %s42 = ssub.s32 128, 128
      %43 = vsyncadd [#allocation6], %s42
      %s45 = sshll.u32 [#allocation7], 4
      %s46 = int_to_ptr.vmem [resolvable:$true] %s45
      %48 = dma.hbm_to_vmem [thread:$0]  %s2, 128, %s46, [#allocation6]
    $region13: #{tpu_custom_call.1} parent=1 // pred_fallthru
      _
    // Predicated region
    $region14: #{tpu_custom_call.1} parent=1 // pred_check
      _
    $region15: #{tpu_custom_call.1} parent=1 // pred_check_branch
      %50 = sbr.rel (0) target = $region17
    $region16: #{tpu_custom_call.1} parent=1 // pred_region
      _
    $region17: #{tpu_custom_call.1} parent=1 // pred_fallthru
      _
    // Predicated region
    $region18: #{tpu_custom_call.1} parent=1 // pred_check
      _
    $region19: #{tpu_custom_call.1} parent=1 // pred_check_branch
      %52 = sbr.rel (0) target = $region21
    $region20: #{tpu_custom_call.1} parent=1 // pred_region
      %s54 = ssub.s32 2048, 2048
      %55 = vsyncadd [#allocation9], %s54
      %s56 = sshll.u32 [#allocation8], 4
      %s57 = int_to_ptr.vmem [resolvable:$true] %s56
      %62 = dma.hbm_to_vmem [thread:$0]  %s4, 2048, %s57, [#allocation9], 128, 128, 8
    $region21: #{tpu_custom_call.1} parent=1 // pred_fallthru
      _
    // Predicated region
    $region22: #{tpu_custom_call.1} parent=1 // pred_check
      _
    $region23: #{tpu_custom_call.1} parent=1 // pred_check_branch
      %64 = sbr.rel (0) target = $region25
    $region24: #{tpu_custom_call.1} parent=1 // pred_region
      %s66 = ssub.s32 2048, 2048
      %67 = vsyncadd [#allocation9], %s66
      %s68 = sshll.u32 [#allocation10], 4
      %s69 = int_to_ptr.vmem [resolvable:$true] %s68
      %74 = dma.hbm_to_vmem [thread:$0]  %s5, 2048, %s69, [#allocation9], 128, 128, 8
    $region25: #{tpu_custom_call.1} parent=1 // pred_fallthru
      _
    // Predicated region
    $region26: #{tpu_custom_call.1} parent=1 // pred_check
      _
    $region27: #{tpu_custom_call.1} parent=1 // pred_check_branch
      %76 = sbr.rel (0) target = $region29
    $region28: #{tpu_custom_call.1} parent=1 // pred_region
      %77 = dma.done [#allocation3], 128
    $region29: #{tpu_custom_call.1} parent=1 // pred_fallthru
      _
    // Predicated region
    $region30: #{tpu_custom_call.1} parent=1 // pred_check
      _
    $region31: #{tpu_custom_call.1} parent=1 // pred_check_branch
      %79 = sbr.rel (0) target = $region33
    $region32: #{tpu_custom_call.1} parent=1 // pred_region
      %80 = dma.done [#allocation6], 128
    $region33: #{tpu_custom_call.1} parent=1 // pred_fallthru
      _
    // Predicated region
    $region34: #{tpu_custom_call.1} parent=1 // pred_check
      _
    $region35: #{tpu_custom_call.1} parent=1 // pred_check_branch
      %82 = sbr.rel (0) target = $region37
    $region36: #{tpu_custom_call.1} parent=1 // pred_region
      %83 = dma.done [#allocation6], 128
    $region37: #{tpu_custom_call.1} parent=1 // pred_fallthru
      _
    // Predicated region
    $region38: #{tpu_custom_call.1} parent=1 // pred_check
      _
    $region39: #{tpu_custom_call.1} parent=1 // pred_check_branch
      %85 = sbr.rel (0) target = $region41
    $region40: #{tpu_custom_call.1} parent=1 // pred_region
      %86 = dma.done [#allocation9], 2048
    $region41: #{tpu_custom_call.1} parent=1 // pred_fallthru
      _
    // Predicated region
    $region42: #{tpu_custom_call.1} parent=1 // pred_check
      _
    $region43: #{tpu_custom_call.1} parent=1 // pred_check_branch
      %88 = sbr.rel (0) target = $region45
    $region44: #{tpu_custom_call.1} parent=1 // pred_region
      %89 = dma.done [#allocation9], 2048
    $region45: #{tpu_custom_call.1} parent=1 // pred_fallthru
      _
    %v90 = vld [vmem:[#allocation2] sm:$0xff]
    %v91 = vld [vmem:[#allocation5] sm:$0xff]
    %v92 = vld [vmem:[#allocation8] sm:$0xff]
    %v93 = vld [vmem:[#allocation8 + $0x8] sm:$0xff]
    %v94 = vld [vmem:[#allocation8 + $0x10] sm:$0xff]
    %v95 = vld [vmem:[#allocation8 + $0x18] sm:$0xff]
    %v96 = vld [vmem:[#allocation8 + $0x20] sm:$0xff]
    %v97 = vld [vmem:[#allocation8 + $0x28] sm:$0xff]
    %v98 = vld [vmem:[#allocation8 + $0x30] sm:$0xff]
    %v99 = vld [vmem:[#allocation8 + $0x38] sm:$0xff]
    %v100 = vld [vmem:[#allocation8 + $0x40] sm:$0xff]
    %v101 = vld [vmem:[#allocation8 + $0x48] sm:$0xff]
    %v102 = vld [vmem:[#allocation8 + $0x50] sm:$0xff]
    %v103 = vld [vmem:[#allocation8 + $0x58] sm:$0xff]
    %v104 = vld [vmem:[#allocation8 + $0x60] sm:$0xff]
    %v105 = vld [vmem:[#allocation8 + $0x68] sm:$0xff]
    %v106 = vld [vmem:[#allocation8 + $0x70] sm:$0xff]
    %v107 = vld [vmem:[#allocation8 + $0x78] sm:$0xff]
    %v108 = vld [vmem:[#allocation10] sm:$0xff]
    %v109 = vld [vmem:[#allocation10 + $0x8] sm:$0xff]
    %v110 = vld [vmem:[#allocation10 + $0x10] sm:$0xff]
    %v111 = vld [vmem:[#allocation10 + $0x18] sm:$0xff]
    %v112 = vld [vmem:[#allocation10 + $0x20] sm:$0xff]
    %v113 = vld [vmem:[#allocation10 + $0x28] sm:$0xff]
    %v114 = vld [vmem:[#allocation10 + $0x30] sm:$0xff]
    %v115 = vld [vmem:[#allocation10 + $0x38] sm:$0xff]
    %v116 = vld [vmem:[#allocation10 + $0x40] sm:$0xff]
    %v117 = vld [vmem:[#allocation10 + $0x48] sm:$0xff]
    %v118 = vld [vmem:[#allocation10 + $0x50] sm:$0xff]
    %v119 = vld [vmem:[#allocation10 + $0x58] sm:$0xff]
    %v120 = vld [vmem:[#allocation10 + $0x60] sm:$0xff]
    %v121 = vld [vmem:[#allocation10 + $0x68] sm:$0xff]
    %v122 = vld [vmem:[#allocation10 + $0x70] sm:$0xff]
    %v123 = vld [vmem:[#allocation10 + $0x78] sm:$0xff]
    %v124 = vadd.f32 %v92, %v108
    %v125 = vadd.f32 %v93, %v109
    %v126 = vadd.f32 %v94, %v110
    %v127 = vadd.f32 %v95, %v111
    %v128 = vadd.f32 %v96, %v112
    %v129 = vadd.f32 %v97, %v113
    %v130 = vadd.f32 %v98, %v114
    %v131 = vadd.f32 %v99, %v115
    %v132 = vadd.f32 %v100, %v116
    %v133 = vadd.f32 %v101, %v117
    %v134 = vadd.f32 %v102, %v118
    %v135 = vadd.f32 %v103, %v119
    %v136 = vadd.f32 %v104, %v120
    %v137 = vadd.f32 %v105, %v121
    %v138 = vadd.f32 %v106, %v122
    %v139 = vadd.f32 %v107, %v123
    %v140 = vsub.f32 %v92, %v108
    %v141 = vsub.f32 %v93, %v109
    %v142 = vsub.f32 %v94, %v110
    %v143 = vsub.f32 %v95, %v111
    %v144 = vsub.f32 %v96, %v112
    %v145 = vsub.f32 %v97, %v113
    %v146 = vsub.f32 %v98, %v114
    %v147 = vsub.f32 %v99, %v115
    %v148 = vsub.f32 %v100, %v116
    %v149 = vsub.f32 %v101, %v117
    %v150 = vsub.f32 %v102, %v118
    %v151 = vsub.f32 %v103, %v119
    %v152 = vsub.f32 %v104, %v120
    %v153 = vsub.f32 %v105, %v121
    %v154 = vsub.f32 %v106, %v122
    %v155 = vsub.f32 %v107, %v123
    %156 = vmatprep.subr.mxu0 0.0
    %157 = vmatpush1.msra.mxu0 %v92
    %158 = vmatprep.subr.mxu0 0.0
    %159 = vmatpush1.msra.mxu0 %v93
    %160 = vmatprep.subr.mxu0 0.0
    %161 = vmatpush1.msra.mxu0 %v94
    %162 = vmatprep.subr.mxu0 0.0
    %163 = vmatpush1.msra.mxu0 %v95
    %164 = vmatprep.subr.mxu0 0.0
    %165 = vmatpush1.msra.mxu0 %v96
    %166 = vmatprep.subr.mxu0 0.0
    %167 = vmatpush1.msra.mxu0 %v97
    %168 = vmatprep.subr.mxu0 0.0
    %169 = vmatpush1.msra.mxu0 %v98
    %170 = vmatprep.subr.mxu0 0.0
    %171 = vmatpush1.msra.mxu0 %v99
    %172 = vmatprep.subr.mxu0 0.0
    %173 = vmatpush1.msra.mxu0 %v100
    %174 = vmatprep.subr.mxu0 0.0
    %175 = vmatpush1.msra.mxu0 %v101
    %176 = vmatprep.subr.mxu0 0.0
    %177 = vmatpush1.msra.mxu0 %v102
    %178 = vmatprep.subr.mxu0 0.0
    %179 = vmatpush1.msra.mxu0 %v103
    %180 = vmatprep.subr.mxu0 0.0
    %181 = vmatpush1.msra.mxu0 %v104
    %182 = vmatprep.subr.mxu0 0.0
    %183 = vmatpush1.msra.mxu0 %v105
    %184 = vmatprep.subr.mxu0 0.0
    %185 = vmatpush1.msra.mxu0 %v106
    %186 = vmatprep.subr.mxu0 0.0
    %187 = vmatpush1.msra.mxu0 %v107
    %188 = vmatprep.subr.mxu0 0.0
    %189 = vmatpush1.msra.mxu0 0.0
    %190 = vmatprep.subr.mxu0 0.0
    %191 = vmatpush1.msra.mxu0 0.0
    %192 = vmatprep.subr.mxu0 0.0
    %193 = vmatpush1.msra.mxu0 0.0
    %194 = vmatprep.subr.mxu0 0.0
    %195 = vmatpush1.msra.mxu0 0.0
    %196 = vmatprep.subr.mxu0 0.0
    %197 = vmatpush1.msra.mxu0 0.0
    %198 = vmatprep.subr.mxu0 0.0
    %199 = vmatpush1.msra.mxu0 0.0
    %200 = vmatprep.subr.mxu0 0.0
    %201 = vmatpush1.msra.mxu0 0.0
    %202 = vmatprep.subr.mxu0 0.0
    %203 = vmatpush1.msra.mxu0 0.0
    %204 = vmatprep.subr.mxu0 0.0
    %205 = vmatpush1.msra.mxu0 0.0
    %206 = vmatprep.subr.mxu0 0.0
    %207 = vmatpush1.msra.mxu0 0.0
    %208 = vmatprep.subr.mxu0 0.0
    %209 = vmatpush1.msra.mxu0 0.0
    %210 = vmatprep.subr.mxu0 0.0
    %211 = vmatpush1.msra.mxu0 0.0
    %212 = vmatprep.subr.mxu0 0.0
    %213 = vmatpush1.msra.mxu0 0.0
    %214 = vmatprep.subr.mxu0 0.0
    %215 = vmatpush1.msra.mxu0 0.0
    %216 = vmatprep.subr.mxu0 0.0
    %217 = vmatpush1.msra.mxu0 0.0
    %218 = vmatprep.subr.mxu0 0.0
    %219 = vmatpush1.msra.mxu0 0.0
    %220 = vmatprep.mubr.f32.mxu0 0.0
    %221 = vmatmul.mubr.f32.gmra.mrb[0].mxu0 %v90
    %v222 = vpop.f32.mrb[0].mxu0
    %v223 = vadd.f32 0.0, %v222
    %v224 = vpop.f32.mrb[0].mxu0
    %225 = vdwg.mxu0
    %226 = vmatprep.subr.mxu0 0.0
    %227 = vmatpush1.msra.mxu0 %v108
    %228 = vmatprep.subr.mxu0 0.0
    %229 = vmatpush1.msra.mxu0 %v109
    %230 = vmatprep.subr.mxu0 0.0
    %231 = vmatpush1.msra.mxu0 %v110
    %232 = vmatprep.subr.mxu0 0.0
    %233 = vmatpush1.msra.mxu0 %v111
    %234 = vmatprep.subr.mxu0 0.0
    %235 = vmatpush1.msra.mxu0 %v112
    %236 = vmatprep.subr.mxu0 0.0
    %237 = vmatpush1.msra.mxu0 %v113
    %238 = vmatprep.subr.mxu0 0.0
    %239 = vmatpush1.msra.mxu0 %v114
    %240 = vmatprep.subr.mxu0 0.0
    %241 = vmatpush1.msra.mxu0 %v115
    %242 = vmatprep.subr.mxu0 0.0
    %243 = vmatpush1.msra.mxu0 %v116
    %244 = vmatprep.subr.mxu0 0.0
    %245 = vmatpush1.msra.mxu0 %v117
    %246 = vmatprep.subr.mxu0 0.0
    %247 = vmatpush1.msra.mxu0 %v118
    %248 = vmatprep.subr.mxu0 0.0
    %249 = vmatpush1.msra.mxu0 %v119
    %250 = vmatprep.subr.mxu0 0.0
    %251 = vmatpush1.msra.mxu0 %v120
    %252 = vmatprep.subr.mxu0 0.0
    %253 = vmatpush1.msra.mxu0 %v121
    %254 = vmatprep.subr.mxu0 0.0
    %255 = vmatpush1.msra.mxu0 %v122
    %256 = vmatprep.subr.mxu0 0.0
    %257 = vmatpush1.msra.mxu0 %v123
    %258 = vmatprep.subr.mxu0 0.0
    %259 = vmatpush1.msra.mxu0 0.0
    %260 = vmatprep.subr.mxu0 0.0
    %261 = vmatpush1.msra.mxu0 0.0
    %262 = vmatprep.subr.mxu0 0.0
    %263 = vmatpush1.msra.mxu0 0.0
    %264 = vmatprep.subr.mxu0 0.0
    %265 = vmatpush1.msra.mxu0 0.0
    %266 = vmatprep.subr.mxu0 0.0
    %267 = vmatpush1.msra.mxu0 0.0
    %268 = vmatprep.subr.mxu0 0.0
    %269 = vmatpush1.msra.mxu0 0.0
    %270 = vmatprep.subr.mxu0 0.0
    %271 = vmatpush1.msra.mxu0 0.0
    %272 = vmatprep.subr.mxu0 0.0
    %273 = vmatpush1.msra.mxu0 0.0
    %274 = vmatprep.subr.mxu0 0.0
    %275 = vmatpush1.msra.mxu0 0.0
    %276 = vmatprep.subr.mxu0 0.0
    %277 = vmatpush1.msra.mxu0 0.0
    %278 = vmatprep.subr.mxu0 0.0
    %279 = vmatpush1.msra.mxu0 0.0
    %280 = vmatprep.subr.mxu0 0.0
    %281 = vmatpush1.msra.mxu0 0.0
    %282 = vmatprep.subr.mxu0 0.0
    %283 = vmatpush1.msra.mxu0 0.0
    %284 = vmatprep.subr.mxu0 0.0
    %285 = vmatpush1.msra.mxu0 0.0
    %286 = vmatprep.subr.mxu0 0.0
    %287 = vmatpush1.msra.mxu0 0.0
    %288 = vmatprep.subr.mxu0 0.0
    %289 = vmatpush1.msra.mxu0 0.0
    %290 = vmatprep.mubr.f32.mxu0 0.0
    %291 = vmatmul.mubr.f32.gmra.mrb[0].mxu0 %v91
    %v292 = vpop.f32.mrb[0].mxu0
    %v293 = vadd.f32 0.0, %v292
    %v294 = vpop.f32.mrb[0].mxu0
    %295 = vdwg.mxu0
    %v296 = vadd.f32 %v90, %v91
    %297 = vmatprep.subr.mxu0 0.0
    %298 = vmatpush1.msra.mxu0 %v124
    %299 = vmatprep.subr.mxu0 0.0
    %300 = vmatpush1.msra.mxu0 %v125
    %301 = vmatprep.subr.mxu0 0.0
    %302 = vmatpush1.msra.mxu0 %v126
    %303 = vmatprep.subr.mxu0 0.0
    %304 = vmatpush1.msra.mxu0 %v127
    %305 = vmatprep.subr.mxu0 0.0
    %306 = vmatpush1.msra.mxu0 %v128
    %307 = vmatprep.subr.mxu0 0.0
    %308 = vmatpush1.msra.mxu0 %v129
    %309 = vmatprep.subr.mxu0 0.0
    %310 = vmatpush1.msra.mxu0 %v130
    %311 = vmatprep.subr.mxu0 0.0
    %312 = vmatpush1.msra.mxu0 %v131
    %313 = vmatprep.subr.mxu0 0.0
    %314 = vmatpush1.msra.mxu0 %v132
    %315 = vmatprep.subr.mxu0 0.0
    %316 = vmatpush1.msra.mxu0 %v133
    %317 = vmatprep.subr.mxu0 0.0
    %318 = vmatpush1.msra.mxu0 %v134
    %319 = vmatprep.subr.mxu0 0.0
    %320 = vmatpush1.msra.mxu0 %v135
    %321 = vmatprep.subr.mxu0 0.0
    %322 = vmatpush1.msra.mxu0 %v136
    %323 = vmatprep.subr.mxu0 0.0
    %324 = vmatpush1.msra.mxu0 %v137
    %325 = vmatprep.subr.mxu0 0.0
    %326 = vmatpush1.msra.mxu0 %v138
    %327 = vmatprep.subr.mxu0 0.0
    %328 = vmatpush1.msra.mxu0 %v139
    %329 = vmatprep.subr.mxu0 0.0
    %330 = vmatpush1.msra.mxu0 0.0
    %331 = vmatprep.subr.mxu0 0.0
    %332 = vmatpush1.msra.mxu0 0.0
    %333 = vmatprep.subr.mxu0 0.0
    %334 = vmatpush1.msra.mxu0 0.0
    %335 = vmatprep.subr.mxu0 0.0
    %336 = vmatpush1.msra.mxu0 0.0
    %337 = vmatprep.subr.mxu0 0.0
    %338 = vmatpush1.msra.mxu0 0.0
    %339 = vmatprep.subr.mxu0 0.0
    %340 = vmatpush1.msra.mxu0 0.0
    %341 = vmatprep.subr.mxu0 0.0
    %342 = vmatpush1.msra.mxu0 0.0
    %343 = vmatprep.subr.mxu0 0.0
    %344 = vmatpush1.msra.mxu0 0.0
    %345 = vmatprep.subr.mxu0 0.0
    %346 = vmatpush1.msra.mxu0 0.0
    %347 = vmatprep.subr.mxu0 0.0
    %348 = vmatpush1.msra.mxu0 0.0
    %349 = vmatprep.subr.mxu0 0.0
    %350 = vmatpush1.msra.mxu0 0.0
    %351 = vmatprep.subr.mxu0 0.0
    %352 = vmatpush1.msra.mxu0 0.0
    %353 = vmatprep.subr.mxu0 0.0
    %354 = vmatpush1.msra.mxu0 0.0
    %355 = vmatprep.subr.mxu0 0.0
    %356 = vmatpush1.msra.mxu0 0.0
    %357 = vmatprep.subr.mxu0 0.0
    %358 = vmatpush1.msra.mxu0 0.0
    %359 = vmatprep.subr.mxu0 0.0
    %360 = vmatpush1.msra.mxu0 0.0
    %361 = vmatprep.mubr.f32.mxu0 0.0
    %362 = vmatmul.mubr.f32.gmra.mrb[0].mxu0 %v296
    %v363 = vpop.f32.mrb[0].mxu0
    %v364 = vadd.f32 0.0, %v363
    %v365 = vpop.f32.mrb[0].mxu0
    %366 = vdwg.mxu0
    %v367 = vsub.f32 %v223, %v293
    %v368 = vsub.f32 %v364, %v223
    %v369 = vsub.f32 %v368, %v293
    %v370 = vld [vmem:[#allocation7] sm:$0xff]
    %v371 = vld [vmem:[%s3] sm:$0xff]
    %v373 = vcombine.high %v370, %v370
    %v375 = vunpack.c.l.s4 1966171168
    %v376 = vunpack.c.0.s8 %v375
    %v377 = vlaneseq
    %v378 = vshrl.u32 %v377, 7
    %v379 = vsub.s32 %v376, %v378
    %v380 = vrot.slane %v370, %v379
    %v382 = vunpack.c.l.s4 1966171168
    %v383 = vunpack.c.0.s8 %v382
    %v384 = vlaneseq
    %v385 = vshrl.u32 %v384, 7
    %v386 = vsub.s32 %v383, %v385
    %v387 = vrot.slane %v373, %v386
    %v388 = vcombine.high %v380, %v380
    %v389 = vcombine.high %v387, %v387
    %v391 = vunpack.c.l.s4 1966171168
    %v392 = vunpack.c.0.s8 %v391
    %v393 = vlaneseq
    %v394 = vshrl.u32 %v393, 7
    %v395 = vsub.s32 %v392, %v394
    %v396 = vrot.slane %v380, %v395
    %v398 = vunpack.c.l.s4 1966171168
    %v399 = vunpack.c.0.s8 %v398
    %v400 = vlaneseq
    %v401 = vshrl.u32 %v400, 7
    %v402 = vsub.s32 %v399, %v401
    %v403 = vrot.slane %v387, %v402
    %v405 = vunpack.c.l.s4 1966171168
    %v406 = vunpack.c.0.s8 %v405
    %v407 = vlaneseq
    %v408 = vshrl.u32 %v407, 7
    %v409 = vsub.s32 %v406, %v408
    %v410 = vrot.slane %v388, %v409
    %v412 = vunpack.c.l.s4 1966171168
    %v413 = vunpack.c.0.s8 %v412
    %v414 = vlaneseq
    %v415 = vshrl.u32 %v414, 7
    %v416 = vsub.s32 %v413, %v415
    %v417 = vrot.slane %v389, %v416
    %v418 = vcombine.high %v396, %v396
    %v419 = vcombine.high %v403, %v403
    %v420 = vcombine.high %v410, %v410
    %v421 = vcombine.high %v417, %v417
    %v422 = vlaneseq
    %v423 = vshrl.u32 %v422, 7
    %v424 = vsub.s32 0, %v423
    %v425 = vrot.slane %v396, %v424
    %v426 = vlaneseq
    %v427 = vshrl.u32 %v426, 7
    %v428 = vsub.s32 0, %v427
    %v429 = vrot.slane %v410, %v428
    %v430 = vlaneseq
    %v431 = vshrl.u32 %v430, 7
    %v432 = vsub.s32 0, %v431
    %v433 = vrot.slane %v418, %v432
    %v434 = vlaneseq
    %v435 = vshrl.u32 %v434, 7
    %v436 = vsub.s32 0, %v435
    %v437 = vrot.slane %v420, %v436
    %v438 = vlaneseq
    %v439 = vshrl.u32 %v438, 7
    %v440 = vsub.s32 0, %v439
    %v441 = vrot.slane %v403, %v440
    %v442 = vlaneseq
    %v443 = vshrl.u32 %v442, 7
    %v444 = vsub.s32 0, %v443
    %v445 = vrot.slane %v417, %v444
    %v446 = vlaneseq
    %v447 = vshrl.u32 %v446, 7
    %v448 = vsub.s32 0, %v447
    %v449 = vrot.slane %v419, %v448
    %v450 = vlaneseq
    %v451 = vshrl.u32 %v450, 7
    %v452 = vsub.s32 0, %v451
    %v453 = vrot.slane %v421, %v452
    %v462 = vmul.f32 %v425, %v367
    %v463 = vmul.f32 %v429, %v367
    %v464 = vmul.f32 %v433, %v367
    %v465 = vmul.f32 %v437, %v367
    %v466 = vmul.f32 %v441, %v367
    %v467 = vmul.f32 %v445, %v367
    %v468 = vmul.f32 %v449, %v367
    %v469 = vmul.f32 %v453, %v367
    %v471 = vcombine.high %v371, %v371
    %v473 = vunpack.c.l.s4 1966171168
    %v474 = vunpack.c.0.s8 %v473
    %v475 = vlaneseq
    %v476 = vshrl.u32 %v475, 7
    %v477 = vsub.s32 %v474, %v476
    %v478 = vrot.slane %v371, %v477
    %v480 = vunpack.c.l.s4 1966171168
    %v481 = vunpack.c.0.s8 %v480
    %v482 = vlaneseq
    %v483 = vshrl.u32 %v482, 7
    %v484 = vsub.s32 %v481, %v483
    %v485 = vrot.slane %v471, %v484
    %v486 = vcombine.high %v478, %v478
    %v487 = vcombine.high %v485, %v485
    %v489 = vunpack.c.l.s4 1966171168
    %v490 = vunpack.c.0.s8 %v489
    %v491 = vlaneseq
    %v492 = vshrl.u32 %v491, 7
    %v493 = vsub.s32 %v490, %v492
    %v494 = vrot.slane %v478, %v493
    %v496 = vunpack.c.l.s4 1966171168
    %v497 = vunpack.c.0.s8 %v496
    %v498 = vlaneseq
    %v499 = vshrl.u32 %v498, 7
    %v500 = vsub.s32 %v497, %v499
    %v501 = vrot.slane %v485, %v500
    %v503 = vunpack.c.l.s4 1966171168
    %v504 = vunpack.c.0.s8 %v503
    %v505 = vlaneseq
    %v506 = vshrl.u32 %v505, 7
    %v507 = vsub.s32 %v504, %v506
    %v508 = vrot.slane %v486, %v507
    %v510 = vunpack.c.l.s4 1966171168
    %v511 = vunpack.c.0.s8 %v510
    %v512 = vlaneseq
    %v513 = vshrl.u32 %v512, 7
    %v514 = vsub.s32 %v511, %v513
    %v515 = vrot.slane %v487, %v514
    %v516 = vcombine.high %v494, %v494
    %v517 = vcombine.high %v501, %v501
    %v518 = vcombine.high %v508, %v508
    %v519 = vcombine.high %v515, %v515
    %v520 = vlaneseq
    %v521 = vshrl.u32 %v520, 7
    %v522 = vsub.s32 0, %v521
    %v523 = vrot.slane %v494, %v522
    %v524 = vlaneseq
    %v525 = vshrl.u32 %v524, 7
    %v526 = vsub.s32 0, %v525
    %v527 = vrot.slane %v508, %v526
    %v528 = vlaneseq
    %v529 = vshrl.u32 %v528, 7
    %v530 = vsub.s32 0, %v529
    %v531 = vrot.slane %v516, %v530
    %v532 = vlaneseq
    %v533 = vshrl.u32 %v532, 7
    %v534 = vsub.s32 0, %v533
    %v535 = vrot.slane %v518, %v534
    %v536 = vlaneseq
    %v537 = vshrl.u32 %v536, 7
    %v538 = vsub.s32 0, %v537
    %v539 = vrot.slane %v501, %v538
    %v540 = vlaneseq
    %v541 = vshrl.u32 %v540, 7
    %v542 = vsub.s32 0, %v541
    %v543 = vrot.slane %v515, %v542
    %v544 = vlaneseq
    %v545 = vshrl.u32 %v544, 7
    %v546 = vsub.s32 0, %v545
    %v547 = vrot.slane %v517, %v546
    %v548 = vlaneseq
    %v549 = vshrl.u32 %v548, 7
    %v550 = vsub.s32 0, %v549
    %v551 = vrot.slane %v519, %v550
    %v560 = vmul.f32 %v523, %v369
    %v561 = vmul.f32 %v527, %v369
    %v562 = vmul.f32 %v531, %v369
    %v563 = vmul.f32 %v535, %v369
    %v564 = vmul.f32 %v539, %v369
    %v565 = vmul.f32 %v543, %v369
    %v566 = vmul.f32 %v547, %v369
    %v567 = vmul.f32 %v551, %v369
    %v568 = vsub.f32 %v462, %v560
    %v569 = vsub.f32 %v463, %v561
    %v570 = vsub.f32 %v464, %v562
    %v571 = vsub.f32 %v465, %v563
    %v572 = vsub.f32 %v466, %v564
    %v573 = vsub.f32 %v467, %v565
    %v574 = vsub.f32 %v468, %v566
    %v575 = vsub.f32 %v469, %v567
    %v576 = vmul.f32 %v425, %v369
    %v577 = vmul.f32 %v429, %v369
    %v578 = vmul.f32 %v433, %v369
    %v579 = vmul.f32 %v437, %v369
    %v580 = vmul.f32 %v441, %v369
    %v581 = vmul.f32 %v445, %v369
    %v582 = vmul.f32 %v449, %v369
    %v583 = vmul.f32 %v453, %v369
    %v584 = vmul.f32 %v523, %v367
    %v585 = vmul.f32 %v527, %v367
    %v586 = vmul.f32 %v531, %v367
    %v587 = vmul.f32 %v535, %v367
    %v588 = vmul.f32 %v539, %v367
    %v589 = vmul.f32 %v543, %v367
    %v590 = vmul.f32 %v547, %v367
    %v591 = vmul.f32 %v551, %v367
    %v592 = vadd.f32 %v576, %v584
    %v593 = vadd.f32 %v577, %v585
    %v594 = vadd.f32 %v578, %v586
    %v595 = vadd.f32 %v579, %v587
    %v596 = vadd.f32 %v580, %v588
    %v597 = vadd.f32 %v581, %v589
    %v598 = vadd.f32 %v582, %v590
    %v599 = vadd.f32 %v583, %v591
    %v600 = vmul.f32 %v568, 0.0625
    %v601 = vmul.f32 %v569, 0.0625
    %v602 = vmul.f32 %v570, 0.0625
    %v603 = vmul.f32 %v571, 0.0625
    %v604 = vmul.f32 %v572, 0.0625
    %v605 = vmul.f32 %v573, 0.0625
    %v606 = vmul.f32 %v574, 0.0625
    %v607 = vmul.f32 %v575, 0.0625
    %v608 = vmul.f32 %v592, 0.0625
    %v609 = vmul.f32 %v593, 0.0625
    %v610 = vmul.f32 %v594, 0.0625
    %v611 = vmul.f32 %v595, 0.0625
    %v612 = vmul.f32 %v596, 0.0625
    %v613 = vmul.f32 %v597, 0.0625
    %v614 = vmul.f32 %v598, 0.0625
    %v615 = vmul.f32 %v599, 0.0625
    %616 = vmatprep.subr.mxu0 0.0
    %617 = vmatpush1.msra.mxu0 %v92
    %618 = vmatprep.subr.mxu0 0.0
    %619 = vmatpush1.msra.mxu0 %v93
    %620 = vmatprep.subr.mxu0 0.0
    %621 = vmatpush1.msra.mxu0 %v94
    %622 = vmatprep.subr.mxu0 0.0
    %623 = vmatpush1.msra.mxu0 %v95
    %624 = vmatprep.subr.mxu0 0.0
    %625 = vmatpush1.msra.mxu0 %v96
    %626 = vmatprep.subr.mxu0 0.0
    %627 = vmatpush1.msra.mxu0 %v97
    %628 = vmatprep.subr.mxu0 0.0
    %629 = vmatpush1.msra.mxu0 %v98
    %630 = vmatprep.subr.mxu0 0.0
    %631 = vmatpush1.msra.mxu0 %v99
    %632 = vmatprep.subr.mxu0 0.0
    %633 = vmatpush1.msra.mxu0 %v100
    %634 = vmatprep.subr.mxu0 0.0
    %635 = vmatpush1.msra.mxu0 %v101
    %636 = vmatprep.subr.mxu0 0.0
    %637 = vmatpush1.msra.mxu0 %v102
    %638 = vmatprep.subr.mxu0 0.0
    %639 = vmatpush1.msra.mxu0 %v103
    %640 = vmatprep.subr.mxu0 0.0
    %641 = vmatpush1.msra.mxu0 %v104
    %642 = vmatprep.subr.mxu0 0.0
    %643 = vmatpush1.msra.mxu0 %v105
    %644 = vmatprep.subr.mxu0 0.0
    %645 = vmatpush1.msra.mxu0 %v106
    %646 = vmatprep.subr.mxu0 0.0
    %647 = vmatpush1.msra.mxu0 %v107
    %648 = vmatprep.subr.mxu0 0.0
    %649 = vmatpush1.msra.mxu0 0.0
    %650 = vmatprep.subr.mxu0 0.0
    %651 = vmatpush1.msra.mxu0 0.0
    %652 = vmatprep.subr.mxu0 0.0
    %653 = vmatpush1.msra.mxu0 0.0
    %654 = vmatprep.subr.mxu0 0.0
    %655 = vmatpush1.msra.mxu0 0.0
    %656 = vmatprep.subr.mxu0 0.0
    %657 = vmatpush1.msra.mxu0 0.0
    %658 = vmatprep.subr.mxu0 0.0
    %659 = vmatpush1.msra.mxu0 0.0
    %660 = vmatprep.subr.mxu0 0.0
    %661 = vmatpush1.msra.mxu0 0.0
    %662 = vmatprep.subr.mxu0 0.0
    %663 = vmatpush1.msra.mxu0 0.0
    %664 = vmatprep.subr.mxu0 0.0
    %665 = vmatpush1.msra.mxu0 0.0
    %666 = vmatprep.subr.mxu0 0.0
    %667 = vmatpush1.msra.mxu0 0.0
    %668 = vmatprep.subr.mxu0 0.0
    %669 = vmatpush1.msra.mxu0 0.0
    %670 = vmatprep.subr.mxu0 0.0
    %671 = vmatpush1.msra.mxu0 0.0
    %672 = vmatprep.subr.mxu0 0.0
    %673 = vmatpush1.msra.mxu0 0.0
    %674 = vmatprep.subr.mxu0 0.0
    %675 = vmatpush1.msra.mxu0 0.0
    %676 = vmatprep.subr.mxu0 0.0
    %677 = vmatpush1.msra.mxu0 0.0
    %678 = vmatprep.subr.mxu0 0.0
    %679 = vmatpush1.msra.mxu0 0.0
    %680 = vmatprep.mubr.f32.mxu0 0.0
    %681 = vmatmul.mubr.f32.gmra.mrb[0].mxu0 %v600
    %v682 = vpop.f32.mrb[0].mxu0
    %v683 = vadd.f32 0.0, %v682
    %v684 = vpop.f32.mrb[0].mxu0
    %685 = vmatprep.mubr.f32.mxu0 0.0
    %686 = vmatmul.mubr.f32.gmra.mrb[0].mxu0 %v601
    %v687 = vpop.f32.mrb[0].mxu0
    %v688 = vadd.f32 0.0, %v687
    %v689 = vpop.f32.mrb[0].mxu0
    %690 = vmatprep.mubr.f32.mxu0 0.0
    %691 = vmatmul.mubr.f32.gmra.mrb[0].mxu0 %v602
    %v692 = vpop.f32.mrb[0].mxu0
    %v693 = vadd.f32 0.0, %v692
    %v694 = vpop.f32.mrb[0].mxu0
    %695 = vmatprep.mubr.f32.mxu0 0.0
    %696 = vmatmul.mubr.f32.gmra.mrb[0].mxu0 %v603
    %v697 = vpop.f32.mrb[0].mxu0
    %v698 = vadd.f32 0.0, %v697
    %v699 = vpop.f32.mrb[0].mxu0
    %700 = vmatprep.mubr.f32.mxu0 0.0
    %701 = vmatmul.mubr.f32.gmra.mrb[0].mxu0 %v604
    %v702 = vpop.f32.mrb[0].mxu0
    %v703 = vadd.f32 0.0, %v702
    %v704 = vpop.f32.mrb[0].mxu0
    %705 = vmatprep.mubr.f32.mxu0 0.0
    %706 = vmatmul.mubr.f32.gmra.mrb[0].mxu0 %v605
    %v707 = vpop.f32.mrb[0].mxu0
    %v708 = vadd.f32 0.0, %v707
    %v709 = vpop.f32.mrb[0].mxu0
    %710 = vmatprep.mubr.f32.mxu0 0.0
    %711 = vmatmul.mubr.f32.gmra.mrb[0].mxu0 %v606
    %v712 = vpop.f32.mrb[0].mxu0
    %v713 = vadd.f32 0.0, %v712
    %v714 = vpop.f32.mrb[0].mxu0
    %715 = vmatprep.mubr.f32.mxu0 0.0
    %716 = vmatmul.mubr.f32.gmra.mrb[0].mxu0 %v607
    %v717 = vpop.f32.mrb[0].mxu0
    %v718 = vadd.f32 0.0, %v717
    %v719 = vpop.f32.mrb[0].mxu0
    %720 = vdwg.mxu0
    %721 = vmatprep.subr.mxu0 0.0
    %722 = vmatpush1.msra.mxu0 %v108
    %723 = vmatprep.subr.mxu0 0.0
    %724 = vmatpush1.msra.mxu0 %v109
    %725 = vmatprep.subr.mxu0 0.0
    %726 = vmatpush1.msra.mxu0 %v110
    %727 = vmatprep.subr.mxu0 0.0
    %728 = vmatpush1.msra.mxu0 %v111
    %729 = vmatprep.subr.mxu0 0.0
    %730 = vmatpush1.msra.mxu0 %v112
    %731 = vmatprep.subr.mxu0 0.0
    %732 = vmatpush1.msra.mxu0 %v113
    %733 = vmatprep.subr.mxu0 0.0
    %734 = vmatpush1.msra.mxu0 %v114
    %735 = vmatprep.subr.mxu0 0.0
    %736 = vmatpush1.msra.mxu0 %v115
    %737 = vmatprep.subr.mxu0 0.0
    %738 = vmatpush1.msra.mxu0 %v116
    %739 = vmatprep.subr.mxu0 0.0
    %740 = vmatpush1.msra.mxu0 %v117
    %741 = vmatprep.subr.mxu0 0.0
    %742 = vmatpush1.msra.mxu0 %v118
    %743 = vmatprep.subr.mxu0 0.0
    %744 = vmatpush1.msra.mxu0 %v119
    %745 = vmatprep.subr.mxu0 0.0
    %746 = vmatpush1.msra.mxu0 %v120
    %747 = vmatprep.subr.mxu0 0.0
    %748 = vmatpush1.msra.mxu0 %v121
    %749 = vmatprep.subr.mxu0 0.0
    %750 = vmatpush1.msra.mxu0 %v122
    %751 = vmatprep.subr.mxu0 0.0
    %752 = vmatpush1.msra.mxu0 %v123
    %753 = vmatprep.subr.mxu0 0.0
    %754 = vmatpush1.msra.mxu0 0.0
    %755 = vmatprep.subr.mxu0 0.0
    %756 = vmatpush1.msra.mxu0 0.0
    %757 = vmatprep.subr.mxu0 0.0
    %758 = vmatpush1.msra.mxu0 0.0
    %759 = vmatprep.subr.mxu0 0.0
    %760 = vmatpush1.msra.mxu0 0.0
    %761 = vmatprep.subr.mxu0 0.0
    %762 = vmatpush1.msra.mxu0 0.0
    %763 = vmatprep.subr.mxu0 0.0
    %764 = vmatpush1.msra.mxu0 0.0
    %765 = vmatprep.subr.mxu0 0.0
    %766 = vmatpush1.msra.mxu0 0.0
    %767 = vmatprep.subr.mxu0 0.0
    %768 = vmatpush1.msra.mxu0 0.0
    %769 = vmatprep.subr.mxu0 0.0
    %770 = vmatpush1.msra.mxu0 0.0
    %771 = vmatprep.subr.mxu0 0.0
    %772 = vmatpush1.msra.mxu0 0.0
    %773 = vmatprep.subr.mxu0 0.0
    %774 = vmatpush1.msra.mxu0 0.0
    %775 = vmatprep.subr.mxu0 0.0
    %776 = vmatpush1.msra.mxu0 0.0
    %777 = vmatprep.subr.mxu0 0.0
    %778 = vmatpush1.msra.mxu0 0.0
    %779 = vmatprep.subr.mxu0 0.0
    %780 = vmatpush1.msra.mxu0 0.0
    %781 = vmatprep.subr.mxu0 0.0
    %782 = vmatpush1.msra.mxu0 0.0
    %783 = vmatprep.subr.mxu0 0.0
    %784 = vmatpush1.msra.mxu0 0.0
    %785 = vmatprep.mubr.f32.mxu0 0.0
    %786 = vmatmul.mubr.f32.gmra.mrb[0].mxu0 %v608
    %v787 = vpop.f32.mrb[0].mxu0
    %v788 = vadd.f32 0.0, %v787
    %v789 = vpop.f32.mrb[0].mxu0
    %790 = vmatprep.mubr.f32.mxu0 0.0
    %791 = vmatmul.mubr.f32.gmra.mrb[0].mxu0 %v609
    %v792 = vpop.f32.mrb[0].mxu0
    %v793 = vadd.f32 0.0, %v792
    %v794 = vpop.f32.mrb[0].mxu0
    %795 = vmatprep.mubr.f32.mxu0 0.0
    %796 = vmatmul.mubr.f32.gmra.mrb[0].mxu0 %v610
    %v797 = vpop.f32.mrb[0].mxu0
    %v798 = vadd.f32 0.0, %v797
    %v799 = vpop.f32.mrb[0].mxu0
    %800 = vmatprep.mubr.f32.mxu0 0.0
    %801 = vmatmul.mubr.f32.gmra.mrb[0].mxu0 %v611
    %v802 = vpop.f32.mrb[0].mxu0
    %v803 = vadd.f32 0.0, %v802
    %v804 = vpop.f32.mrb[0].mxu0
    %805 = vmatprep.mubr.f32.mxu0 0.0
    %806 = vmatmul.mubr.f32.gmra.mrb[0].mxu0 %v612
    %v807 = vpop.f32.mrb[0].mxu0
    %v808 = vadd.f32 0.0, %v807
    %v809 = vpop.f32.mrb[0].mxu0
    %810 = vmatprep.mubr.f32.mxu0 0.0
    %811 = vmatmul.mubr.f32.gmra.mrb[0].mxu0 %v613
    %v812 = vpop.f32.mrb[0].mxu0
    %v813 = vadd.f32 0.0, %v812
    %v814 = vpop.f32.mrb[0].mxu0
    %815 = vmatprep.mubr.f32.mxu0 0.0
    %816 = vmatmul.mubr.f32.gmra.mrb[0].mxu0 %v614
    %v817 = vpop.f32.mrb[0].mxu0
    %v818 = vadd.f32 0.0, %v817
    %v819 = vpop.f32.mrb[0].mxu0
    %820 = vmatprep.mubr.f32.mxu0 0.0
    %821 = vmatmul.mubr.f32.gmra.mrb[0].mxu0 %v615
    %v822 = vpop.f32.mrb[0].mxu0
    %v823 = vadd.f32 0.0, %v822
    %v824 = vpop.f32.mrb[0].mxu0
    %825 = vdwg.mxu0
    %v826 = vadd.f32 %v600, %v608
    %v827 = vadd.f32 %v601, %v609
    %v828 = vadd.f32 %v602, %v610
    %v829 = vadd.f32 %v603, %v611
    %v830 = vadd.f32 %v604, %v612
    %v831 = vadd.f32 %v605, %v613
    %v832 = vadd.f32 %v606, %v614
    %v833 = vadd.f32 %v607, %v615
    %834 = vmatprep.subr.mxu0 0.0
    %835 = vmatpush1.msra.mxu0 %v140
    %836 = vmatprep.subr.mxu0 0.0
    %837 = vmatpush1.msra.mxu0 %v141
    %838 = vmatprep.subr.mxu0 0.0
    %839 = vmatpush1.msra.mxu0 %v142
    %840 = vmatprep.subr.mxu0 0.0
    %841 = vmatpush1.msra.mxu0 %v143
    %842 = vmatprep.subr.mxu0 0.0
    %843 = vmatpush1.msra.mxu0 %v144
    %844 = vmatprep.subr.mxu0 0.0
    %845 = vmatpush1.msra.mxu0 %v145
    %846 = vmatprep.subr.mxu0 0.0
    %847 = vmatpush1.msra.mxu0 %v146
    %848 = vmatprep.subr.mxu0 0.0
    %849 = vmatpush1.msra.mxu0 %v147
    %850 = vmatprep.subr.mxu0 0.0
    %851 = vmatpush1.msra.mxu0 %v148
    %852 = vmatprep.subr.mxu0 0.0
    %853 = vmatpush1.msra.mxu0 %v149
    %854 = vmatprep.subr.mxu0 0.0
    %855 = vmatpush1.msra.mxu0 %v150
    %856 = vmatprep.subr.mxu0 0.0
    %857 = vmatpush1.msra.mxu0 %v151
    %858 = vmatprep.subr.mxu0 0.0
    %859 = vmatpush1.msra.mxu0 %v152
    %860 = vmatprep.subr.mxu0 0.0
    %861 = vmatpush1.msra.mxu0 %v153
    %862 = vmatprep.subr.mxu0 0.0
    %863 = vmatpush1.msra.mxu0 %v154
    %864 = vmatprep.subr.mxu0 0.0
    %865 = vmatpush1.msra.mxu0 %v155
    %866 = vmatprep.subr.mxu0 0.0
    %867 = vmatpush1.msra.mxu0 0.0
    %868 = vmatprep.subr.mxu0 0.0
    %869 = vmatpush1.msra.mxu0 0.0
    %870 = vmatprep.subr.mxu0 0.0
    %871 = vmatpush1.msra.mxu0 0.0
    %872 = vmatprep.subr.mxu0 0.0
    %873 = vmatpush1.msra.mxu0 0.0
    %874 = vmatprep.subr.mxu0 0.0
    %875 = vmatpush1.msra.mxu0 0.0
    %876 = vmatprep.subr.mxu0 0.0
    %877 = vmatpush1.msra.mxu0 0.0
    %878 = vmatprep.subr.mxu0 0.0
    %879 = vmatpush1.msra.mxu0 0.0
    %880 = vmatprep.subr.mxu0 0.0
    %881 = vmatpush1.msra.mxu0 0.0
    %882 = vmatprep.subr.mxu0 0.0
    %883 = vmatpush1.msra.mxu0 0.0
    %884 = vmatprep.subr.mxu0 0.0
    %885 = vmatpush1.msra.mxu0 0.0
    %886 = vmatprep.subr.mxu0 0.0
    %887 = vmatpush1.msra.mxu0 0.0
    %888 = vmatprep.subr.mxu0 0.0
    %889 = vmatpush1.msra.mxu0 0.0
    %890 = vmatprep.subr.mxu0 0.0
    %891 = vmatpush1.msra.mxu0 0.0
    %892 = vmatprep.subr.mxu0 0.0
    %893 = vmatpush1.msra.mxu0 0.0
    %894 = vmatprep.subr.mxu0 0.0
    %895 = vmatpush1.msra.mxu0 0.0
    %896 = vmatprep.subr.mxu0 0.0
    %897 = vmatpush1.msra.mxu0 0.0
    %898 = vmatprep.mubr.f32.mxu0 0.0
    %899 = vmatmul.mubr.f32.gmra.mrb[0].mxu0 %v826
    %v900 = vpop.f32.mrb[0].mxu0
    %v901 = vadd.f32 0.0, %v900
    %v902 = vpop.f32.mrb[0].mxu0
    %903 = vmatprep.mubr.f32.mxu0 0.0
    %904 = vmatmul.mubr.f32.gmra.mrb[0].mxu0 %v827
    %v905 = vpop.f32.mrb[0].mxu0
    %v906 = vadd.f32 0.0, %v905
    %v907 = vpop.f32.mrb[0].mxu0
    %908 = vmatprep.mubr.f32.mxu0 0.0
    %909 = vmatmul.mubr.f32.gmra.mrb[0].mxu0 %v828
    %v910 = vpop.f32.mrb[0].mxu0
    %v911 = vadd.f32 0.0, %v910
    %v912 = vpop.f32.mrb[0].mxu0
    %913 = vmatprep.mubr.f32.mxu0 0.0
    %914 = vmatmul.mubr.f32.gmra.mrb[0].mxu0 %v829
    %v915 = vpop.f32.mrb[0].mxu0
    %v916 = vadd.f32 0.0, %v915
    %v917 = vpop.f32.mrb[0].mxu0
    %918 = vmatprep.mubr.f32.mxu0 0.0
    %919 = vmatmul.mubr.f32.gmra.mrb[0].mxu0 %v830
    %v920 = vpop.f32.mrb[0].mxu0
    %v921 = vadd.f32 0.0, %v920
    %v922 = vpop.f32.mrb[0].mxu0
    %923 = vmatprep.mubr.f32.mxu0 0.0
    %924 = vmatmul.mubr.f32.gmra.mrb[0].mxu0 %v831
    %v925 = vpop.f32.mrb[0].mxu0
    %v926 = vadd.f32 0.0, %v925
    %v927 = vpop.f32.mrb[0].mxu0
    %928 = vmatprep.mubr.f32.mxu0 0.0
    %929 = vmatmul.mubr.f32.gmra.mrb[0].mxu0 %v832
    %v930 = vpop.f32.mrb[0].mxu0
    %v931 = vadd.f32 0.0, %v930
    %v932 = vpop.f32.mrb[0].mxu0
    %933 = vmatprep.mubr.f32.mxu0 0.0
    %934 = vmatmul.mubr.f32.gmra.mrb[0].mxu0 %v833
    %v935 = vpop.f32.mrb[0].mxu0
    %v936 = vadd.f32 0.0, %v935
    %v937 = vpop.f32.mrb[0].mxu0
    %938 = vdwg.mxu0
    %v939 = vadd.f32 %v683, %v788
    %v940 = vadd.f32 %v688, %v793
    %v941 = vadd.f32 %v693, %v798
    %v942 = vadd.f32 %v698, %v803
    %v943 = vadd.f32 %v703, %v808
    %v944 = vadd.f32 %v708, %v813
    %v945 = vadd.f32 %v713, %v818
    %v946 = vadd.f32 %v718, %v823
    %v947 = vsub.f32 %v901, %v683
    %v948 = vsub.f32 %v906, %v688
    %v949 = vsub.f32 %v911, %v693
    %v950 = vsub.f32 %v916, %v698
    %v951 = vsub.f32 %v921, %v703
    %v952 = vsub.f32 %v926, %v708
    %v953 = vsub.f32 %v931, %v713
    %v954 = vsub.f32 %v936, %v718
    %v955 = vadd.f32 %v947, %v788
    %v956 = vadd.f32 %v948, %v793
    %v957 = vadd.f32 %v949, %v798
    %v958 = vadd.f32 %v950, %v803
    %v959 = vadd.f32 %v951, %v808
    %v960 = vadd.f32 %v952, %v813
    %v961 = vadd.f32 %v953, %v818
    %v962 = vadd.f32 %v954, %v823
    %v963 = vmul.f32 %v939, %v939
    %v964 = vmul.f32 %v940, %v940
    %v965 = vmul.f32 %v941, %v941
    %v966 = vmul.f32 %v942, %v942
    %v967 = vmul.f32 %v943, %v943
    %v968 = vmul.f32 %v944, %v944
    %v969 = vmul.f32 %v945, %v945
    %v970 = vmul.f32 %v946, %v946
    %v971 = vmul.f32 %v955, %v955
    %v972 = vmul.f32 %v956, %v956
    %v973 = vmul.f32 %v957, %v957
    %v974 = vmul.f32 %v958, %v958
    %v975 = vmul.f32 %v959, %v959
    %v976 = vmul.f32 %v960, %v960
    %v977 = vmul.f32 %v961, %v961
    %v978 = vmul.f32 %v962, %v962
    %v979 = vadd.f32 %v963, %v971
    %v980 = vadd.f32 %v964, %v972
    %v981 = vadd.f32 %v965, %v973
    %v982 = vadd.f32 %v966, %v974
    %v983 = vadd.f32 %v967, %v975
    %v984 = vadd.f32 %v968, %v976
    %v985 = vadd.f32 %v969, %v977
    %v986 = vadd.f32 %v970, %v978
    %v987 = vrsqrt.pop %v979
    %v988 = vmul.f32 %v979, %v987
    %vm989 = vcmp.eq.f32.partialorder %v979, inf
    %v990 = vsel %vm989, %v979, %v988
    %vm991 = vcmp.eq.f32.partialorder %v979, 0.0
    %v992 = vand.u32 %v979, 2147483648
    %v993 = vsel %vm991, %v992, %v990
    %v994 = vrsqrt.pop %v980
    %v995 = vmul.f32 %v980, %v994
    %vm996 = vcmp.eq.f32.partialorder %v980, inf
    %v997 = vsel %vm996, %v980, %v995
    %vm998 = vcmp.eq.f32.partialorder %v980, 0.0
    %v999 = vand.u32 %v980, 2147483648
    %v1000 = vsel %vm998, %v999, %v997
    %v1001 = vrsqrt.pop %v981
    %v1002 = vmul.f32 %v981, %v1001
    %vm1003 = vcmp.eq.f32.partialorder %v981, inf
    %v1004 = vsel %vm1003, %v981, %v1002
    %vm1005 = vcmp.eq.f32.partialorder %v981, 0.0
    %v1006 = vand.u32 %v981, 2147483648
    %v1007 = vsel %vm1005, %v1006, %v1004
    %v1008 = vrsqrt.pop %v982
    %v1009 = vmul.f32 %v982, %v1008
    %vm1010 = vcmp.eq.f32.partialorder %v982, inf
    %v1011 = vsel %vm1010, %v982, %v1009
    %vm1012 = vcmp.eq.f32.partialorder %v982, 0.0
    %v1013 = vand.u32 %v982, 2147483648
    %v1014 = vsel %vm1012, %v1013, %v1011
    %v1015 = vrsqrt.pop %v983
    %v1016 = vmul.f32 %v983, %v1015
    %vm1017 = vcmp.eq.f32.partialorder %v983, inf
    %v1018 = vsel %vm1017, %v983, %v1016
    %vm1019 = vcmp.eq.f32.partialorder %v983, 0.0
    %v1020 = vand.u32 %v983, 2147483648
    %v1021 = vsel %vm1019, %v1020, %v1018
    %v1022 = vrsqrt.pop %v984
    %v1023 = vmul.f32 %v984, %v1022
    %vm1024 = vcmp.eq.f32.partialorder %v984, inf
    %v1025 = vsel %vm1024, %v984, %v1023
    %vm1026 = vcmp.eq.f32.partialorder %v984, 0.0
    %v1027 = vand.u32 %v984, 2147483648
    %v1028 = vsel %vm1026, %v1027, %v1025
    %v1029 = vrsqrt.pop %v985
    %v1030 = vmul.f32 %v985, %v1029
    %vm1031 = vcmp.eq.f32.partialorder %v985, inf
    %v1032 = vsel %vm1031, %v985, %v1030
    %vm1033 = vcmp.eq.f32.partialorder %v985, 0.0
    %v1034 = vand.u32 %v985, 2147483648
    %v1035 = vsel %vm1033, %v1034, %v1032
    %v1036 = vrsqrt.pop %v986
    %v1037 = vmul.f32 %v986, %v1036
    %vm1038 = vcmp.eq.f32.partialorder %v986, inf
    %v1039 = vsel %vm1038, %v986, %v1037
    %vm1040 = vcmp.eq.f32.partialorder %v986, 0.0
    %v1041 = vand.u32 %v986, 2147483648
    %v1042 = vsel %vm1040, %v1041, %v1039
    %vm1043 = vcmp.gt.f32.partialorder %v993, 0.0
    %vm1044 = vcmp.gt.f32.partialorder %v1000, 0.0
    %vm1045 = vcmp.gt.f32.partialorder %v1007, 0.0
    %vm1046 = vcmp.gt.f32.partialorder %v1014, 0.0
    %vm1047 = vcmp.gt.f32.partialorder %v1021, 0.0
    %v1048 = vsel %vm1043, %v993, 1.0
    %v1049 = vsel %vm1044, %v1000, 1.0
    %v1050 = vsel %vm1045, %v1007, 1.0
    %v1051 = vsel %vm1046, %v1014, 1.0
    %v1052 = vsel %vm1047, %v1021, 1.0
    %v1053 = vrcp.pop %v1048
    %v1054 = vmul.f32 1.0, %v1053
    %v1055 = vrcp.pop %v1049
    %v1056 = vmul.f32 1.0, %v1055
    %v1057 = vrcp.pop %v1050
    %v1058 = vmul.f32 1.0, %v1057
    %v1059 = vrcp.pop %v1051
    %v1060 = vmul.f32 1.0, %v1059
    %v1061 = vrcp.pop %v1052
    %v1062 = vmul.f32 1.0, %v1061
    %v1063 = vmul.f32 %v939, %v1054
    %v1064 = vmul.f32 %v940, %v1056
    %v1065 = vmul.f32 %v941, %v1058
    %v1066 = vmul.f32 %v942, %v1060
    %v1067 = vmul.f32 %v943, %v1062
    %v1068 = vsel %vm1043, %v1063, 1.0
    %v1069 = vsel %vm1044, %v1064, 1.0
    %v1070 = vsel %vm1045, %v1065, 1.0
    %v1071 = vsel %vm1046, %v1066, 1.0
    %v1072 = vsel %vm1047, %v1067, 1.0
    %v1073 = vmul.f32 %v955, %v1054
    %v1074 = vmul.f32 %v956, %v1056
    %v1075 = vmul.f32 %v957, %v1058
    %v1076 = vmul.f32 %v958, %v1060
    %v1077 = vmul.f32 %v959, %v1062
    %v1078 = vsel %vm1043, %v1073, 0.0
    %v1079 = vsel %vm1044, %v1074, 0.0
    %v1080 = vsel %vm1045, %v1075, 0.0
    %v1081 = vsel %vm1046, %v1076, 0.0
    %v1082 = vsel %vm1047, %v1077, 0.0
    %1083 = vadd.xlane.f32.xlu0 %v993
    %v1084 = vpop.xlane.xlu0 %1083
    %1085 = vadd.xlane.f32.xlu0 %v1000
    %v1086 = vpop.xlane.xlu0 %1085
    %1087 = vadd.xlane.f32.xlu0 %v1007
    %v1088 = vpop.xlane.xlu0 %1087
    %1089 = vadd.xlane.f32.xlu0 %v1014
    %v1090 = vpop.xlane.xlu0 %1089
    %1091 = vadd.xlane.f32.xlu0 %v1021
    %v1092 = vpop.xlane.xlu0 %1091
    %1093 = vadd.xlane.f32.xlu0 %v1028
    %v1094 = vpop.xlane.xlu0 %1093
    %1095 = vadd.xlane.f32.xlu0 %v1035
    %v1096 = vpop.xlane.xlu0 %1095
    %1097 = vadd.xlane.f32.xlu0 %v1042
    %v1098 = vpop.xlane.xlu0 %1097
    %v1099 = vmul.f32 %v1084, 0.0625
    %v1100 = vmul.f32 %v1086, 0.0625
    %v1101 = vmul.f32 %v1088, 0.0625
    %v1102 = vmul.f32 %v1090, 0.0625
    %v1103 = vmul.f32 %v1092, 0.0625
    %v1104 = vmul.f32 %v1094, 0.0625
    %v1105 = vmul.f32 %v1096, 0.0625
    %v1106 = vmul.f32 %v1098, 0.0625
    %vm1107 = vcmask 7168
    %1108 = vst.msk [vmem:[%s6] sm:$0xff] %vm1107, %v1099
    %1109 = vst.msk [vmem:[%s6 + $0x8] sm:$0xff] %vm1107, %v1100
    %1110 = vst.msk [vmem:[%s6 + $0x10] sm:$0xff] %vm1107, %v1101
    %1111 = vst.msk [vmem:[%s6 + $0x18] sm:$0xff] %vm1107, %v1102
    %1112 = vst.msk [vmem:[%s6 + $0x20] sm:$0xff] %vm1107, %v1103
    %1113 = vst.msk [vmem:[%s6 + $0x28] sm:$0xff] %vm1107, %v1104
    %1114 = vst.msk [vmem:[%s6 + $0x30] sm:$0xff] %vm1107, %v1105
    %1115 = vst.msk [vmem:[%s6 + $0x38] sm:$0xff] %vm1107, %v1106
    %1116 = vst [vmem:[#allocation11] sm:$0xff] 0.0
    %1117 = vst [vmem:[#allocation12] sm:$0xff] 0.0
    %v1118 = vmul.f32 %v993, %v993
    %v1119 = vmul.f32 %v1118, 0.0
    %1120 = vadd.xlane.f32.xlu0 %v1118
    %v1121 = vpop.xlane.xlu0 %1120
    %v1122 = vmul.f32 %v1121, 0.0625
    %1123 = vst.msk [vmem:[#allocation11] sm:$0xff] %vm1107, %v1122
    %1124 = vadd.xlane.f32.xlu0 %v1119
    %v1125 = vpop.xlane.xlu0 %1124
    %v1126 = vmul.f32 %v1125, 0.0625
    %1127 = vst.msk [vmem:[#allocation12] sm:$0xff] %vm1107, %v1126
    %v1128 = vmul.f32 %v1000, %v1000
    %v1129 = vmul.f32 %v1128, 0.0
    %1130 = vadd.xlane.f32.xlu0 %v1128
    %v1131 = vpop.xlane.xlu0 %1130
    %v1132 = vmul.f32 %v1131, 0.0625
    %vm1133 = vcmask 15368
    %1134 = vst.msk [vmem:[#allocation11] sm:$0xff] %vm1133, %v1132
    %1135 = vadd.xlane.f32.xlu0 %v1129
    %v1136 = vpop.xlane.xlu0 %1135
    %v1137 = vmul.f32 %v1136, 0.0625
    %1138 = vst.msk [vmem:[#allocation12] sm:$0xff] %vm1133, %v1137
    %v1139 = vmul.f32 %v1007, %v1007
    %v1140 = vmul.f32 %v1139, 0.0
    %1141 = vadd.xlane.f32.xlu0 %v1139
    %v1142 = vpop.xlane.xlu0 %1141
    %v1143 = vmul.f32 %v1142, 0.0625
    %vm1144 = vcmask 23568
    %1145 = vst.msk [vmem:[#allocation11] sm:$0xff] %vm1144, %v1143
    %1146 = vadd.xlane.f32.xlu0 %v1140
    %v1147 = vpop.xlane.xlu0 %1146
    %v1148 = vmul.f32 %v1147, 0.0625
    %1149 = vst.msk [vmem:[#allocation12] sm:$0xff] %vm1144, %v1148
    %v1150 = vmul.f32 %v1014, %v1014
    %v1151 = vmul.f32 %v1150, 0.0
    %1152 = vadd.xlane.f32.xlu0 %v1150
    %v1153 = vpop.xlane.xlu0 %1152
    %v1154 = vmul.f32 %v1153, 0.0625
    %vm1155 = vcmask 31768
    %1156 = vst.msk [vmem:[#allocation11] sm:$0xff] %vm1155, %v1154
    %1157 = vadd.xlane.f32.xlu0 %v1151
    %v1158 = vpop.xlane.xlu0 %1157
    %v1159 = vmul.f32 %v1158, 0.0625
    %1160 = vst.msk [vmem:[#allocation12] sm:$0xff] %vm1155, %v1159
    %v1161 = vmul.f32 %v1021, %v1021
    %v1162 = vmul.f32 %v1161, 0.0
    %1163 = vadd.xlane.f32.xlu0 %v1161
    %v1164 = vpop.xlane.xlu0 %1163
    %v1165 = vmul.f32 %v1164, 0.0625
    %vm1166 = vcmask 39968
    %1167 = vst.msk [vmem:[#allocation11] sm:$0xff] %vm1166, %v1165
    %1168 = vadd.xlane.f32.xlu0 %v1162
    %v1169 = vpop.xlane.xlu0 %1168
    %v1170 = vmul.f32 %v1169, 0.0625
    %1171 = vst.msk [vmem:[#allocation12] sm:$0xff] %vm1166, %v1170
    %v1172 = vsub.f32 0.0, %v1078
    %v1173 = vmul.f32 %v1172, 0.0
    %v1174 = vsub.f32 %v1068, %v1173
    %v1175 = vmul.f32 %v1068, 0.0
    %v1176 = vadd.f32 %v1172, %v1175
    %v1177 = vmul.f32 %v1176, 0.0
    %v1178 = vsub.f32 %v1174, %v1177
    %v1179 = vmul.f32 %v1118, %v1178
    %v1180 = vmul.f32 %v1174, 0.0
    %v1181 = vadd.f32 %v1176, %v1180
    %v1182 = vmul.f32 %v1118, %v1181
    %1183 = vadd.xlane.f32.xlu0 %v1179
    %v1184 = vpop.xlane.xlu0 %1183
    %v1185 = vmul.f32 %v1184, 0.0625
    %vm1186 = vcmask 48168
    %1187 = vst.msk [vmem:[#allocation11] sm:$0xff] %vm1186, %v1185
    %1188 = vadd.xlane.f32.xlu0 %v1182
    %v1189 = vpop.xlane.xlu0 %1188
    %v1190 = vmul.f32 %v1189, 0.0625
    %1191 = vst.msk [vmem:[#allocation12] sm:$0xff] %vm1186, %v1190
    %v1192 = vsub.f32 0.0, %v1079
    %v1193 = vmul.f32 %v1192, 0.0
    %v1194 = vsub.f32 %v1069, %v1193
    %v1195 = vmul.f32 %v1069, 0.0
    %v1196 = vadd.f32 %v1192, %v1195
    %v1197 = vmul.f32 %v1196, 0.0
    %v1198 = vsub.f32 %v1194, %v1197
    %v1199 = vmul.f32 %v1128, %v1198
    %v1200 = vmul.f32 %v1194, 0.0
    %v1201 = vadd.f32 %v1196, %v1200
    %v1202 = vmul.f32 %v1128, %v1201
    %1203 = vadd.xlane.f32.xlu0 %v1199
    %v1204 = vpop.xlane.xlu0 %1203
    %v1205 = vmul.f32 %v1204, 0.0625
    %vm1206 = vcmask 56368
    %1207 = vst.msk [vmem:[#allocation11] sm:$0xff] %vm1206, %v1205
    %1208 = vadd.xlane.f32.xlu0 %v1202
    %v1209 = vpop.xlane.xlu0 %1208
    %v1210 = vmul.f32 %v1209, 0.0625
    %1211 = vst.msk [vmem:[#allocation12] sm:$0xff] %vm1206, %v1210
    %v1212 = vsub.f32 0.0, %v1080
    %v1213 = vmul.f32 %v1212, 0.0
    %v1214 = vsub.f32 %v1070, %v1213
    %v1215 = vmul.f32 %v1070, 0.0
    %v1216 = vadd.f32 %v1212, %v1215
    %v1217 = vmul.f32 %v1216, 0.0
    %v1218 = vsub.f32 %v1214, %v1217
    %v1219 = vmul.f32 %v1139, %v1218
    %v1220 = vmul.f32 %v1214, 0.0
    %v1221 = vadd.f32 %v1216, %v1220
    %v1222 = vmul.f32 %v1139, %v1221
    %1223 = vadd.xlane.f32.xlu0 %v1219
    %v1224 = vpop.xlane.xlu0 %1223
    %v1225 = vmul.f32 %v1224, 0.0625
    %vm1226 = vcmask 64568
    %1227 = vst.msk [vmem:[#allocation11] sm:$0xff] %vm1226, %v1225
    %1228 = vadd.xlane.f32.xlu0 %v1222
    %v1229 = vpop.xlane.xlu0 %1228
    %v1230 = vmul.f32 %v1229, 0.0625
    %1231 = vst.msk [vmem:[#allocation12] sm:$0xff] %vm1226, %v1230
    %v1232 = vsub.f32 0.0, %v1081
    %v1233 = vmul.f32 %v1232, 0.0
    %v1234 = vsub.f32 %v1071, %v1233
    %v1235 = vmul.f32 %v1071, 0.0
    %v1236 = vadd.f32 %v1232, %v1235
    %v1237 = vmul.f32 %v1236, 0.0
    %v1238 = vsub.f32 %v1234, %v1237
    %v1239 = vmul.f32 %v1150, %v1238
    %v1240 = vmul.f32 %v1234, 0.0
    %v1241 = vadd.f32 %v1236, %v1240
    %v1242 = vmul.f32 %v1150, %v1241
    %1243 = vadd.xlane.f32.xlu0 %v1239
    %v1244 = vpop.xlane.xlu0 %1243
    %v1245 = vmul.f32 %v1244, 0.0625
    %vm1246 = vcmask 72768
    %1247 = vst.msk [vmem:[#allocation11] sm:$0xff] %vm1246, %v1245
    %1248 = vadd.xlane.f32.xlu0 %v1242
    %v1249 = vpop.xlane.xlu0 %1248
    %v1250 = vmul.f32 %v1249, 0.0625
    %1251 = vst.msk [vmem:[#allocation12] sm:$0xff] %vm1246, %v1250
    %v1252 = vsub.f32 0.0, %v1082
    %v1253 = vmul.f32 %v1252, 0.0
    %v1254 = vsub.f32 %v1072, %v1253
    %v1255 = vmul.f32 %v1072, 0.0
    %v1256 = vadd.f32 %v1252, %v1255
    %v1257 = vmul.f32 %v1256, 0.0
    %v1258 = vsub.f32 %v1254, %v1257
    %v1259 = vmul.f32 %v1161, %v1258
    %v1260 = vmul.f32 %v1254, 0.0
    %v1261 = vadd.f32 %v1256, %v1260
    %v1262 = vmul.f32 %v1161, %v1261
    %1263 = vadd.xlane.f32.xlu0 %v1259
    %v1264 = vpop.xlane.xlu0 %1263
    %v1265 = vmul.f32 %v1264, 0.0625
    %vm1266 = vcmask 80968
    %1267 = vst.msk [vmem:[#allocation11] sm:$0xff] %vm1266, %v1265
    %1268 = vadd.xlane.f32.xlu0 %v1262
    %v1269 = vpop.xlane.xlu0 %1268
    %v1270 = vmul.f32 %v1269, 0.0625
    %1271 = vst.msk [vmem:[#allocation12] sm:$0xff] %vm1266, %v1270
    %v1272 = vmul.f32 %v993, %v1000
    %v1273 = vmul.f32 %v1272, 0.0
    %1274 = vadd.xlane.f32.xlu0 %v1272
    %v1275 = vpop.xlane.xlu0 %1274
    %v1276 = vmul.f32 %v1275, 0.0625
    %vm1277 = vcmask 89168
    %1278 = vst.msk [vmem:[#allocation11] sm:$0xff] %vm1277, %v1276
    %1279 = vadd.xlane.f32.xlu0 %v1273
    %v1280 = vpop.xlane.xlu0 %1279
    %v1281 = vmul.f32 %v1280, 0.0625
    %1282 = vst.msk [vmem:[#allocation12] sm:$0xff] %vm1277, %v1281
    %v1283 = vmul.f32 %v1272, %v1198
    %v1284 = vmul.f32 %v1272, %v1201
    %1285 = vadd.xlane.f32.xlu0 %v1283
    %v1286 = vpop.xlane.xlu0 %1285
    %v1287 = vmul.f32 %v1286, 0.0625
    %vm1288 = vcmask 97368
    %1289 = vst.msk [vmem:[#allocation11] sm:$0xff] %vm1288, %v1287
    %1290 = vadd.xlane.f32.xlu0 %v1284
    %v1291 = vpop.xlane.xlu0 %1290
    %v1292 = vmul.f32 %v1291, 0.0625
    %1293 = vst.msk [vmem:[#allocation12] sm:$0xff] %vm1288, %v1292
    %v1294 = vmul.f32 %v1194, %v1069
    %v1295 = vmul.f32 %v1196, %v1192
    %v1296 = vsub.f32 %v1294, %v1295
    %v1297 = vmul.f32 %v1194, %v1192
    %v1298 = vmul.f32 %v1196, %v1069
    %v1299 = vadd.f32 %v1297, %v1298
    %v1300 = vmul.f32 %v1299, 0.0
    %v1301 = vsub.f32 %v1296, %v1300
    %v1302 = vmul.f32 %v1272, %v1301
    %v1303 = vmul.f32 %v1296, 0.0
    %v1304 = vadd.f32 %v1299, %v1303
    %v1305 = vmul.f32 %v1272, %v1304
    %1306 = vadd.xlane.f32.xlu0 %v1302
    %v1307 = vpop.xlane.xlu0 %1306
    %v1308 = vmul.f32 %v1307, 0.0625
    %vm1309 = vcmask 105568
    %1310 = vst.msk [vmem:[#allocation11] sm:$0xff] %vm1309, %v1308
    %1311 = vadd.xlane.f32.xlu0 %v1305
    %v1312 = vpop.xlane.xlu0 %1311
    %v1313 = vmul.f32 %v1312, 0.0625
    %1314 = vst.msk [vmem:[#allocation12] sm:$0xff] %vm1309, %v1313
    %v1315 = vmul.f32 %v1000, %v1007
    %v1316 = vmul.f32 %v1315, 0.0
    %1317 = vadd.xlane.f32.xlu0 %v1315
    %v1318 = vpop.xlane.xlu0 %1317
    %v1319 = vmul.f32 %v1318, 0.0625
    %vm1320 = vcmask 113768
    %1321 = vst.msk [vmem:[#allocation11] sm:$0xff] %vm1320, %v1319
    %1322 = vadd.xlane.f32.xlu0 %v1316
    %v1323 = vpop.xlane.xlu0 %1322
    %v1324 = vmul.f32 %v1323, 0.0625
    %1325 = vst.msk [vmem:[#allocation12] sm:$0xff] %vm1320, %v1324
    %v1326 = vmul.f32 %v1315, %v1218
    %v1327 = vmul.f32 %v1315, %v1221
    %1328 = vadd.xlane.f32.xlu0 %v1326
    %v1329 = vpop.xlane.xlu0 %1328
    %v1330 = vmul.f32 %v1329, 0.0625
    %vm1331 = vcmask 121968
    %1332 = vst.msk [vmem:[#allocation11] sm:$0xff] %vm1331, %v1330
    %1333 = vadd.xlane.f32.xlu0 %v1327
    %v1334 = vpop.xlane.xlu0 %1333
    %v1335 = vmul.f32 %v1334, 0.0625
    %1336 = vst.msk [vmem:[#allocation12] sm:$0xff] %vm1331, %v1335
    %v1337 = vmul.f32 %v1214, %v1070
    %v1338 = vmul.f32 %v1216, %v1212
    %v1339 = vsub.f32 %v1337, %v1338
    %v1340 = vmul.f32 %v1214, %v1212
    %v1341 = vmul.f32 %v1216, %v1070
    %v1342 = vadd.f32 %v1340, %v1341
    %v1343 = vmul.f32 %v1342, 0.0
    %v1344 = vsub.f32 %v1339, %v1343
    %v1345 = vmul.f32 %v1315, %v1344
    %v1346 = vmul.f32 %v1339, 0.0
    %v1347 = vadd.f32 %v1342, %v1346
    %v1348 = vmul.f32 %v1315, %v1347
    %1349 = vadd.xlane.f32.xlu0 %v1345
    %v1350 = vpop.xlane.xlu0 %1349
    %v1351 = vmul.f32 %v1350, 0.0625
    %vm1352 = vcmask 130168
    %1353 = vst.msk [vmem:[#allocation11] sm:$0xff] %vm1352, %v1351
    %1354 = vadd.xlane.f32.xlu0 %v1348
    %v1355 = vpop.xlane.xlu0 %1354
    %v1356 = vmul.f32 %v1355, 0.0625
    %1357 = vst.msk [vmem:[#allocation12] sm:$0xff] %vm1352, %v1356
    %v1358 = vmul.f32 %v1007, %v1014
    %v1359 = vmul.f32 %v1358, 0.0
    %1360 = vadd.xlane.f32.xlu0 %v1358
    %v1361 = vpop.xlane.xlu0 %1360
    %v1362 = vmul.f32 %v1361, 0.0625
    %vm1363 = vcmask 138368
    %1364 = vst.msk [vmem:[#allocation11] sm:$0xff] %vm1363, %v1362
    %1365 = vadd.xlane.f32.xlu0 %v1359
    %v1366 = vpop.xlane.xlu0 %1365
    %v1367 = vmul.f32 %v1366, 0.0625
    %1368 = vst.msk [vmem:[#allocation12] sm:$0xff] %vm1363, %v1367
    %v1369 = vmul.f32 %v1358, %v1238
    %v1370 = vmul.f32 %v1358, %v1241
    %1371 = vadd.xlane.f32.xlu0 %v1369
    %v1372 = vpop.xlane.xlu0 %1371
    %v1373 = vmul.f32 %v1372, 0.0625
    %vm1374 = vcmask 146568
    %1375 = vst.msk [vmem:[#allocation11] sm:$0xff] %vm1374, %v1373
    %1376 = vadd.xlane.f32.xlu0 %v1370
    %v1377 = vpop.xlane.xlu0 %1376
    %v1378 = vmul.f32 %v1377, 0.0625
    %1379 = vst.msk [vmem:[#allocation12] sm:$0xff] %vm1374, %v1378
    %v1380 = vmul.f32 %v1234, %v1071
    %v1381 = vmul.f32 %v1236, %v1232
    %v1382 = vsub.f32 %v1380, %v1381
    %v1383 = vmul.f32 %v1234, %v1232
    %v1384 = vmul.f32 %v1236, %v1071
    %v1385 = vadd.f32 %v1383, %v1384
    %v1386 = vmul.f32 %v1385, 0.0
    %v1387 = vsub.f32 %v1382, %v1386
    %v1388 = vmul.f32 %v1358, %v1387
    %v1389 = vmul.f32 %v1382, 0.0
    %v1390 = vadd.f32 %v1385, %v1389
    %v1391 = vmul.f32 %v1358, %v1390
    %1392 = vadd.xlane.f32.xlu0 %v1388
    %v1393 = vpop.xlane.xlu0 %1392
    %v1394 = vmul.f32 %v1393, 0.0625
    %vm1395 = vcmask 154768
    %1396 = vst.msk [vmem:[#allocation11] sm:$0xff] %vm1395, %v1394
    %1397 = vadd.xlane.f32.xlu0 %v1391
    %v1398 = vpop.xlane.xlu0 %1397
    %v1399 = vmul.f32 %v1398, 0.0625
    %1400 = vst.msk [vmem:[#allocation12] sm:$0xff] %vm1395, %v1399
    %v1401 = vmul.f32 %v1014, %v1021
    %v1402 = vmul.f32 %v1401, 0.0
    %1403 = vadd.xlane.f32.xlu0 %v1401
    %v1404 = vpop.xlane.xlu0 %1403
    %v1405 = vmul.f32 %v1404, 0.0625
    %vm1406 = vcmask 162968
    %1407 = vst.msk [vmem:[#allocation11] sm:$0xff] %vm1406, %v1405
    %1408 = vadd.xlane.f32.xlu0 %v1402
    %v1409 = vpop.xlane.xlu0 %1408
    %v1410 = vmul.f32 %v1409, 0.0625
    %1411 = vst.msk [vmem:[#allocation12] sm:$0xff] %vm1406, %v1410
    %v1412 = vmul.f32 %v1401, %v1258
    %v1413 = vmul.f32 %v1401, %v1261
    %1414 = vadd.xlane.f32.xlu0 %v1412
    %v1415 = vpop.xlane.xlu0 %1414
    %v1416 = vmul.f32 %v1415, 0.0625
    %vm1417 = vcmask 171168
    %1418 = vst.msk [vmem:[#allocation11] sm:$0xff] %vm1417, %v1416
    %1419 = vadd.xlane.f32.xlu0 %v1413
    %v1420 = vpop.xlane.xlu0 %1419
    %v1421 = vmul.f32 %v1420, 0.0625
    %1422 = vst.msk [vmem:[#allocation12] sm:$0xff] %vm1417, %v1421
    %v1423 = vmul.f32 %v1254, %v1072
    %v1424 = vmul.f32 %v1256, %v1252
    %v1425 = vsub.f32 %v1423, %v1424
    %v1426 = vmul.f32 %v1254, %v1252
    %v1427 = vmul.f32 %v1256, %v1072
    %v1428 = vadd.f32 %v1426, %v1427
    %v1429 = vmul.f32 %v1428, 0.0
    %v1430 = vsub.f32 %v1425, %v1429
    %v1431 = vmul.f32 %v1401, %v1430
    %v1432 = vmul.f32 %v1425, 0.0
    %v1433 = vadd.f32 %v1428, %v1432
    %v1434 = vmul.f32 %v1401, %v1433
    %1435 = vadd.xlane.f32.xlu0 %v1431
    %v1436 = vpop.xlane.xlu0 %1435
    %v1437 = vmul.f32 %v1436, 0.0625
    %vm1438 = vcmask 179368
    %1439 = vst.msk [vmem:[#allocation11] sm:$0xff] %vm1438, %v1437
    %1440 = vadd.xlane.f32.xlu0 %v1434
    %v1441 = vpop.xlane.xlu0 %1440
    %v1442 = vmul.f32 %v1441, 0.0625
    %1443 = vst.msk [vmem:[#allocation12] sm:$0xff] %vm1438, %v1442
    %v1444 = vmul.f32 %v1078, 0.0
    %v1445 = vsub.f32 %v1068, %v1444
    %v1446 = vadd.f32 %v1078, %v1175
    %v1447 = vmul.f32 %v1445, %v1194
    %v1448 = vmul.f32 %v1446, %v1196
    %v1449 = vsub.f32 %v1447, %v1448
    %v1450 = vmul.f32 %v1272, %v1449
    %v1451 = vmul.f32 %v1445, %v1196
    %v1452 = vmul.f32 %v1446, %v1194
    %v1453 = vadd.f32 %v1451, %v1452
    %v1454 = vmul.f32 %v1272, %v1453
    %1455 = vadd.xlane.f32.xlu0 %v1450
    %v1456 = vpop.xlane.xlu0 %1455
    %v1457 = vmul.f32 %v1456, 0.0625
    %vm1458 = vcmask 187568
    %1459 = vst.msk [vmem:[#allocation11] sm:$0xff] %vm1458, %v1457
    %1460 = vadd.xlane.f32.xlu0 %v1454
    %v1461 = vpop.xlane.xlu0 %1460
    %v1462 = vmul.f32 %v1461, 0.0625
    %1463 = vst.msk [vmem:[#allocation12] sm:$0xff] %vm1458, %v1462
    %v1464 = vmul.f32 %v1445, %v1296
    %v1465 = vmul.f32 %v1446, %v1299
    %v1466 = vsub.f32 %v1464, %v1465
    %v1467 = vmul.f32 %v1272, %v1466
    %v1468 = vmul.f32 %v1445, %v1299
    %v1469 = vmul.f32 %v1446, %v1296
    %v1470 = vadd.f32 %v1468, %v1469
    %v1471 = vmul.f32 %v1272, %v1470
    %1472 = vadd.xlane.f32.xlu0 %v1467
    %v1473 = vpop.xlane.xlu0 %1472
    %v1474 = vmul.f32 %v1473, 0.0625
    %vm1475 = vcmask 195768
    %1476 = vst.msk [vmem:[#allocation11] sm:$0xff] %vm1475, %v1474
    %1477 = vadd.xlane.f32.xlu0 %v1471
    %v1478 = vpop.xlane.xlu0 %1477
    %v1479 = vmul.f32 %v1478, 0.0625
    %1480 = vst.msk [vmem:[#allocation12] sm:$0xff] %vm1475, %v1479
    %v1481 = vmul.f32 %v1296, %v1069
    %v1482 = vmul.f32 %v1299, %v1192
    %v1483 = vsub.f32 %v1481, %v1482
    %v1484 = vmul.f32 %v1296, %v1192
    %v1485 = vmul.f32 %v1299, %v1069
    %v1486 = vadd.f32 %v1484, %v1485
    %v1487 = vmul.f32 %v1445, %v1483
    %v1488 = vmul.f32 %v1446, %v1486
    %v1489 = vsub.f32 %v1487, %v1488
    %v1490 = vmul.f32 %v1272, %v1489
    %v1491 = vmul.f32 %v1445, %v1486
    %v1492 = vmul.f32 %v1446, %v1483
    %v1493 = vadd.f32 %v1491, %v1492
    %v1494 = vmul.f32 %v1272, %v1493
    %1495 = vadd.xlane.f32.xlu0 %v1490
    %v1496 = vpop.xlane.xlu0 %1495
    %v1497 = vmul.f32 %v1496, 0.0625
    %vm1498 = vcmask 203968
    %1499 = vst.msk [vmem:[#allocation11] sm:$0xff] %vm1498, %v1497
    %1500 = vadd.xlane.f32.xlu0 %v1494
    %v1501 = vpop.xlane.xlu0 %1500
    %v1502 = vmul.f32 %v1501, 0.0625
    %1503 = vst.msk [vmem:[#allocation12] sm:$0xff] %vm1498, %v1502
    %v1504 = vmul.f32 %v1079, 0.0
    %v1505 = vsub.f32 %v1069, %v1504
    %v1506 = vadd.f32 %v1079, %v1195
    %v1507 = vmul.f32 %v1505, %v1214
    %v1508 = vmul.f32 %v1506, %v1216
    %v1509 = vsub.f32 %v1507, %v1508
    %v1510 = vmul.f32 %v1315, %v1509
    %v1511 = vmul.f32 %v1505, %v1216
    %v1512 = vmul.f32 %v1506, %v1214
    %v1513 = vadd.f32 %v1511, %v1512
    %v1514 = vmul.f32 %v1315, %v1513
    %1515 = vadd.xlane.f32.xlu0 %v1510
    %v1516 = vpop.xlane.xlu0 %1515
    %v1517 = vmul.f32 %v1516, 0.0625
    %vm1518 = vcmask 212168
    %1519 = vst.msk [vmem:[#allocation11] sm:$0xff] %vm1518, %v1517
    %1520 = vadd.xlane.f32.xlu0 %v1514
    %v1521 = vpop.xlane.xlu0 %1520
    %v1522 = vmul.f32 %v1521, 0.0625
    %1523 = vst.msk [vmem:[#allocation12] sm:$0xff] %vm1518, %v1522
    %v1524 = vmul.f32 %v1505, %v1339
    %v1525 = vmul.f32 %v1506, %v1342
    %v1526 = vsub.f32 %v1524, %v1525
    %v1527 = vmul.f32 %v1315, %v1526
    %v1528 = vmul.f32 %v1505, %v1342
    %v1529 = vmul.f32 %v1506, %v1339
    %v1530 = vadd.f32 %v1528, %v1529
    %v1531 = vmul.f32 %v1315, %v1530
    %1532 = vadd.xlane.f32.xlu0 %v1527
    %v1533 = vpop.xlane.xlu0 %1532
    %v1534 = vmul.f32 %v1533, 0.0625
    %vm1535 = vcmask 220368
    %1536 = vst.msk [vmem:[#allocation11] sm:$0xff] %vm1535, %v1534
    %1537 = vadd.xlane.f32.xlu0 %v1531
    %v1538 = vpop.xlane.xlu0 %1537
    %v1539 = vmul.f32 %v1538, 0.0625
    %1540 = vst.msk [vmem:[#allocation12] sm:$0xff] %vm1535, %v1539
    %v1541 = vmul.f32 %v1339, %v1070
    %v1542 = vmul.f32 %v1342, %v1212
    %v1543 = vsub.f32 %v1541, %v1542
    %v1544 = vmul.f32 %v1339, %v1212
    %v1545 = vmul.f32 %v1342, %v1070
    %v1546 = vadd.f32 %v1544, %v1545
    %v1547 = vmul.f32 %v1505, %v1543
    %v1548 = vmul.f32 %v1506, %v1546
    %v1549 = vsub.f32 %v1547, %v1548
    %v1550 = vmul.f32 %v1315, %v1549
    %v1551 = vmul.f32 %v1505, %v1546
    %v1552 = vmul.f32 %v1506, %v1543
    %v1553 = vadd.f32 %v1551, %v1552
    %v1554 = vmul.f32 %v1315, %v1553
    %1555 = vadd.xlane.f32.xlu0 %v1550
    %v1556 = vpop.xlane.xlu0 %1555
    %v1557 = vmul.f32 %v1556, 0.0625
    %vm1558 = vcmask 228568
    %1559 = vst.msk [vmem:[#allocation11] sm:$0xff] %vm1558, %v1557
    %1560 = vadd.xlane.f32.xlu0 %v1554
    %v1561 = vpop.xlane.xlu0 %1560
    %v1562 = vmul.f32 %v1561, 0.0625
    %1563 = vst.msk [vmem:[#allocation12] sm:$0xff] %vm1558, %v1562
    %v1564 = vmul.f32 %v1080, 0.0
    %v1565 = vsub.f32 %v1070, %v1564
    %v1566 = vadd.f32 %v1080, %v1215
    %v1567 = vmul.f32 %v1565, %v1234
    %v1568 = vmul.f32 %v1566, %v1236
    %v1569 = vsub.f32 %v1567, %v1568
    %v1570 = vmul.f32 %v1358, %v1569
    %v1571 = vmul.f32 %v1565, %v1236
    %v1572 = vmul.f32 %v1566, %v1234
    %v1573 = vadd.f32 %v1571, %v1572
    %v1574 = vmul.f32 %v1358, %v1573
    %1575 = vadd.xlane.f32.xlu0 %v1570
    %v1576 = vpop.xlane.xlu0 %1575
    %v1577 = vmul.f32 %v1576, 0.0625
    %vm1578 = vcmask 236768
    %1579 = vst.msk [vmem:[#allocation11] sm:$0xff] %vm1578, %v1577
    %1580 = vadd.xlane.f32.xlu0 %v1574
    %v1581 = vpop.xlane.xlu0 %1580
    %v1582 = vmul.f32 %v1581, 0.0625
    %1583 = vst.msk [vmem:[#allocation12] sm:$0xff] %vm1578, %v1582
    %v1584 = vmul.f32 %v1565, %v1382
    %v1585 = vmul.f32 %v1566, %v1385
    %v1586 = vsub.f32 %v1584, %v1585
    %v1587 = vmul.f32 %v1358, %v1586
    %v1588 = vmul.f32 %v1565, %v1385
    %v1589 = vmul.f32 %v1566, %v1382
    %v1590 = vadd.f32 %v1588, %v1589
    %v1591 = vmul.f32 %v1358, %v1590
    %1592 = vadd.xlane.f32.xlu0 %v1587
    %v1593 = vpop.xlane.xlu0 %1592
    %v1594 = vmul.f32 %v1593, 0.0625
    %vm1595 = vcmask 244968
    %1596 = vst.msk [vmem:[#allocation11] sm:$0xff] %vm1595, %v1594
    %1597 = vadd.xlane.f32.xlu0 %v1591
    %v1598 = vpop.xlane.xlu0 %1597
    %v1599 = vmul.f32 %v1598, 0.0625
    %1600 = vst.msk [vmem:[#allocation12] sm:$0xff] %vm1595, %v1599
    %v1601 = vmul.f32 %v1382, %v1071
    %v1602 = vmul.f32 %v1385, %v1232
    %v1603 = vsub.f32 %v1601, %v1602
    %v1604 = vmul.f32 %v1382, %v1232
    %v1605 = vmul.f32 %v1385, %v1071
    %v1606 = vadd.f32 %v1604, %v1605
    %v1607 = vmul.f32 %v1565, %v1603
    %v1608 = vmul.f32 %v1566, %v1606
    %v1609 = vsub.f32 %v1607, %v1608
    %v1610 = vmul.f32 %v1358, %v1609
    %v1611 = vmul.f32 %v1565, %v1606
    %v1612 = vmul.f32 %v1566, %v1603
    %v1613 = vadd.f32 %v1611, %v1612
    %v1614 = vmul.f32 %v1358, %v1613
    %1615 = vadd.xlane.f32.xlu0 %v1610
    %v1616 = vpop.xlane.xlu0 %1615
    %v1617 = vmul.f32 %v1616, 0.0625
    %vm1618 = vcmask 253168
    %1619 = vst.msk [vmem:[#allocation11] sm:$0xff] %vm1618, %v1617
    %1620 = vadd.xlane.f32.xlu0 %v1614
    %v1621 = vpop.xlane.xlu0 %1620
    %v1622 = vmul.f32 %v1621, 0.0625
    %1623 = vst.msk [vmem:[#allocation12] sm:$0xff] %vm1618, %v1622
    %v1624 = vmul.f32 %v1081, 0.0
    %v1625 = vsub.f32 %v1071, %v1624
    %v1626 = vadd.f32 %v1081, %v1235
    %v1627 = vmul.f32 %v1625, %v1254
    %v1628 = vmul.f32 %v1626, %v1256
    %v1629 = vsub.f32 %v1627, %v1628
    %v1630 = vmul.f32 %v1401, %v1629
    %v1631 = vmul.f32 %v1625, %v1256
    %v1632 = vmul.f32 %v1626, %v1254
    %v1633 = vadd.f32 %v1631, %v1632
    %v1634 = vmul.f32 %v1401, %v1633
    %1635 = vadd.xlane.f32.xlu0 %v1630
    %v1636 = vpop.xlane.xlu0 %1635
    %v1637 = vmul.f32 %v1636, 0.0625
    %vm1638 = vcmask 261368
    %1639 = vst.msk [vmem:[#allocation11] sm:$0xff] %vm1638, %v1637
    %1640 = vadd.xlane.f32.xlu0 %v1634
    %v1641 = vpop.xlane.xlu0 %1640
    %v1642 = vmul.f32 %v1641, 0.0625
    %1643 = vst.msk [vmem:[#allocation12] sm:$0xff] %vm1638, %v1642
    %v1644 = vmul.f32 %v1625, %v1425
    %v1645 = vmul.f32 %v1626, %v1428
    %v1646 = vsub.f32 %v1644, %v1645
    %v1647 = vmul.f32 %v1401, %v1646
    %v1648 = vmul.f32 %v1625, %v1428
    %v1649 = vmul.f32 %v1626, %v1425
    %v1650 = vadd.f32 %v1648, %v1649
    %v1651 = vmul.f32 %v1401, %v1650
    %1652 = vadd.xlane.f32.xlu0 %v1647
    %v1653 = vpop.xlane.xlu0 %1652
    %v1654 = vmul.f32 %v1653, 0.0625
    %vm1655 = vcmask 269568
    %1656 = vst.msk [vmem:[#allocation11] sm:$0xff] %vm1655, %v1654
    %1657 = vadd.xlane.f32.xlu0 %v1651
    %v1658 = vpop.xlane.xlu0 %1657
    %v1659 = vmul.f32 %v1658, 0.0625
    %1660 = vst.msk [vmem:[#allocation12] sm:$0xff] %vm1655, %v1659
    %v1661 = vmul.f32 %v1425, %v1072
    %v1662 = vmul.f32 %v1428, %v1252
    %v1663 = vsub.f32 %v1661, %v1662
    %v1664 = vmul.f32 %v1425, %v1252
    %v1665 = vmul.f32 %v1428, %v1072
    %v1666 = vadd.f32 %v1664, %v1665
    %v1667 = vmul.f32 %v1625, %v1663
    %v1668 = vmul.f32 %v1626, %v1666
    %v1669 = vsub.f32 %v1667, %v1668
    %v1670 = vmul.f32 %v1401, %v1669
    %v1671 = vmul.f32 %v1625, %v1666
    %v1672 = vmul.f32 %v1626, %v1663
    %v1673 = vadd.f32 %v1671, %v1672
    %v1674 = vmul.f32 %v1401, %v1673
    %1675 = vadd.xlane.f32.xlu0 %v1670
    %v1676 = vpop.xlane.xlu0 %1675
    %v1677 = vmul.f32 %v1676, 0.0625
    %vm1678 = vcmask 277768
    %1679 = vst.msk [vmem:[#allocation11] sm:$0xff] %vm1678, %v1677
    %1680 = vadd.xlane.f32.xlu0 %v1674
    %v1681 = vpop.xlane.xlu0 %1680
    %v1682 = vmul.f32 %v1681, 0.0625
    %1683 = vst.msk [vmem:[#allocation12] sm:$0xff] %vm1678, %v1682
    // Predicated region
    $region46: #{tpu_custom_call.1} parent=1 // pred_check
      _
    $region47: #{tpu_custom_call.1} parent=1 // pred_check_branch
      %1685 = sbr.rel (0) target = $region49
    $region48: #{tpu_custom_call.1} parent=1 // pred_region
      _
    $region49: #{tpu_custom_call.1} parent=1 // pred_fallthru
      _
    // Predicated region
    $region50: #{tpu_custom_call.1} parent=1 // pred_check
      _
    $region51: #{tpu_custom_call.1} parent=1 // pred_check_branch
      %1687 = sbr.rel (0) target = $region53
    $region52: #{tpu_custom_call.1} parent=1 // pred_region
      %s1689 = ssub.s32 128, 128
      %1690 = vsyncadd [#allocation4], %s1689
      %s1692 = sshll.u32 [#allocation11], 4
      %s1693 = int_to_ptr.vmem [resolvable:$true] %s1692
      %1695 = dma.vmem_to_hbm [thread:$0]  %s1693, 128, %s7, [#allocation4]
    $region53: #{tpu_custom_call.1} parent=1 // pred_fallthru
      _
    // Predicated region
    $region54: #{tpu_custom_call.1} parent=1 // pred_check
      _
    $region55: #{tpu_custom_call.1} parent=1 // pred_check_branch
      %1697 = sbr.rel (0) target = $region57
    $region56: #{tpu_custom_call.1} parent=1 // pred_region
      %s1699 = ssub.s32 128, 128
      %1700 = vsyncadd [#allocation13], %s1699
      %s1702 = sshll.u32 [#allocation12], 4
      %s1703 = int_to_ptr.vmem [resolvable:$true] %s1702
      %1705 = dma.vmem_to_hbm [thread:$0]  %s1703, 128, %s8, [#allocation13]
    $region57: #{tpu_custom_call.1} parent=1 // pred_fallthru
      _
    // Predicated region
    $region58: #{tpu_custom_call.1} parent=1 // pred_check
      _
    $region59: #{tpu_custom_call.1} parent=1 // pred_check_branch
      %1707 = sbr.rel (0) target = $region61
    $region60: #{tpu_custom_call.1} parent=1 // pred_region
      _
    $region61: #{tpu_custom_call.1} parent=1 // pred_fallthru
      _
    // Predicated region
    $region62: #{tpu_custom_call.1} parent=1 // pred_check
      _
    $region63: #{tpu_custom_call.1} parent=1 // pred_check_branch
      %1709 = sbr.rel (0) target = $region65
    $region64: #{tpu_custom_call.1} parent=1 // pred_region
      %1710 = dma.done [#allocation4], 128
    $region65: #{tpu_custom_call.1} parent=1 // pred_fallthru
      _
    // Predicated region
    $region66: #{tpu_custom_call.1} parent=1 // pred_check
      _
    $region67: #{tpu_custom_call.1} parent=1 // pred_check_branch
      %1712 = sbr.rel (0) target = $region69
    $region68: #{tpu_custom_call.1} parent=1 // pred_region
      %1713 = dma.done [#allocation13], 128
    $region69: #{tpu_custom_call.1} parent=1 // pred_fallthru
      _
    %1714 = vsyncpa [#allocation3], 1
    %1715 = vsyncpa [#allocation6], 1
    %1716 = vsyncpa [#allocation9], 1
    %1717 = vsyncpa [#allocation4], 1
    %1718 = vsyncpa [#allocation13], 1

</llo_original>
